<compile_context>
chip_gen: v7x
topology: tpu7x:2x2x1
jax: 0.10.0
libtpu: 0.0.40
codegen_flags: <defaults>
</compile_context>

<pallas_src>
import functools

import jax
import jax.numpy as jnp
from jax.experimental import pallas as pl
from jax.experimental.pallas import tpu as pltpu


def _conv_out(n, k, s):
    return (n - k) // s + 1


# ----------------------------------------------------------------------------
# Fused Pallas kernel: conv1 + conv2 + conv3 + fc + heads for one batch tile.
# ----------------------------------------------------------------------------
def _fused_a2c_kernel(xe_ref, xo_ref, w1_ref, b1_ref, w2_ref, b2_ref,
                      w3_ref, b3_ref, wfc_ref, bfc_ref, wh_ref, bh_ref,
                      o_ref, *, tb, r1, oh2, oh3):
    """All activations are 2D with rows = (image_row, image_in_tile), i.e. row = r*tb + i,
    and cols = (column_position, channel).  Every row access below is a contiguous slice
    whose offset is a multiple of tb (sublane-aligned for tb % 8 == 0)."""
    f32 = jnp.float32
    bf16 = jnp.bfloat16

    xe = xe_ref[0]                      # ((r1+1)*tb, K1) even space-to-depth input rows
    xo = xo_ref[0]                      # (r1*tb,     K1) odd  space-to-depth input rows

    # conv1 (8x8, stride 4) as two banded matmuls on the space-to-depth'd input, producing
    # the even (a1e) and odd (a1o) conv1 output rows separately so that conv2's row stride
    # of 2 becomes contiguous slices.
    n1 = r1 * tb
    a1e = (jnp.dot(xe[0:n1], w1_ref[0], preferred_element_type=f32) +
           jnp.dot(xo[0:n1], w1_ref[1], preferred_element_type=f32))
    a1o = (jnp.dot(xo[0:n1], w1_ref[0], preferred_element_type=f32) +
           jnp.dot(xe[tb:tb + n1], w1_ref[1], preferred_element_type=f32))
    a1e = jnp.maximum(a1e + b1_ref[...], 0.0).astype(bf16)
    a1o = jnp.maximum(a1o + b1_ref[...], 0.0).astype(bf16)

    # conv2 (4x4, stride 2): input row 2*oh2 + di  ->  (a1e, a1o)[oh2 + di // 2]
    n2 = oh2 * tb
    a2 = (jnp.dot(a1e[0:n2], w2_ref[0], preferred_element_type=f32) +
          jnp.dot(a1o[0:n2], w2_ref[1], preferred_element_type=f32) +
          jnp.dot(a1e[tb:tb + n2], w2_ref[2], preferred_element_type=f32) +
          jnp.dot(a1o[tb:tb + n2], w2_ref[3], preferred_element_type=f32))
    a2 = jnp.maximum(a2 + b2_ref[...], 0.0).astype(bf16)

    # conv3 (3x3, stride 1)
    n3 = oh3 * tb
    a3 = (jnp.dot(a2[0:n3], w3_ref[0], preferred_element_type=f32) +
          jnp.dot(a2[tb:tb + n3], w3_ref[1], preferred_element_type=f32) +
          jnp.dot(a2[2 * tb:2 * tb + n3], w3_ref[2], preferred_element_type=f32))
    a3 = jnp.maximum(a3 + b3_ref[...], 0.0).astype(bf16)

    # fc (the PyTorch NCHW flatten is folded into per-output-row weight blocks) + ReLU
    fc = jnp.dot(a3[0:tb], wfc_ref[0], preferred_element_type=f32)
    for h in range(1, oh3):
        fc = fc + jnp.dot(a3[h * tb:(h + 1) * tb], wfc_ref[h],
                          preferred_element_type=f32)
    fc = jnp.maximum(fc + bfc_ref[...], 0.0).astype(bf16)

    # fused policy / value heads
    o_ref[0] = jnp.dot(fc, wh_ref[...], preferred_element_type=f32) + bh_ref[...]


# ----------------------------------------------------------------------------
# One-time parameter re-layout (outside the hot path)
# ----------------------------------------------------------------------------
def _col_band(w_tap, win, wout, stride):
    """Per-row-tap conv weight (Cout, Cin, KW) -> banded column matmul weight
    (win*Cin, wout*Cout): band[(wi, ci), (wo, co)] = w_tap[co, ci, wi - stride*wo]
    (zero outside 0 <= wi - stride*wo < KW)."""
    cout, cin, kw = w_tap.shape
    band = jnp.zeros((win, cin, wout, cout), jnp.float32)
    for kj in range(kw):
        wo = jnp.arange(wout)
        wi = stride * wo + kj
        sel = jnp.zeros((win, wout), jnp.float32).at[wi, wo].set(1.0)
        band = band + jnp.einsum("wv,co->wcvo", sel,
                                 w_tap[:, :, kj].astype(jnp.float32).T)
    return band.reshape(win * cin, wout * cout)


def prepare_params(params, input_shape):
    """Re-layout PyTorch-style parameters into banded matmul weights for the fused kernel.
    The x/256 scaling is folded into the conv1 weights (exact: power of two), the fc rows
    are permuted from NCHW flatten order to our (row, col, channel) layout, and the
    policy / value heads are fused into a single matmul."""
    C, H, W = input_shape
    assert H % 4 == 0 and W % 4 == 0, "input spatial dims must be divisible by 4"
    oh1, ow1 = _conv_out(H, 8, 4), _conv_out(W, 8, 4)
    oh2, ow2 = _conv_out(oh1, 4, 2), _conv_out(ow1, 4, 2)
    oh3, ow3 = _conv_out(oh2, 3, 1), _conv_out(ow2, 3, 1)
    assert oh1 >= 4 and ow1 >= 4 and oh2 >= 3 and ow2 >= 3, "input too small for conv stack"

    c1o = params["c1_w"].shape[0]
    c3o = params["c3_w"].shape[0]
    assert tuple(params["c1_w"].shape[1:]) == (C, 8, 8), "conv1 must be (·, C, 8, 8)"
    assert tuple(params["c2_w"].shape[2:]) == (4, 4), "conv2 must be 4x4"
    assert tuple(params["c3_w"].shape[2:]) == (3, 3), "conv3 must be 3x3"

    ws1 = W // 4

    # conv1: 4x4 space-to-depth -> 2 row taps, each (Cout, 16*C, 2 column blocks)
    w1 = params["c1_w"].reshape(c1o, C, 2, 4, 2, 4)       # (o, c, di, ri, kjb, rj)
    w1 = jnp.transpose(w1, (2, 0, 3, 5, 1, 4))            # (di, o, ri, rj, c, kjb)
    w1 = w1.reshape(2, c1o, 16 * C, 2) * (1.0 / 256.0)    # /256 folded in (exact)
    w1_band = jnp.stack([_col_band(w1[d], ws1, ow1, 1) for d in range(2)])

    # conv2: 4 row taps (row stride 2 handled in-kernel via the even/odd decomposition)
    w2_band = jnp.stack([_col_band(params["c2_w"][:, :, d, :], ow1, ow2, 2)
                         for d in range(4)])
    # conv3: 3 row taps
    w3_band = jnp.stack([_col_band(params["c3_w"][:, :, d, :], ow2, ow3, 1)
                         for d in range(3)])

    # fc: PyTorch flatten order (c, h, w) -> per-h weight blocks over our (w, c) columns
    fc_w = params["fc_w"].reshape(c3o, oh3, ow3, -1)
    fc_w = jnp.transpose(fc_w, (1, 2, 0, 3)).reshape(oh3, ow3 * c3o, -1)

    return {
        "w1": w1_band.astype(jnp.bfloat16),
        "b1": jnp.tile(params["c1_b"], ow1).reshape(1, -1).astype(jnp.float32),
        "w2": w2_band.astype(jnp.bfloat16),
        "b2": jnp.tile(params["c2_b"], ow2).reshape(1, -1).astype(jnp.float32),
        "w3": w3_band.astype(jnp.bfloat16),
        "b3": jnp.tile(params["c3_b"], ow3).reshape(1, -1).astype(jnp.float32),
        "wfc": fc_w.astype(jnp.bfloat16),
        "bfc": params["fc_b"].reshape(1, -1).astype(jnp.float32),
        "wh": jnp.concatenate([params["pi_w"], params["v_w"]], axis=1).astype(jnp.bfloat16),
        "bh": jnp.concatenate([params["pi_b"], params["v_b"]]).reshape(1, -1).astype(jnp.float32),
    }


# ----------------------------------------------------------------------------
# Forward-pass wrapper
# ----------------------------------------------------------------------------
def _space_to_depth(x, r):
    b, h, w, c = x.shape
    x = x.reshape(b, h // r, r, w // r, r, c)
    x = jnp.transpose(x, (0, 1, 3, 2, 4, 5))
    return x.reshape(b, h // r, w // r, r * r * c)


def _pick_batch_tile(b, target):
    if b <= 1:
        return 1
    tb = min(target, (b + 1) // 2)        # always >= 2 grid blocks (v7x megacore)
    if tb >= 8:
        tb = (tb // 8) * 8                # sublane-aligned band shifts
    return max(tb, 1)


def atari_a2c_forward(prep, x_nchw, *, batch_tile=32):
    """Policy / value forward for uint8 NCHW Atari frames, as one fused pallas_call."""
    B, C, H, W = x_nchw.shape
    hs1, ws1 = H // 4, W // 4
    oh1 = _conv_out(H, 8, 4)
    oh2 = _conv_out(oh1, 4, 2)
    oh3 = _conv_out(oh2, 3, 1)
    r1 = oh2 + 1                          # even (and odd) conv1 output rows needed
    k1 = ws1 * 16 * C
    n_heads = prep["wh"].shape[1]

    tb = _pick_batch_tile(B, batch_tile)
    nt = pl.cdiv(B, tb)
    bp = nt * tb

    # --- input-side layout work (XLA, touches only the raw frames once) ---
    x = x_nchw.astype(jnp.bfloat16)       # 0..255 exact in bf16; the /256 lives in w1
    x = jnp.transpose(x, (0, 2, 3, 1))    # NCHW -> NHWC
    x = _space_to_depth(x, 4).reshape(B, hs1, k1)
    if bp != B:                           # zero-pad the batch to a tile multiple
        x = jnp.concatenate([x, jnp.zeros((bp - B, hs1, k1), x.dtype)], axis=0)
    # even / odd space-to-depth rows, packed as rows = (image_row, image_in_tile)
    xe = x[:, 0:2 * r1 + 1:2]             # (bp, r1+1, k1)
    xo = x[:, 1:2 * r1:2]                 # (bp, r1,   k1)
    xe = xe.reshape(nt, tb, r1 + 1, k1).transpose(0, 2, 1, 3).reshape(nt, (r1 + 1) * tb, k1)
    xo = xo.reshape(nt, tb, r1, k1).transpose(0, 2, 1, 3).reshape(nt, r1 * tb, k1)

    # --- VMEM budget derived from the actual footprint (review item), not hardcoded ---
    weight_keys = ("w1", "b1", "w2", "b2", "w3", "b3", "wfc", "bfc", "wh", "bh")
    weight_bytes = sum(int(prep[k].size) * prep[k].dtype.itemsize for k in weight_keys)
    input_bytes = ((r1 + 1) * tb + r1 * tb) * k1 * 2      # bf16 input blocks
    n1c, n2c, n3c = prep["w1"].shape[2], prep["w2"].shape[2], prep["w3"].shape[2]
    inter_bytes = (2 * r1 * tb * n1c + oh2 * tb * n2c + oh3 * tb * n3c
                   + tb * prep["wfc"].shape[2]) * 6        # f32 result + bf16 copy
    vmem_limit = 2 * weight_bytes + 2 * input_bytes + inter_bytes + (16 << 20)
    vmem_limit = int(min(vmem_limit, 60 << 20))            # stays under v7x's 64 MiB

    kernel = functools.partial(_fused_a2c_kernel, tb=tb, r1=r1, oh2=oh2, oh3=oh3)
    heads = pl.pallas_call(
        kernel,
        out_shape=jax.ShapeDtypeStruct((nt, tb, n_heads), jnp.float32),
        grid=(nt,),
        in_specs=[
            pl.BlockSpec((1, (r1 + 1) * tb, k1), lambda t: (t, 0, 0)),
            pl.BlockSpec((1, r1 * tb, k1), lambda t: (t, 0, 0)),
            pl.BlockSpec(prep["w1"].shape, lambda t: (0, 0, 0)),   # VMEM-resident weights
            pl.BlockSpec(prep["b1"].shape, lambda t: (0, 0)),
            pl.BlockSpec(prep["w2"].shape, lambda t: (0, 0, 0)),
            pl.BlockSpec(prep["b2"].shape, lambda t: (0, 0)),
            pl.BlockSpec(prep["w3"].shape, lambda t: (0, 0, 0)),
            pl.BlockSpec(prep["b3"].shape, lambda t: (0, 0)),
            pl.BlockSpec(prep["wfc"].shape, lambda t: (0, 0, 0)),
            pl.BlockSpec(prep["bfc"].shape, lambda t: (0, 0)),
            pl.BlockSpec(prep["wh"].shape, lambda t: (0, 0)),
            pl.BlockSpec(prep["bh"].shape, lambda t: (0, 0)),
        ],
        out_specs=pl.BlockSpec((1, tb, n_heads), lambda t: (t, 0, 0)),
        compiler_params=pltpu.CompilerParams(
            dimension_semantics=("parallel",),
            vmem_limit_bytes=vmem_limit,
        ),
    )(xe, xo, prep["w1"], prep["b1"], prep["w2"], prep["b2"],
      prep["w3"], prep["b3"], prep["wfc"], prep["bfc"], prep["wh"], prep["bh"])

    heads = heads.reshape(bp, n_heads)[:B]
    n_actions = n_heads - 1
    return heads[:, :n_actions], heads[:, n_actions:]


# ----------------------------------------------------------------------------
# Deterministic init + pure-JAX f32 reference (same math as the PyTorch module)
# ----------------------------------------------------------------------------
def init_params(key, input_shape, n_actions):
    C, H, W = input_shape
    h, w = _conv_out(H, 8, 4), _conv_out(W, 8, 4)
    h, w = _conv_out(h, 4, 2), _conv_out(w, 4, 2)
    h, w = _conv_out(h, 3, 1), _conv_out(w, 3, 1)
    conv_out_size = 64 * h * w

    keys = jax.random.split(key, 12)

    def u(k, shape, fan_in):
        bound = 1.0 / (fan_in ** 0.5)
        return jax.random.uniform(k, shape, jnp.float32, -bound, bound)

    p = {}
    p["c1_w"] = u(keys[0], (32, C, 8, 8), C * 64)
    p["c1_b"] = u(keys[1], (32,), C * 64)
    p["c2_w"] = u(keys[2], (64, 32, 4, 4), 32 * 16)
    p["c2_b"] = u(keys[3], (64,), 32 * 16)
    p["c3_w"] = u(keys[4], (64, 64, 3, 3), 64 * 9)
    p["c3_b"] = u(keys[5], (64,), 64 * 9)
    p["fc_w"] = u(keys[6], (conv_out_size, 512), conv_out_size)
    p["fc_b"] = u(keys[7], (512,), conv_out_size)
    p["pi_w"] = u(keys[8], (512, n_actions), 512)
    p["pi_b"] = u(keys[9], (n_actions,), 512)
    p["v_w"] = u(keys[10], (512, 1), 512)
    p["v_b"] = u(keys[11], (1,), 512)
    return p


def _reference_forward(params, x_nchw):
    x = x_nchw.astype(jnp.float32) / 256.0
    x = jnp.transpose(x, (0, 2, 3, 1))

    def conv(h, w, b, stride):
        O, I, kh, kw = w.shape
        B, H, W, C = h.shape
        OH, OW = (H - kh) // stride + 1, (W - kw) // stride + 1
        cols = []
        for i in range(kh):
            for j in range(kw):
                cols.append(h[:, i:i + stride * OH:stride, j:j + stride * OW:stride, :])
        patches = jnp.stack(cols, axis=3).reshape(B * OH * OW, kh * kw * C)
        w2 = jnp.transpose(w, (2, 3, 1, 0)).reshape(kh * kw * I, O)
        return jnp.maximum(patches @ w2 + b, 0.0).reshape(B, OH, OW, O)

    h = conv(x, params["c1_w"], params["c1_b"], 4)
    h = conv(h, params["c2_w"], params["c2_b"], 2)
    h = conv(h, params["c3_w"], params["c3_b"], 1)
    B = h.shape[0]
    flat = jnp.transpose(h, (0, 3, 1, 2)).reshape(B, -1)    # PyTorch NCHW flatten
    fc = jnp.maximum(flat @ params["fc_w"] + params["fc_b"], 0.0)
    return fc @ params["pi_w"] + params["pi_b"], fc @ params["v_w"] + params["v_b"]


if __name__ == "__main__":
    batch = 16
    input_shape = (4, 44, 44)   # small, but exercises every layer + the fc row permutation
    n_actions = 6

    key = jax.random.PRNGKey(0)
    kp, kx = jax.random.split(key)
    params = init_params(kp, input_shape, n_actions)
    prep = prepare_params(params, input_shape)

    x = jax.random.randint(kx, (batch,) + input_shape, 0, 256, dtype=jnp.int32)
    x = x.astype(jnp.uint8)     # Atari-style uint8 frames

    fwd = jax.jit(atari_a2c_forward)
    policy, value = fwd(prep, x)
    jax.block_until_ready((policy, value))

    assert policy.shape == (batch, n_actions) and policy.dtype == jnp.float32
    assert value.shape == (batch, 1) and value.dtype == jnp.float32

    # f32 reference check (bf16 MXU inputs/activations -> small, documented numeric delta)
    with jax.default_matmul_precision("highest"):
        p_ref, v_ref = _reference_forward(params, x)
    p_err = float(jnp.max(jnp.abs(policy - p_ref)))
    v_err = float(jnp.max(jnp.abs(value - v_ref)))
    assert p_err < 1e-1, f"policy mismatch vs reference: {p_err}"
    assert v_err < 1e-1, f"value mismatch vs reference: {v_err}"

    print("KERNEL_OK")
</pallas_src>

<mosaic_0001>
module attributes {stable_mosaic.version = 11 : i64} {
  func.func @_fused_a2c_kernel(%arg0: i32, %arg1: memref<1x48x704xbf16, #tpu.memory_space<vmem>>, %arg2: memref<1x40x704xbf16, #tpu.memory_space<vmem>>, %arg3: memref<2x704x320xbf16, #tpu.memory_space<vmem>>, %arg4: memref<1x320xf32, #tpu.memory_space<vmem>>, %arg5: memref<4x320x256xbf16, #tpu.memory_space<vmem>>, %arg6: memref<1x256xf32, #tpu.memory_space<vmem>>, %arg7: memref<3x256x128xbf16, #tpu.memory_space<vmem>>, %arg8: memref<1x128xf32, #tpu.memory_space<vmem>>, %arg9: memref<2x128x512xbf16, #tpu.memory_space<vmem>>, %arg10: memref<1x512xf32, #tpu.memory_space<vmem>>, %arg11: memref<512x7xbf16, #tpu.memory_space<vmem>>, %arg12: memref<1x7xf32, #tpu.memory_space<vmem>>, %arg13: memref<1x8x7xf32, #tpu.memory_space<vmem>>) attributes {dimension_semantics = [#tpu.dimension_semantics<parallel>], iteration_bounds = array<i64: 2>, scalar_prefetch = 0 : i64, scratch_operands = 0 : i64, tpu.core_type = #tpu.core_type<tc>, window_params = [{transform_indices = @transform_0, window_bounds = array<i64: 1, 48, 704>}, {transform_indices = @transform_1, window_bounds = array<i64: 1, 40, 704>}, {pipeline_mode = #tpu.pipeline_mode<synchronous>, transform_indices = @transform_2, window_bounds = array<i64: 2, 704, 320>}, {pipeline_mode = #tpu.pipeline_mode<synchronous>, transform_indices = @transform_3, window_bounds = array<i64: 1, 320>}, {pipeline_mode = #tpu.pipeline_mode<synchronous>, transform_indices = @transform_4, window_bounds = array<i64: 4, 320, 256>}, {pipeline_mode = #tpu.pipeline_mode<synchronous>, transform_indices = @transform_5, window_bounds = array<i64: 1, 256>}, {pipeline_mode = #tpu.pipeline_mode<synchronous>, transform_indices = @transform_6, window_bounds = array<i64: 3, 256, 128>}, {pipeline_mode = #tpu.pipeline_mode<synchronous>, transform_indices = @transform_7, window_bounds = array<i64: 1, 128>}, {pipeline_mode = #tpu.pipeline_mode<synchronous>, transform_indices = @transform_8, window_bounds = array<i64: 2, 128, 512>}, {pipeline_mode = #tpu.pipeline_mode<synchronous>, transform_indices = @transform_9, window_bounds = array<i64: 1, 512>}, {pipeline_mode = #tpu.pipeline_mode<synchronous>, transform_indices = @transform_10, window_bounds = array<i64: 512, 7>}, {pipeline_mode = #tpu.pipeline_mode<synchronous>, transform_indices = @transform_11, window_bounds = array<i64: 1, 7>}, {transform_indices = @transform_12, window_bounds = array<i64: 1, 8, 7>}]} {
    %c0 = arith.constant 0 : index
    %c0_0 = arith.constant 0 : index
    %c0_1 = arith.constant 0 : index
    %0 = vector.load %arg1[%c0, %c0_0, %c0_1] : memref<1x48x704xbf16, #tpu.memory_space<vmem>>, vector<1x48x704xbf16>
    %1 = vector.shape_cast %0 : vector<1x48x704xbf16> to vector<48x704xbf16>
    %c0_2 = arith.constant 0 : index
    %c0_3 = arith.constant 0 : index
    %c0_4 = arith.constant 0 : index
    %2 = vector.load %arg2[%c0_2, %c0_3, %c0_4] : memref<1x40x704xbf16, #tpu.memory_space<vmem>>, vector<1x40x704xbf16>
    %3 = vector.shape_cast %2 : vector<1x40x704xbf16> to vector<40x704xbf16>
    %4 = vector.extract_strided_slice %1 {offsets = [0, 0], sizes = [40, 704], strides = [1, 1]} : vector<48x704xbf16> to vector<40x704xbf16>
    %c0_5 = arith.constant 0 : index
    %c0_6 = arith.constant 0 : index
    %c0_7 = arith.constant 0 : index
    %5 = vector.load %arg3[%c0_5, %c0_6, %c0_7] : memref<2x704x320xbf16, #tpu.memory_space<vmem>>, vector<1x704x320xbf16>
    %6 = vector.shape_cast %5 : vector<1x704x320xbf16> to vector<704x320xbf16>
    %cst = arith.constant dense<0.000000e+00> : vector<40x320xf32>
    %7 = tpu.matmul %4, %6, %cst {dimension_numbers = #tpu.dot_dimension_numbers<[1], [0], [0], [1], [0, 0, 1, 1], [], []>} : vector<40x704xbf16>, vector<704x320xbf16>, vector<40x320xf32> -> vector<40x320xf32>
    %c1 = arith.constant 1 : index
    %c0_8 = arith.constant 0 : index
    %c0_9 = arith.constant 0 : index
    %8 = vector.load %arg3[%c1, %c0_8, %c0_9] : memref<2x704x320xbf16, #tpu.memory_space<vmem>>, vector<1x704x320xbf16>
    %9 = vector.shape_cast %8 : vector<1x704x320xbf16> to vector<704x320xbf16>
    %cst_10 = arith.constant dense<0.000000e+00> : vector<40x320xf32>
    %10 = tpu.matmul %3, %9, %cst_10 {dimension_numbers = #tpu.dot_dimension_numbers<[1], [0], [0], [1], [0, 0, 1, 1], [], []>} : vector<40x704xbf16>, vector<704x320xbf16>, vector<40x320xf32> -> vector<40x320xf32>
    %11 = arith.addf %7, %10 : vector<40x320xf32>
    %c0_11 = arith.constant 0 : index
    %c0_12 = arith.constant 0 : index
    %c0_13 = arith.constant 0 : index
    %12 = vector.load %arg3[%c0_11, %c0_12, %c0_13] : memref<2x704x320xbf16, #tpu.memory_space<vmem>>, vector<1x704x320xbf16>
    %13 = vector.shape_cast %12 : vector<1x704x320xbf16> to vector<704x320xbf16>
    %cst_14 = arith.constant dense<0.000000e+00> : vector<40x320xf32>
    %14 = tpu.matmul %3, %13, %cst_14 {dimension_numbers = #tpu.dot_dimension_numbers<[1], [0], [0], [1], [0, 0, 1, 1], [], []>} : vector<40x704xbf16>, vector<704x320xbf16>, vector<40x320xf32> -> vector<40x320xf32>
    %15 = vector.extract_strided_slice %1 {offsets = [8, 0], sizes = [40, 704], strides = [1, 1]} : vector<48x704xbf16> to vector<40x704xbf16>
    %c1_15 = arith.constant 1 : index
    %c0_16 = arith.constant 0 : index
    %c0_17 = arith.constant 0 : index
    %16 = vector.load %arg3[%c1_15, %c0_16, %c0_17] : memref<2x704x320xbf16, #tpu.memory_space<vmem>>, vector<1x704x320xbf16>
    %17 = vector.shape_cast %16 : vector<1x704x320xbf16> to vector<704x320xbf16>
    %cst_18 = arith.constant dense<0.000000e+00> : vector<40x320xf32>
    %18 = tpu.matmul %15, %17, %cst_18 {dimension_numbers = #tpu.dot_dimension_numbers<[1], [0], [0], [1], [0, 0, 1, 1], [], []>} : vector<40x704xbf16>, vector<704x320xbf16>, vector<40x320xf32> -> vector<40x320xf32>
    %19 = arith.addf %14, %18 : vector<40x320xf32>
    %c0_19 = arith.constant 0 : index
    %c0_20 = arith.constant 0 : index
    %20 = vector.load %arg4[%c0_19, %c0_20] : memref<1x320xf32, #tpu.memory_space<vmem>>, vector<1x320xf32>
    %21 = vector.broadcast %20 : vector<1x320xf32> to vector<40x320xf32>
    %22 = arith.addf %11, %21 : vector<40x320xf32>
    %cst_21 = arith.constant 0.000000e+00 : f32
    %23 = vector.broadcast %cst_21 : f32 to vector<40x320xf32>
    %24 = arith.maximumf %22, %23 : vector<40x320xf32>
    %25 = arith.truncf %24 : vector<40x320xf32> to vector<40x320xbf16>
    %c0_22 = arith.constant 0 : index
    %c0_23 = arith.constant 0 : index
    %26 = vector.load %arg4[%c0_22, %c0_23] : memref<1x320xf32, #tpu.memory_space<vmem>>, vector<1x320xf32>
    %27 = vector.broadcast %26 : vector<1x320xf32> to vector<40x320xf32>
    %28 = arith.addf %19, %27 : vector<40x320xf32>
    %cst_24 = arith.constant 0.000000e+00 : f32
    %29 = vector.broadcast %cst_24 : f32 to vector<40x320xf32>
    %30 = arith.maximumf %28, %29 : vector<40x320xf32>
    %31 = arith.truncf %30 : vector<40x320xf32> to vector<40x320xbf16>
    %32 = vector.extract_strided_slice %25 {offsets = [0, 0], sizes = [32, 320], strides = [1, 1]} : vector<40x320xbf16> to vector<32x320xbf16>
    %c0_25 = arith.constant 0 : index
    %c0_26 = arith.constant 0 : index
    %c0_27 = arith.constant 0 : index
    %33 = vector.load %arg5[%c0_25, %c0_26, %c0_27] : memref<4x320x256xbf16, #tpu.memory_space<vmem>>, vector<1x320x256xbf16>
    %34 = vector.shape_cast %33 : vector<1x320x256xbf16> to vector<320x256xbf16>
    %cst_28 = arith.constant dense<0.000000e+00> : vector<32x256xf32>
    %35 = tpu.matmul %32, %34, %cst_28 {dimension_numbers = #tpu.dot_dimension_numbers<[1], [0], [0], [1], [0, 0, 1, 1], [], []>} : vector<32x320xbf16>, vector<320x256xbf16>, vector<32x256xf32> -> vector<32x256xf32>
    %36 = vector.extract_strided_slice %31 {offsets = [0, 0], sizes = [32, 320], strides = [1, 1]} : vector<40x320xbf16> to vector<32x320xbf16>
    %c1_29 = arith.constant 1 : index
    %c0_30 = arith.constant 0 : index
    %c0_31 = arith.constant 0 : index
    %37 = vector.load %arg5[%c1_29, %c0_30, %c0_31] : memref<4x320x256xbf16, #tpu.memory_space<vmem>>, vector<1x320x256xbf16>
    %38 = vector.shape_cast %37 : vector<1x320x256xbf16> to vector<320x256xbf16>
    %cst_32 = arith.constant dense<0.000000e+00> : vector<32x256xf32>
    %39 = tpu.matmul %36, %38, %cst_32 {dimension_numbers = #tpu.dot_dimension_numbers<[1], [0], [0], [1], [0, 0, 1, 1], [], []>} : vector<32x320xbf16>, vector<320x256xbf16>, vector<32x256xf32> -> vector<32x256xf32>
    %40 = arith.addf %35, %39 : vector<32x256xf32>
    %41 = vector.extract_strided_slice %25 {offsets = [8, 0], sizes = [32, 320], strides = [1, 1]} : vector<40x320xbf16> to vector<32x320xbf16>
    %c2 = arith.constant 2 : index
    %c0_33 = arith.constant 0 : index
    %c0_34 = arith.constant 0 : index
    %42 = vector.load %arg5[%c2, %c0_33, %c0_34] : memref<4x320x256xbf16, #tpu.memory_space<vmem>>, vector<1x320x256xbf16>
    %43 = vector.shape_cast %42 : vector<1x320x256xbf16> to vector<320x256xbf16>
    %cst_35 = arith.constant dense<0.000000e+00> : vector<32x256xf32>
    %44 = tpu.matmul %41, %43, %cst_35 {dimension_numbers = #tpu.dot_dimension_numbers<[1], [0], [0], [1], [0, 0, 1, 1], [], []>} : vector<32x320xbf16>, vector<320x256xbf16>, vector<32x256xf32> -> vector<32x256xf32>
    %45 = arith.addf %40, %44 : vector<32x256xf32>
    %46 = vector.extract_strided_slice %31 {offsets = [8, 0], sizes = [32, 320], strides = [1, 1]} : vector<40x320xbf16> to vector<32x320xbf16>
    %c3 = arith.constant 3 : index
    %c0_36 = arith.constant 0 : index
    %c0_37 = arith.constant 0 : index
    %47 = vector.load %arg5[%c3, %c0_36, %c0_37] : memref<4x320x256xbf16, #tpu.memory_space<vmem>>, vector<1x320x256xbf16>
    %48 = vector.shape_cast %47 : vector<1x320x256xbf16> to vector<320x256xbf16>
    %cst_38 = arith.constant dense<0.000000e+00> : vector<32x256xf32>
    %49 = tpu.matmul %46, %48, %cst_38 {dimension_numbers = #tpu.dot_dimension_numbers<[1], [0], [0], [1], [0, 0, 1, 1], [], []>} : vector<32x320xbf16>, vector<320x256xbf16>, vector<32x256xf32> -> vector<32x256xf32>
    %50 = arith.addf %45, %49 : vector<32x256xf32>
    %c0_39 = arith.constant 0 : index
    %c0_40 = arith.constant 0 : index
    %51 = vector.load %arg6[%c0_39, %c0_40] : memref<1x256xf32, #tpu.memory_space<vmem>>, vector<1x256xf32>
    %52 = vector.broadcast %51 : vector<1x256xf32> to vector<32x256xf32>
    %53 = arith.addf %50, %52 : vector<32x256xf32>
    %cst_41 = arith.constant 0.000000e+00 : f32
    %54 = vector.broadcast %cst_41 : f32 to vector<32x256xf32>
    %55 = arith.maximumf %53, %54 : vector<32x256xf32>
    %56 = arith.truncf %55 : vector<32x256xf32> to vector<32x256xbf16>
    %57 = vector.extract_strided_slice %56 {offsets = [0, 0], sizes = [16, 256], strides = [1, 1]} : vector<32x256xbf16> to vector<16x256xbf16>
    %c0_42 = arith.constant 0 : index
    %c0_43 = arith.constant 0 : index
    %c0_44 = arith.constant 0 : index
    %58 = vector.load %arg7[%c0_42, %c0_43, %c0_44] : memref<3x256x128xbf16, #tpu.memory_space<vmem>>, vector<1x256x128xbf16>
    %59 = vector.shape_cast %58 : vector<1x256x128xbf16> to vector<256x128xbf16>
    %cst_45 = arith.constant dense<0.000000e+00> : vector<16x128xf32>
    %60 = tpu.matmul %57, %59, %cst_45 {dimension_numbers = #tpu.dot_dimension_numbers<[1], [0], [0], [1], [0, 0, 1, 1], [], []>} : vector<16x256xbf16>, vector<256x128xbf16>, vector<16x128xf32> -> vector<16x128xf32>
    %61 = vector.extract_strided_slice %56 {offsets = [8, 0], sizes = [16, 256], strides = [1, 1]} : vector<32x256xbf16> to vector<16x256xbf16>
    %c1_46 = arith.constant 1 : index
    %c0_47 = arith.constant 0 : index
    %c0_48 = arith.constant 0 : index
    %62 = vector.load %arg7[%c1_46, %c0_47, %c0_48] : memref<3x256x128xbf16, #tpu.memory_space<vmem>>, vector<1x256x128xbf16>
    %63 = vector.shape_cast %62 : vector<1x256x128xbf16> to vector<256x128xbf16>
    %cst_49 = arith.constant dense<0.000000e+00> : vector<16x128xf32>
    %64 = tpu.matmul %61, %63, %cst_49 {dimension_numbers = #tpu.dot_dimension_numbers<[1], [0], [0], [1], [0, 0, 1, 1], [], []>} : vector<16x256xbf16>, vector<256x128xbf16>, vector<16x128xf32> -> vector<16x128xf32>
    %65 = arith.addf %60, %64 : vector<16x128xf32>
    %66 = vector.extract_strided_slice %56 {offsets = [16, 0], sizes = [16, 256], strides = [1, 1]} : vector<32x256xbf16> to vector<16x256xbf16>
    %c2_50 = arith.constant 2 : index
    %c0_51 = arith.constant 0 : index
    %c0_52 = arith.constant 0 : index
    %67 = vector.load %arg7[%c2_50, %c0_51, %c0_52] : memref<3x256x128xbf16, #tpu.memory_space<vmem>>, vector<1x256x128xbf16>
    %68 = vector.shape_cast %67 : vector<1x256x128xbf16> to vector<256x128xbf16>
    %cst_53 = arith.constant dense<0.000000e+00> : vector<16x128xf32>
    %69 = tpu.matmul %66, %68, %cst_53 {dimension_numbers = #tpu.dot_dimension_numbers<[1], [0], [0], [1], [0, 0, 1, 1], [], []>} : vector<16x256xbf16>, vector<256x128xbf16>, vector<16x128xf32> -> vector<16x128xf32>
    %70 = arith.addf %65, %69 : vector<16x128xf32>
    %c0_54 = arith.constant 0 : index
    %c0_55 = arith.constant 0 : index
    %71 = vector.load %arg8[%c0_54, %c0_55] : memref<1x128xf32, #tpu.memory_space<vmem>>, vector<1x128xf32>
    %72 = vector.broadcast %71 : vector<1x128xf32> to vector<16x128xf32>
    %73 = arith.addf %70, %72 : vector<16x128xf32>
    %cst_56 = arith.constant 0.000000e+00 : f32
    %74 = vector.broadcast %cst_56 : f32 to vector<16x128xf32>
    %75 = arith.maximumf %73, %74 : vector<16x128xf32>
    %76 = arith.truncf %75 : vector<16x128xf32> to vector<16x128xbf16>
    %77 = vector.extract_strided_slice %76 {offsets = [0, 0], sizes = [8, 128], strides = [1, 1]} : vector<16x128xbf16> to vector<8x128xbf16>
    %c0_57 = arith.constant 0 : index
    %c0_58 = arith.constant 0 : index
    %c0_59 = arith.constant 0 : index
    %78 = vector.load %arg9[%c0_57, %c0_58, %c0_59] : memref<2x128x512xbf16, #tpu.memory_space<vmem>>, vector<1x128x512xbf16>
    %79 = vector.shape_cast %78 : vector<1x128x512xbf16> to vector<128x512xbf16>
    %cst_60 = arith.constant dense<0.000000e+00> : vector<8x512xf32>
    %80 = tpu.matmul %77, %79, %cst_60 {dimension_numbers = #tpu.dot_dimension_numbers<[1], [0], [0], [1], [0, 0, 1, 1], [], []>} : vector<8x128xbf16>, vector<128x512xbf16>, vector<8x512xf32> -> vector<8x512xf32>
    %81 = vector.extract_strided_slice %76 {offsets = [8, 0], sizes = [8, 128], strides = [1, 1]} : vector<16x128xbf16> to vector<8x128xbf16>
    %c1_61 = arith.constant 1 : index
    %c0_62 = arith.constant 0 : index
    %c0_63 = arith.constant 0 : index
    %82 = vector.load %arg9[%c1_61, %c0_62, %c0_63] : memref<2x128x512xbf16, #tpu.memory_space<vmem>>, vector<1x128x512xbf16>
    %83 = vector.shape_cast %82 : vector<1x128x512xbf16> to vector<128x512xbf16>
    %cst_64 = arith.constant dense<0.000000e+00> : vector<8x512xf32>
    %84 = tpu.matmul %81, %83, %cst_64 {dimension_numbers = #tpu.dot_dimension_numbers<[1], [0], [0], [1], [0, 0, 1, 1], [], []>} : vector<8x128xbf16>, vector<128x512xbf16>, vector<8x512xf32> -> vector<8x512xf32>
    %85 = arith.addf %80, %84 : vector<8x512xf32>
    %c0_65 = arith.constant 0 : index
    %c0_66 = arith.constant 0 : index
    %86 = vector.load %arg10[%c0_65, %c0_66] : memref<1x512xf32, #tpu.memory_space<vmem>>, vector<1x512xf32>
    %87 = vector.broadcast %86 : vector<1x512xf32> to vector<8x512xf32>
    %88 = arith.addf %85, %87 : vector<8x512xf32>
    %cst_67 = arith.constant 0.000000e+00 : f32
    %89 = vector.broadcast %cst_67 : f32 to vector<8x512xf32>
    %90 = arith.maximumf %88, %89 : vector<8x512xf32>
    %91 = arith.truncf %90 : vector<8x512xf32> to vector<8x512xbf16>
    %c0_68 = arith.constant 0 : index
    %c0_69 = arith.constant 0 : index
    %92 = vector.load %arg11[%c0_68, %c0_69] : memref<512x7xbf16, #tpu.memory_space<vmem>>, vector<512x7xbf16>
    %cst_70 = arith.constant dense<0.000000e+00> : vector<8x7xf32>
    %93 = tpu.matmul %91, %92, %cst_70 {dimension_numbers = #tpu.dot_dimension_numbers<[1], [0], [0], [1], [0, 0, 1, 1], [], []>} : vector<8x512xbf16>, vector<512x7xbf16>, vector<8x7xf32> -> vector<8x7xf32>
    %c0_71 = arith.constant 0 : index
    %c0_72 = arith.constant 0 : index
    %94 = vector.load %arg12[%c0_71, %c0_72] : memref<1x7xf32, #tpu.memory_space<vmem>>, vector<1x7xf32>
    %95 = vector.broadcast %94 : vector<1x7xf32> to vector<8x7xf32>
    %96 = arith.addf %93, %95 : vector<8x7xf32>
    %c0_73 = arith.constant 0 : index
    %c0_74 = arith.constant 0 : index
    %c0_75 = arith.constant 0 : index
    %97 = vector.load %arg13[%c0_73, %c0_74, %c0_75] : memref<1x8x7xf32, #tpu.memory_space<vmem>>, vector<1x8x7xf32>
    %98 = vector.shape_cast %97 : vector<1x8x7xf32> to vector<8x7xf32>
    %99 = vector.shape_cast %96 : vector<8x7xf32> to vector<1x8x7xf32>
    tpu.vector_store %arg13[%c0_73, %c0_74, %c0_75], %99 {strides = array<i32>} : memref<1x8x7xf32, #tpu.memory_space<vmem>>, vector<1x8x7xf32>,
    return
  }
  func.func @transform_0(%arg0: i32) -> (i32, i32, i32) {
    %c0_i32 = arith.constant 0 : i32
    %c0_i32_0 = arith.constant 0 : i32
    %c0_i32_1 = arith.constant 0 : i32
    return %arg0, %c0_i32, %c0_i32_0 : i32, i32, i32
  }
  func.func @transform_1(%arg0: i32) -> (i32, i32, i32) {
    %c0_i32 = arith.constant 0 : i32
    %c0_i32_0 = arith.constant 0 : i32
    %c0_i32_1 = arith.constant 0 : i32
    return %arg0, %c0_i32, %c0_i32_0 : i32, i32, i32
  }
  func.func @transform_2(%arg0: i32) -> (i32, i32, i32) {
    %c0_i32 = arith.constant 0 : i32
    %c0_i32_0 = arith.constant 0 : i32
    %c0_i32_1 = arith.constant 0 : i32
    %c0_i32_2 = arith.constant 0 : i32
    return %c0_i32, %c0_i32_0, %c0_i32_1 : i32, i32, i32
  }
  func.func @transform_3(%arg0: i32) -> (i32, i32) {
    %c0_i32 = arith.constant 0 : i32
    %c0_i32_0 = arith.constant 0 : i32
    %c0_i32_1 = arith.constant 0 : i32
    return %c0_i32, %c0_i32_0 : i32, i32
  }
  func.func @transform_4(%arg0: i32) -> (i32, i32, i32) {
    %c0_i32 = arith.constant 0 : i32
    %c0_i32_0 = arith.constant 0 : i32
    %c0_i32_1 = arith.constant 0 : i32
    %c0_i32_2 = arith.constant 0 : i32
    return %c0_i32, %c0_i32_0, %c0_i32_1 : i32, i32, i32
  }
  func.func @transform_5(%arg0: i32) -> (i32, i32) {
    %c0_i32 = arith.constant 0 : i32
    %c0_i32_0 = arith.constant 0 : i32
    %c0_i32_1 = arith.constant 0 : i32
    return %c0_i32, %c0_i32_0 : i32, i32
  }
  func.func @transform_6(%arg0: i32) -> (i32, i32, i32) {
    %c0_i32 = arith.constant 0 : i32
    %c0_i32_0 = arith.constant 0 : i32
    %c0_i32_1 = arith.constant 0 : i32
    %c0_i32_2 = arith.constant 0 : i32
    return %c0_i32, %c0_i32_0, %c0_i32_1 : i32, i32, i32
  }
  func.func @transform_7(%arg0: i32) -> (i32, i32) {
    %c0_i32 = arith.constant 0 : i32
    %c0_i32_0 = arith.constant 0 : i32
    %c0_i32_1 = arith.constant 0 : i32
    return %c0_i32, %c0_i32_0 : i32, i32
  }
  func.func @transform_8(%arg0: i32) -> (i32, i32, i32) {
    %c0_i32 = arith.constant 0 : i32
    %c0_i32_0 = arith.constant 0 : i32
    %c0_i32_1 = arith.constant 0 : i32
    %c0_i32_2 = arith.constant 0 : i32
    return %c0_i32, %c0_i32_0, %c0_i32_1 : i32, i32, i32
  }
  func.func @transform_9(%arg0: i32) -> (i32, i32) {
    %c0_i32 = arith.constant 0 : i32
    %c0_i32_0 = arith.constant 0 : i32
    %c0_i32_1 = arith.constant 0 : i32
    return %c0_i32, %c0_i32_0 : i32, i32
  }
  func.func @transform_10(%arg0: i32) -> (i32, i32) {
    %c0_i32 = arith.constant 0 : i32
    %c0_i32_0 = arith.constant 0 : i32
    %c0_i32_1 = arith.constant 0 : i32
    return %c0_i32, %c0_i32_0 : i32, i32
  }
  func.func @transform_11(%arg0: i32) -> (i32, i32) {
    %c0_i32 = arith.constant 0 : i32
    %c0_i32_0 = arith.constant 0 : i32
    %c0_i32_1 = arith.constant 0 : i32
    return %c0_i32, %c0_i32_0 : i32, i32
  }
  func.func @transform_12(%arg0: i32) -> (i32, i32, i32) {
    %c0_i32 = arith.constant 0 : i32
    %c0_i32_0 = arith.constant 0 : i32
    %c0_i32_1 = arith.constant 0 : i32
    return %arg0, %c0_i32, %c0_i32_0 : i32, i32, i32
  }
}

</mosaic_0001>

<llo_original>
// kernel: atari_a2c_forward.1
$region0: #{atari_a2c_forward.1}
  #allocation0 [shape = 'u32[]', space=smem, size = 0x4, offset = 0x4, fixed_abs, tag = 'smem constant byte address 0x4 - core index']
  #allocation1 [shape = 'u32[144,128]{1,0:T(1,128)}', space=vmem, size = 0x12000, scoped, tag = 'internal scratch']
  %s0 = inlined_call_operand.vmem [shape: bf16[2,48,704], index: 0, kind: input, shape index: {}]
  %s1 = inlined_call_operand.vmem [shape: bf16[2,40,704], index: 1, kind: input, shape index: {}]
  %s2 = inlined_call_operand.vmem [shape: bf16[2,704,320], index: 2, kind: input, shape index: {}]
  %s3 = inlined_call_operand.vmem [shape: f32[1,320], index: 3, kind: input, shape index: {}]
  %s4 = inlined_call_operand.vmem [shape: bf16[4,320,256], index: 4, kind: input, shape index: {}]
  %s5 = inlined_call_operand.vmem [shape: f32[1,256], index: 5, kind: input, shape index: {}]
  %s6 = inlined_call_operand.vmem [shape: bf16[3,256,128], index: 6, kind: input, shape index: {}]
  %s7 = inlined_call_operand.vmem [shape: f32[1,128], index: 7, kind: input, shape index: {}]
  %s8 = inlined_call_operand.vmem [shape: bf16[2,128,512], index: 8, kind: input, shape index: {}]
  %s9 = inlined_call_operand.vmem [shape: f32[1,512], index: 9, kind: input, shape index: {}]
  %s10 = inlined_call_operand.vmem [shape: bf16[512,7], index: 10, kind: input, shape index: {}]
  %s11 = inlined_call_operand.vmem [shape: f32[1,7], index: 11, kind: input, shape index: {}]
  %s12 = inlined_call_operand.vmem [shape: f32[2,8,7], index: 12, kind: output, shape index: {}]
  %s13 = sld [smem:[#allocation0]]
  $region81: #{atari_a2c_forward.1} parent=0
    _
  %s15 = ssub.s32 1, %s13
  %s16 = scalar_select 0, %s15, %s13
  loop: start=0, step=1, limit=4
  $region2: #{atari_a2c_forward.1} parent=0 // loop_pre_header
    _
  $region3: #{atari_a2c_forward.1} parent=0 // loop_header
    %s18 = sphi 0, %s22
    %p19 = scmp.ge.s32.totalorder %s18, 4
    %s28 = sphi 0, %s30
    %s31 = sphi 0, %s28
    %s32 = sphi 0, %s31
    %s48 = sphi 0, %s32
    %s54 = sphi 0, %s56
    %s57 = sphi 0, %s54
    %s58 = sphi 0, %s57
    %s74 = sphi 0, %s58
    %s78 = sphi 0, %s78
    %s80 = sphi 0, %s78
    %s81 = sphi 0, %s80
    %s95 = sphi 0, %s81
    %s99 = sphi 0, %s99
    %s101 = sphi 0, %s99
    %s102 = sphi 0, %s101
    %s116 = sphi 0, %s102
    %s120 = sphi 0, %s120
    %s122 = sphi 0, %s120
    %s123 = sphi 0, %s122
    %s137 = sphi 0, %s123
    %s141 = sphi 0, %s141
    %s143 = sphi 0, %s141
    %s144 = sphi 0, %s143
    %s158 = sphi 0, %s144
    %s162 = sphi 0, %s162
    %s164 = sphi 0, %s162
    %s165 = sphi 0, %s164
    %s179 = sphi 0, %s165
    %s183 = sphi 0, %s183
    %s185 = sphi 0, %s183
    %s186 = sphi 0, %s185
    %s200 = sphi 0, %s186
    %s204 = sphi 0, %s204
    %s206 = sphi 0, %s204
    %s207 = sphi 0, %s206
    %s221 = sphi 0, %s207
    %s225 = sphi 0, %s225
    %s227 = sphi 0, %s225
    %s228 = sphi 0, %s227
    %s242 = sphi 0, %s228
    %s246 = sphi 0, %s246
    %s248 = sphi 0, %s246
    %s249 = sphi 0, %s248
    %s263 = sphi 0, %s249
    %s267 = sphi 0, %s267
    %s269 = sphi 0, %s267
    %s270 = sphi 0, %s269
    %s284 = sphi 0, %s270
    %s290 = sphi 0, %s292
    %s293 = sphi 0, %s290
    %s294 = sphi 0, %s293
    %s310 = sphi 0, %s294
  $region4: #{atari_a2c_forward.1} parent=0 // loop_header_branch
    %21 = sbr.rel (%p19) target = $region8
  $region5: #{atari_a2c_forward.1} parent=0 // loop_body
    %s23 = ssub.s32 %s18, 1
    %s24 = ssub.s32 %s18, 2
    %s25 = sadd.s32 %s18, 1
    %s26 = ssub.s32 %s18, %s25
    %p27 = scmp.eq.s32.totalorder %s26, 0
    %s29 = sadd.s32 %s28, 1
    %s30 = scalar_select %p27, %s28, %s29
    %p33 = pneg %p27
    %p34 = scmp.eq.s32.totalorder %s18, 1
    %p35 = por %p33, %p34
    %p36 = scmp.ne.s32.totalorder %s28, %s31
    %p37 = scmp.eq.s32.totalorder %s18, 0
    %p38 = por %p36, %p37
    %p39 = scmp.ne.s32.totalorder %s28, %s31
    %p40 = scmp.eq.s32.totalorder %s23, 1
    %p41 = por %p39, %p40
    %p42 = scmp.ne.s32.totalorder %s31, %s32
    %p43 = scmp.eq.s32.totalorder %s23, 0
    %p44 = por %p42, %p43
    %p45 = scmp.ne.s32.totalorder %s31, %s32
    %p46 = scmp.eq.s32.totalorder %s24, 1
    %p47 = por %p45, %p46
    %p49 = scmp.ne.s32.totalorder %s32, %s48
    %p50 = scmp.eq.s32.totalorder %s24, 0
    %p51 = por %p49, %p50
    %s52 = ssub.s32 %s18, %s25
    %p53 = scmp.eq.s32.totalorder %s52, 0
    %s55 = sadd.s32 %s54, 1
    %s56 = scalar_select %p53, %s54, %s55
    %p59 = pneg %p53
    %p60 = scmp.eq.s32.totalorder %s18, 1
    %p61 = por %p59, %p60
    %p62 = scmp.ne.s32.totalorder %s54, %s57
    %p63 = scmp.eq.s32.totalorder %s18, 0
    %p64 = por %p62, %p63
    %p65 = scmp.ne.s32.totalorder %s54, %s57
    %p66 = scmp.eq.s32.totalorder %s23, 1
    %p67 = por %p65, %p66
    %p68 = scmp.ne.s32.totalorder %s57, %s58
    %p69 = scmp.eq.s32.totalorder %s23, 0
    %p70 = por %p68, %p69
    %p71 = scmp.ne.s32.totalorder %s57, %s58
    %p72 = scmp.eq.s32.totalorder %s24, 1
    %p73 = por %p71, %p72
    %p75 = scmp.ne.s32.totalorder %s58, %s74
    %p76 = scmp.eq.s32.totalorder %s24, 0
    %p77 = por %p75, %p76
    %s79 = sadd.s32 %s78, 1
    %p82 = scmp.eq.s32.totalorder %s18, 1
    %p83 = scmp.ne.s32.totalorder %s78, %s80
    %p84 = scmp.eq.s32.totalorder %s18, 0
    %p85 = por %p83, %p84
    %p86 = scmp.ne.s32.totalorder %s78, %s80
    %p87 = scmp.eq.s32.totalorder %s23, 1
    %p88 = por %p86, %p87
    %p89 = scmp.ne.s32.totalorder %s80, %s81
    %p90 = scmp.eq.s32.totalorder %s23, 0
    %p91 = por %p89, %p90
    %p92 = scmp.ne.s32.totalorder %s80, %s81
    %p93 = scmp.eq.s32.totalorder %s24, 1
    %p94 = por %p92, %p93
    %p96 = scmp.ne.s32.totalorder %s81, %s95
    %p97 = scmp.eq.s32.totalorder %s24, 0
    %p98 = por %p96, %p97
    %s100 = sadd.s32 %s99, 1
    %p103 = scmp.eq.s32.totalorder %s18, 1
    %p104 = scmp.ne.s32.totalorder %s99, %s101
    %p105 = scmp.eq.s32.totalorder %s18, 0
    %p106 = por %p104, %p105
    %p107 = scmp.ne.s32.totalorder %s99, %s101
    %p108 = scmp.eq.s32.totalorder %s23, 1
    %p109 = por %p107, %p108
    %p110 = scmp.ne.s32.totalorder %s101, %s102
    %p111 = scmp.eq.s32.totalorder %s23, 0
    %p112 = por %p110, %p111
    %p113 = scmp.ne.s32.totalorder %s101, %s102
    %p114 = scmp.eq.s32.totalorder %s24, 1
    %p115 = por %p113, %p114
    %p117 = scmp.ne.s32.totalorder %s102, %s116
    %p118 = scmp.eq.s32.totalorder %s24, 0
    %p119 = por %p117, %p118
    %s121 = sadd.s32 %s120, 1
    %p124 = scmp.eq.s32.totalorder %s18, 1
    %p125 = scmp.ne.s32.totalorder %s120, %s122
    %p126 = scmp.eq.s32.totalorder %s18, 0
    %p127 = por %p125, %p126
    %p128 = scmp.ne.s32.totalorder %s120, %s122
    %p129 = scmp.eq.s32.totalorder %s23, 1
    %p130 = por %p128, %p129
    %p131 = scmp.ne.s32.totalorder %s122, %s123
    %p132 = scmp.eq.s32.totalorder %s23, 0
    %p133 = por %p131, %p132
    %p134 = scmp.ne.s32.totalorder %s122, %s123
    %p135 = scmp.eq.s32.totalorder %s24, 1
    %p136 = por %p134, %p135
    %p138 = scmp.ne.s32.totalorder %s123, %s137
    %p139 = scmp.eq.s32.totalorder %s24, 0
    %p140 = por %p138, %p139
    %s142 = sadd.s32 %s141, 1
    %p145 = scmp.eq.s32.totalorder %s18, 1
    %p146 = scmp.ne.s32.totalorder %s141, %s143
    %p147 = scmp.eq.s32.totalorder %s18, 0
    %p148 = por %p146, %p147
    %p149 = scmp.ne.s32.totalorder %s141, %s143
    %p150 = scmp.eq.s32.totalorder %s23, 1
    %p151 = por %p149, %p150
    %p152 = scmp.ne.s32.totalorder %s143, %s144
    %p153 = scmp.eq.s32.totalorder %s23, 0
    %p154 = por %p152, %p153
    %p155 = scmp.ne.s32.totalorder %s143, %s144
    %p156 = scmp.eq.s32.totalorder %s24, 1
    %p157 = por %p155, %p156
    %p159 = scmp.ne.s32.totalorder %s144, %s158
    %p160 = scmp.eq.s32.totalorder %s24, 0
    %p161 = por %p159, %p160
    %s163 = sadd.s32 %s162, 1
    %p166 = scmp.eq.s32.totalorder %s18, 1
    %p167 = scmp.ne.s32.totalorder %s162, %s164
    %p168 = scmp.eq.s32.totalorder %s18, 0
    %p169 = por %p167, %p168
    %p170 = scmp.ne.s32.totalorder %s162, %s164
    %p171 = scmp.eq.s32.totalorder %s23, 1
    %p172 = por %p170, %p171
    %p173 = scmp.ne.s32.totalorder %s164, %s165
    %p174 = scmp.eq.s32.totalorder %s23, 0
    %p175 = por %p173, %p174
    %p176 = scmp.ne.s32.totalorder %s164, %s165
    %p177 = scmp.eq.s32.totalorder %s24, 1
    %p178 = por %p176, %p177
    %p180 = scmp.ne.s32.totalorder %s165, %s179
    %p181 = scmp.eq.s32.totalorder %s24, 0
    %p182 = por %p180, %p181
    %s184 = sadd.s32 %s183, 1
    %p187 = scmp.eq.s32.totalorder %s18, 1
    %p188 = scmp.ne.s32.totalorder %s183, %s185
    %p189 = scmp.eq.s32.totalorder %s18, 0
    %p190 = por %p188, %p189
    %p191 = scmp.ne.s32.totalorder %s183, %s185
    %p192 = scmp.eq.s32.totalorder %s23, 1
    %p193 = por %p191, %p192
    %p194 = scmp.ne.s32.totalorder %s185, %s186
    %p195 = scmp.eq.s32.totalorder %s23, 0
    %p196 = por %p194, %p195
    %p197 = scmp.ne.s32.totalorder %s185, %s186
    %p198 = scmp.eq.s32.totalorder %s24, 1
    %p199 = por %p197, %p198
    %p201 = scmp.ne.s32.totalorder %s186, %s200
    %p202 = scmp.eq.s32.totalorder %s24, 0
    %p203 = por %p201, %p202
    %s205 = sadd.s32 %s204, 1
    %p208 = scmp.eq.s32.totalorder %s18, 1
    %p209 = scmp.ne.s32.totalorder %s204, %s206
    %p210 = scmp.eq.s32.totalorder %s18, 0
    %p211 = por %p209, %p210
    %p212 = scmp.ne.s32.totalorder %s204, %s206
    %p213 = scmp.eq.s32.totalorder %s23, 1
    %p214 = por %p212, %p213
    %p215 = scmp.ne.s32.totalorder %s206, %s207
    %p216 = scmp.eq.s32.totalorder %s23, 0
    %p217 = por %p215, %p216
    %p218 = scmp.ne.s32.totalorder %s206, %s207
    %p219 = scmp.eq.s32.totalorder %s24, 1
    %p220 = por %p218, %p219
    %p222 = scmp.ne.s32.totalorder %s207, %s221
    %p223 = scmp.eq.s32.totalorder %s24, 0
    %p224 = por %p222, %p223
    %s226 = sadd.s32 %s225, 1
    %p229 = scmp.eq.s32.totalorder %s18, 1
    %p230 = scmp.ne.s32.totalorder %s225, %s227
    %p231 = scmp.eq.s32.totalorder %s18, 0
    %p232 = por %p230, %p231
    %p233 = scmp.ne.s32.totalorder %s225, %s227
    %p234 = scmp.eq.s32.totalorder %s23, 1
    %p235 = por %p233, %p234
    %p236 = scmp.ne.s32.totalorder %s227, %s228
    %p237 = scmp.eq.s32.totalorder %s23, 0
    %p238 = por %p236, %p237
    %p239 = scmp.ne.s32.totalorder %s227, %s228
    %p240 = scmp.eq.s32.totalorder %s24, 1
    %p241 = por %p239, %p240
    %p243 = scmp.ne.s32.totalorder %s228, %s242
    %p244 = scmp.eq.s32.totalorder %s24, 0
    %p245 = por %p243, %p244
    %s247 = sadd.s32 %s246, 1
    %p250 = scmp.eq.s32.totalorder %s18, 1
    %p251 = scmp.ne.s32.totalorder %s246, %s248
    %p252 = scmp.eq.s32.totalorder %s18, 0
    %p253 = por %p251, %p252
    %p254 = scmp.ne.s32.totalorder %s246, %s248
    %p255 = scmp.eq.s32.totalorder %s23, 1
    %p256 = por %p254, %p255
    %p257 = scmp.ne.s32.totalorder %s248, %s249
    %p258 = scmp.eq.s32.totalorder %s23, 0
    %p259 = por %p257, %p258
    %p260 = scmp.ne.s32.totalorder %s248, %s249
    %p261 = scmp.eq.s32.totalorder %s24, 1
    %p262 = por %p260, %p261
    %p264 = scmp.ne.s32.totalorder %s249, %s263
    %p265 = scmp.eq.s32.totalorder %s24, 0
    %p266 = por %p264, %p265
    %s268 = sadd.s32 %s267, 1
    %p271 = scmp.eq.s32.totalorder %s18, 1
    %p272 = scmp.ne.s32.totalorder %s267, %s269
    %p273 = scmp.eq.s32.totalorder %s18, 0
    %p274 = por %p272, %p273
    %p275 = scmp.ne.s32.totalorder %s267, %s269
    %p276 = scmp.eq.s32.totalorder %s23, 1
    %p277 = por %p275, %p276
    %p278 = scmp.ne.s32.totalorder %s269, %s270
    %p279 = scmp.eq.s32.totalorder %s23, 0
    %p280 = por %p278, %p279
    %p281 = scmp.ne.s32.totalorder %s269, %s270
    %p282 = scmp.eq.s32.totalorder %s24, 1
    %p283 = por %p281, %p282
    %p285 = scmp.ne.s32.totalorder %s270, %s284
    %p286 = scmp.eq.s32.totalorder %s24, 0
    %p287 = por %p285, %p286
    %s288 = ssub.s32 %s18, %s25
    %p289 = scmp.eq.s32.totalorder %s288, 0
    %s291 = sadd.s32 %s290, 1
    %s292 = scalar_select %p289, %s290, %s291
    %p295 = pneg %p289
    %p296 = scmp.eq.s32.totalorder %s18, 1
    %p297 = por %p295, %p296
    %p298 = scmp.ne.s32.totalorder %s290, %s293
    %p299 = scmp.eq.s32.totalorder %s18, 0
    %p300 = por %p298, %p299
    %p301 = scmp.ne.s32.totalorder %s290, %s293
    %p302 = scmp.eq.s32.totalorder %s23, 1
    %p303 = por %p301, %p302
    %p304 = scmp.ne.s32.totalorder %s293, %s294
    %p305 = scmp.eq.s32.totalorder %s23, 0
    %p306 = por %p304, %p305
    %p307 = scmp.ne.s32.totalorder %s293, %s294
    %p308 = scmp.eq.s32.totalorder %s24, 1
    %p309 = por %p307, %p308
    %p311 = scmp.ne.s32.totalorder %s294, %s310
    %p312 = scmp.eq.s32.totalorder %s24, 0
    %p313 = por %p311, %p312
    %p314 = scmp.le.s32.totalorder 1, %s18
    %p315 = scmp.lt.s32.totalorder %s18, 3
    %p316 = pnand %p314, %p315
    %p317 = pneg %p316
    // Predicated region
    $region9: #{atari_a2c_forward.1} parent=5 // pred_check
      _
    $region10: #{atari_a2c_forward.1} parent=5 // pred_check_branch
      %319 = sbr.rel (%p316) target = $region12
    $region11: #{atari_a2c_forward.1} parent=5 // pred_region
      %s320 = ssub.s32 %s18, 1
      // Predicated region
      $region13: #{atari_a2c_forward.1} parent=11 // pred_check
        %p321 = pneg %p91
      $region14: #{atari_a2c_forward.1} parent=11 // pred_check_branch
        %323 = sbr.rel (%p321) target = $region16
      $region15: #{atari_a2c_forward.1} parent=11 // pred_region
        _
      $region16: #{atari_a2c_forward.1} parent=11 // pred_fallthru
        _
      // Predicated region
      $region17: #{atari_a2c_forward.1} parent=11 // pred_check
        %p324 = pneg %p112
      $region18: #{atari_a2c_forward.1} parent=11 // pred_check_branch
        %326 = sbr.rel (%p324) target = $region20
      $region19: #{atari_a2c_forward.1} parent=11 // pred_region
        _
      $region20: #{atari_a2c_forward.1} parent=11 // pred_fallthru
        _
      // Predicated region
      $region21: #{atari_a2c_forward.1} parent=11 // pred_check
        %p327 = pneg %p133
      $region22: #{atari_a2c_forward.1} parent=11 // pred_check_branch
        %329 = sbr.rel (%p327) target = $region24
      $region23: #{atari_a2c_forward.1} parent=11 // pred_region
        _
      $region24: #{atari_a2c_forward.1} parent=11 // pred_fallthru
        _
      // Predicated region
      $region25: #{atari_a2c_forward.1} parent=11 // pred_check
        %p330 = pneg %p154
      $region26: #{atari_a2c_forward.1} parent=11 // pred_check_branch
        %332 = sbr.rel (%p330) target = $region28
      $region27: #{atari_a2c_forward.1} parent=11 // pred_region
        _
      $region28: #{atari_a2c_forward.1} parent=11 // pred_fallthru
        _
      // Predicated region
      $region29: #{atari_a2c_forward.1} parent=11 // pred_check
        %p333 = pneg %p175
      $region30: #{atari_a2c_forward.1} parent=11 // pred_check_branch
        %335 = sbr.rel (%p333) target = $region32
      $region31: #{atari_a2c_forward.1} parent=11 // pred_region
        _
      $region32: #{atari_a2c_forward.1} parent=11 // pred_fallthru
        _
      // Predicated region
      $region33: #{atari_a2c_forward.1} parent=11 // pred_check
        %p336 = pneg %p196
      $region34: #{atari_a2c_forward.1} parent=11 // pred_check_branch
        %338 = sbr.rel (%p336) target = $region36
      $region35: #{atari_a2c_forward.1} parent=11 // pred_region
        _
      $region36: #{atari_a2c_forward.1} parent=11 // pred_fallthru
        _
      // Predicated region
      $region37: #{atari_a2c_forward.1} parent=11 // pred_check
        %p339 = pneg %p217
      $region38: #{atari_a2c_forward.1} parent=11 // pred_check_branch
        %341 = sbr.rel (%p339) target = $region40
      $region39: #{atari_a2c_forward.1} parent=11 // pred_region
        _
      $region40: #{atari_a2c_forward.1} parent=11 // pred_fallthru
        _
      // Predicated region
      $region41: #{atari_a2c_forward.1} parent=11 // pred_check
        %p342 = pneg %p238
      $region42: #{atari_a2c_forward.1} parent=11 // pred_check_branch
        %344 = sbr.rel (%p342) target = $region44
      $region43: #{atari_a2c_forward.1} parent=11 // pred_region
        _
      $region44: #{atari_a2c_forward.1} parent=11 // pred_fallthru
        _
      // Predicated region
      $region45: #{atari_a2c_forward.1} parent=11 // pred_check
        %p345 = pneg %p259
      $region46: #{atari_a2c_forward.1} parent=11 // pred_check_branch
        %347 = sbr.rel (%p345) target = $region48
      $region47: #{atari_a2c_forward.1} parent=11 // pred_region
        _
      $region48: #{atari_a2c_forward.1} parent=11 // pred_fallthru
        _
      // Predicated region
      $region49: #{atari_a2c_forward.1} parent=11 // pred_check
        %p348 = pneg %p280
      $region50: #{atari_a2c_forward.1} parent=11 // pred_check_branch
        %350 = sbr.rel (%p348) target = $region52
      $region51: #{atari_a2c_forward.1} parent=11 // pred_region
        _
      $region52: #{atari_a2c_forward.1} parent=11 // pred_fallthru
        _
    $region12: #{atari_a2c_forward.1} parent=5 // pred_fallthru
      _
    %p351 = scmp.lt.s32.totalorder %s18, 2
    // Predicated region
    $region53: #{atari_a2c_forward.1} parent=5 // pred_check
      %p352 = pneg %p351
    $region54: #{atari_a2c_forward.1} parent=5 // pred_check_branch
      %354 = sbr.rel (%p352) target = $region56
    $region55: #{atari_a2c_forward.1} parent=5 // pred_region
      // Predicated region
      $region57: #{atari_a2c_forward.1} parent=55 // pred_check
        %p355 = pneg %p38
      $region58: #{atari_a2c_forward.1} parent=55 // pred_check_branch
        %357 = sbr.rel (%p355) target = $region60
      $region59: #{atari_a2c_forward.1} parent=55 // pred_region
        %p358 = scmp.lt.s32.totalorder %s18, 1
        %s359 = scalar_select %p358, %s18, 1
        %s360 = smul.addr %s359, 36
        %s361 = smul.addr %s360, 4
        %s362 = scalar_lea.vmem %s0, %s361
      $region60: #{atari_a2c_forward.1} parent=55 // pred_fallthru
        _
      // Predicated region
      $region61: #{atari_a2c_forward.1} parent=55 // pred_check
        %p363 = pneg %p64
      $region62: #{atari_a2c_forward.1} parent=55 // pred_check_branch
        %365 = sbr.rel (%p363) target = $region64
      $region63: #{atari_a2c_forward.1} parent=55 // pred_region
        %p366 = scmp.lt.s32.totalorder %s18, 1
        %s367 = scalar_select %p366, %s18, 1
        %s368 = smul.addr %s367, 30
        %s369 = smul.addr %s368, 4
        %s370 = scalar_lea.vmem %s1, %s369
      $region64: #{atari_a2c_forward.1} parent=55 // pred_fallthru
        _
    $region56: #{atari_a2c_forward.1} parent=5 // pred_fallthru
      _
    %p371 = scmp.le.s32.totalorder 1, %s18
    %p372 = scmp.lt.s32.totalorder %s18, 3
    %p373 = pnand %p371, %p372
    %p374 = pneg %p373
    // Predicated region
    $region65: #{atari_a2c_forward.1} parent=5 // pred_check
      _
    $region66: #{atari_a2c_forward.1} parent=5 // pred_check_branch
      %376 = sbr.rel (%p373) target = $region68
    $region67: #{atari_a2c_forward.1} parent=5 // pred_region
      %s377 = ssub.s32 %s18, 1
      %p378 = scmp.lt.s32.totalorder %s23, 1
      %s379 = scalar_select %p378, %s23, 1
      %s380 = smul.addr %s379, 36
      %s381 = smul.addr %s380, 4
      %s382 = scalar_lea.vmem %s0, %s381
      %p383 = pneg %p44
      %p384 = pneg %p41
      %p385 = scmp.lt.s32.totalorder %s23, 1
      %s386 = scalar_select %p385, %s23, 1
      %s387 = smul.addr %s386, 30
      %s388 = smul.addr %s387, 4
      %s389 = scalar_lea.vmem %s1, %s388
      %p390 = pneg %p70
      %p391 = pneg %p67
      %p392 = pneg %p91
      %p393 = pneg %p88
      %p394 = pneg %p112
      %p395 = pneg %p109
      %p396 = pneg %p133
      %p397 = pneg %p130
      %p398 = pneg %p154
      %p399 = pneg %p151
      %p400 = pneg %p175
      %p401 = pneg %p172
      %p402 = pneg %p196
      %p403 = pneg %p193
      %p404 = pneg %p217
      %p405 = pneg %p214
      %p406 = pneg %p238
      %p407 = pneg %p235
      %p408 = pneg %p259
      %p409 = pneg %p256
      %p410 = pneg %p280
      %p411 = pneg %p277
      %p412 = pneg %p306
      %p413 = pneg %p303
      %p414 = scmp.lt.s32.totalorder %s23, 1
      %s415 = scalar_select %p414, %s23, 1
      %s416 = smul.addr %s415, 8
      %s417 = scalar_lea.vmem %s12, %s416
      %p418 = scmp.lt.s32.totalorder %s23, 1
      %s419 = scalar_select %p418, %s23, 1
      %s420 = smul.addr %s419, 36
      %s421 = smul.addr %s420, 4
      %s422 = scalar_lea.vmem %s0, %s421
      %p423 = scmp.lt.s32.totalorder %s23, 1
      %s424 = scalar_select %p423, %s23, 1
      %s425 = smul.addr %s424, 30
      %s426 = smul.addr %s425, 4
      %s427 = scalar_lea.vmem %s1, %s426
      %p428 = scmp.lt.s32.totalorder %s23, 1
      %s429 = scalar_select %p428, %s23, 1
      %s430 = smul.addr %s429, 8
      %s431 = scalar_lea.vmem %s12, %s430
      %v433 = vld [vmem:[%s422] sm:$0xff]
      %v434 = vld [vmem:[%s422 + $0x8] sm:$0xff]
      %v435 = vld [vmem:[%s422 + $0x10] sm:$0xff]
      %v436 = vld [vmem:[%s422 + $0x18] sm:$0xff]
      %v437 = vld [vmem:[%s422 + $0x20] sm:$0xff]
      %v438 = vld [vmem:[%s422 + $0x28] sm:$0xff]
      %v439 = vld [vmem:[%s422 + $0x30] sm:$0xff]
      %v440 = vld [vmem:[%s422 + $0x38] sm:$0xff]
      %v441 = vld [vmem:[%s422 + $0x40] sm:$0xff]
      %v442 = vld [vmem:[%s422 + $0x48] sm:$0xff]
      %v443 = vld [vmem:[%s422 + $0x50] sm:$0xff]
      %v444 = vld [vmem:[%s422 + $0x58] sm:$0xff]
      %v445 = vld [vmem:[%s422 + $0x60] sm:$0xff]
      %v446 = vld [vmem:[%s422 + $0x68] sm:$0xff]
      %v447 = vld [vmem:[%s422 + $0x70] sm:$0xff]
      %v448 = vld [vmem:[%s422 + $0x78] sm:$0xff]
      %v449 = vld [vmem:[%s422 + $0x80] sm:$0xff]
      %v450 = vld [vmem:[%s422 + $0x88] sm:$0xff]
      %v451 = vld [vmem:[%s427] sm:$0xff]
      %v452 = vld [vmem:[%s427 + $0x8] sm:$0xff]
      %v453 = vld [vmem:[%s427 + $0x10] sm:$0xff]
      %v454 = vld [vmem:[%s427 + $0x18] sm:$0xff]
      %v455 = vld [vmem:[%s427 + $0x20] sm:$0xff]
      %v456 = vld [vmem:[%s427 + $0x28] sm:$0xff]
      %v457 = vld [vmem:[%s427 + $0x30] sm:$0xff]
      %v458 = vld [vmem:[%s427 + $0x38] sm:$0xff]
      %v459 = vld [vmem:[%s427 + $0x40] sm:$0xff]
      %v460 = vld [vmem:[%s427 + $0x48] sm:$0xff]
      %v461 = vld [vmem:[%s427 + $0x50] sm:$0xff]
      %v462 = vld [vmem:[%s427 + $0x58] sm:$0xff]
      %v463 = vld [vmem:[%s427 + $0x60] sm:$0xff]
      %v464 = vld [vmem:[%s427 + $0x68] sm:$0xff]
      %v465 = vld [vmem:[%s427 + $0x70] sm:$0xff]
      %v466 = vld [vmem:[%s2] sm:$0xff]
      %v467 = vld [vmem:[%s2 + $0x8] sm:$0xf]
      %v468 = vld [vmem:[%s2 + $0xc] sm:$0xff]
      %v469 = vld [vmem:[%s2 + $0x14] sm:$0xf]
      %v470 = vld [vmem:[%s2 + $0x18] sm:$0xff]
      %v471 = vld [vmem:[%s2 + $0x20] sm:$0xf]
      %v472 = vld [vmem:[%s2 + $0x24] sm:$0xff]
      %v473 = vld [vmem:[%s2 + $0x2c] sm:$0xf]
      %v474 = vld [vmem:[%s2 + $0x30] sm:$0xff]
      %v475 = vld [vmem:[%s2 + $0x38] sm:$0xf]
      %v476 = vld [vmem:[%s2 + $0x3c] sm:$0xff]
      %v477 = vld [vmem:[%s2 + $0x44] sm:$0xf]
      %v478 = vld [vmem:[%s2 + $0x48] sm:$0xff]
      %v479 = vld [vmem:[%s2 + $0x50] sm:$0xf]
      %v480 = vld [vmem:[%s2 + $0x54] sm:$0xff]
      %v481 = vld [vmem:[%s2 + $0x5c] sm:$0xf]
      %v482 = vld [vmem:[%s2 + $0x60] sm:$0xff]
      %v483 = vld [vmem:[%s2 + $0x68] sm:$0xf]
      %v484 = vld [vmem:[%s2 + $0x6c] sm:$0xff]
      %v485 = vld [vmem:[%s2 + $0x74] sm:$0xf]
      %v486 = vld [vmem:[%s2 + $0x78] sm:$0xff]
      %v487 = vld [vmem:[%s2 + $0x80] sm:$0xf]
      %v488 = vld [vmem:[%s2 + $0x84] sm:$0xff]
      %v489 = vld [vmem:[%s2 + $0x8c] sm:$0xf]
      %v490 = vld [vmem:[%s2 + $0x90] sm:$0xff]
      %v491 = vld [vmem:[%s2 + $0x98] sm:$0xf]
      %v492 = vld [vmem:[%s2 + $0x9c] sm:$0xff]
      %v493 = vld [vmem:[%s2 + $0xa4] sm:$0xf]
      %v494 = vld [vmem:[%s2 + $0xa8] sm:$0xff]
      %v495 = vld [vmem:[%s2 + $0xb0] sm:$0xf]
      %v496 = vld [vmem:[%s2 + $0xb4] sm:$0xff]
      %v497 = vld [vmem:[%s2 + $0xbc] sm:$0xf]
      %v498 = vld [vmem:[%s2 + $0xc0] sm:$0xff]
      %v499 = vld [vmem:[%s2 + $0xc8] sm:$0xf]
      %v500 = vld [vmem:[%s2 + $0xcc] sm:$0xff]
      %v501 = vld [vmem:[%s2 + $0xd4] sm:$0xf]
      %v502 = vld [vmem:[%s2 + $0xd8] sm:$0xff]
      %v503 = vld [vmem:[%s2 + $0xe0] sm:$0xf]
      %v504 = vld [vmem:[%s2 + $0xe4] sm:$0xff]
      %v505 = vld [vmem:[%s2 + $0xec] sm:$0xf]
      %v506 = vld [vmem:[%s2 + $0xf0] sm:$0xff]
      %v507 = vld [vmem:[%s2 + $0xf8] sm:$0xf]
      %v508 = vld [vmem:[%s2 + $0xfc] sm:$0xff]
      %v509 = vld [vmem:[%s2 + $0x104] sm:$0xf]
      %v510 = vld [vmem:[%s2 + $0x108] sm:$0xff]
      %v511 = vld [vmem:[%s2 + $0x110] sm:$0xf]
      %v512 = vld [vmem:[%s2 + $0x114] sm:$0xff]
      %v513 = vld [vmem:[%s2 + $0x11c] sm:$0xf]
      %v514 = vld [vmem:[%s2 + $0x120] sm:$0xff]
      %v515 = vld [vmem:[%s2 + $0x128] sm:$0xf]
      %v516 = vld [vmem:[%s2 + $0x12c] sm:$0xff]
      %v517 = vld [vmem:[%s2 + $0x134] sm:$0xf]
      %v518 = vld [vmem:[%s2 + $0x138] sm:$0xff]
      %v519 = vld [vmem:[%s2 + $0x140] sm:$0xf]
      %v520 = vld [vmem:[%s2 + $0x144] sm:$0xff]
      %v521 = vld [vmem:[%s2 + $0x14c] sm:$0xf]
      %v522 = vld [vmem:[%s2 + $0x150] sm:$0xff]
      %v523 = vld [vmem:[%s2 + $0x158] sm:$0xf]
      %v524 = vld [vmem:[%s2 + $0x15c] sm:$0xff]
      %v525 = vld [vmem:[%s2 + $0x164] sm:$0xf]
      %v526 = vld [vmem:[%s2 + $0x168] sm:$0xff]
      %v527 = vld [vmem:[%s2 + $0x170] sm:$0xf]
      %v528 = vld [vmem:[%s2 + $0x174] sm:$0xff]
      %v529 = vld [vmem:[%s2 + $0x17c] sm:$0xf]
      %v530 = vld [vmem:[%s2 + $0x180] sm:$0xff]
      %v531 = vld [vmem:[%s2 + $0x188] sm:$0xf]
      %v532 = vld [vmem:[%s2 + $0x18c] sm:$0xff]
      %v533 = vld [vmem:[%s2 + $0x194] sm:$0xf]
      %v534 = vld [vmem:[%s2 + $0x198] sm:$0xff]
      %v535 = vld [vmem:[%s2 + $0x1a0] sm:$0xf]
      %v536 = vld [vmem:[%s2 + $0x1a4] sm:$0xff]
      %v537 = vld [vmem:[%s2 + $0x1ac] sm:$0xf]
      %v538 = vld [vmem:[%s2 + $0x1b0] sm:$0xff]
      %v539 = vld [vmem:[%s2 + $0x1b8] sm:$0xf]
      %v540 = vld [vmem:[%s2 + $0x1bc] sm:$0xff]
      %v541 = vld [vmem:[%s2 + $0x1c4] sm:$0xf]
      %v542 = vld [vmem:[%s2 + $0x1c8] sm:$0xff]
      %v543 = vld [vmem:[%s2 + $0x1d0] sm:$0xf]
      %v544 = vld [vmem:[%s2 + $0x1d4] sm:$0xff]
      %v545 = vld [vmem:[%s2 + $0x1dc] sm:$0xf]
      %v546 = vld [vmem:[%s2 + $0x1e0] sm:$0xff]
      %v547 = vld [vmem:[%s2 + $0x1e8] sm:$0xf]
      %v548 = vld [vmem:[%s2 + $0x1ec] sm:$0xff]
      %v549 = vld [vmem:[%s2 + $0x1f4] sm:$0xf]
      %v550 = vld [vmem:[%s2 + $0x1f8] sm:$0xff]
      %v551 = vld [vmem:[%s2 + $0x200] sm:$0xf]
      %v552 = vld [vmem:[%s2 + $0x204] sm:$0xff]
      %v553 = vld [vmem:[%s2 + $0x20c] sm:$0xf]
      %v554 = vld [vmem:[%s2 + $0x210] sm:$0xff]
      %v555 = vld [vmem:[%s2 + $0x218] sm:$0xf]
      %v556 = vld [vmem:[%s2 + $0x21c] sm:$0xff]
      %v557 = vld [vmem:[%s2 + $0x224] sm:$0xf]
      %v558 = vld [vmem:[%s2 + $0x228] sm:$0xff]
      %v559 = vld [vmem:[%s2 + $0x230] sm:$0xf]
      %v560 = vld [vmem:[%s2 + $0x234] sm:$0xff]
      %v561 = vld [vmem:[%s2 + $0x23c] sm:$0xf]
      %v562 = vld [vmem:[%s2 + $0x240] sm:$0xff]
      %v563 = vld [vmem:[%s2 + $0x248] sm:$0xf]
      %v564 = vld [vmem:[%s2 + $0x24c] sm:$0xff]
      %v565 = vld [vmem:[%s2 + $0x254] sm:$0xf]
      %v566 = vld [vmem:[%s2 + $0x258] sm:$0xff]
      %v567 = vld [vmem:[%s2 + $0x260] sm:$0xf]
      %v568 = vld [vmem:[%s2 + $0x264] sm:$0xff]
      %v569 = vld [vmem:[%s2 + $0x26c] sm:$0xf]
      %v570 = vld [vmem:[%s2 + $0x270] sm:$0xff]
      %v571 = vld [vmem:[%s2 + $0x278] sm:$0xf]
      %v572 = vld [vmem:[%s2 + $0x27c] sm:$0xff]
      %v573 = vld [vmem:[%s2 + $0x284] sm:$0xf]
      %v574 = vld [vmem:[%s2 + $0x288] sm:$0xff]
      %v575 = vld [vmem:[%s2 + $0x290] sm:$0xf]
      %v576 = vld [vmem:[%s2 + $0x294] sm:$0xff]
      %v577 = vld [vmem:[%s2 + $0x29c] sm:$0xf]
      %v578 = vld [vmem:[%s2 + $0x2a0] sm:$0xff]
      %v579 = vld [vmem:[%s2 + $0x2a8] sm:$0xf]
      %v580 = vld [vmem:[%s2 + $0x2ac] sm:$0xff]
      %v581 = vld [vmem:[%s2 + $0x2b4] sm:$0xf]
      %v582 = vld [vmem:[%s2 + $0x2b8] sm:$0xff]
      %v583 = vld [vmem:[%s2 + $0x2c0] sm:$0xf]
      %v584 = vld [vmem:[%s2 + $0x2c4] sm:$0xff]
      %v585 = vld [vmem:[%s2 + $0x2cc] sm:$0xf]
      %v586 = vld [vmem:[%s2 + $0x2d0] sm:$0xff]
      %v587 = vld [vmem:[%s2 + $0x2d8] sm:$0xf]
      %v588 = vld [vmem:[%s2 + $0x2dc] sm:$0xff]
      %v589 = vld [vmem:[%s2 + $0x2e4] sm:$0xf]
      %v590 = vld [vmem:[%s2 + $0x2e8] sm:$0xff]
      %v591 = vld [vmem:[%s2 + $0x2f0] sm:$0xf]
      %v592 = vld [vmem:[%s2 + $0x2f4] sm:$0xff]
      %v593 = vld [vmem:[%s2 + $0x2fc] sm:$0xf]
      %v594 = vld [vmem:[%s2 + $0x300] sm:$0xff]
      %v595 = vld [vmem:[%s2 + $0x308] sm:$0xf]
      %v596 = vld [vmem:[%s2 + $0x30c] sm:$0xff]
      %v597 = vld [vmem:[%s2 + $0x314] sm:$0xf]
      %v598 = vld [vmem:[%s2 + $0x318] sm:$0xff]
      %v599 = vld [vmem:[%s2 + $0x320] sm:$0xf]
      %v600 = vld [vmem:[%s2 + $0x324] sm:$0xff]
      %v601 = vld [vmem:[%s2 + $0x32c] sm:$0xf]
      %v602 = vld [vmem:[%s2 + $0x330] sm:$0xff]
      %v603 = vld [vmem:[%s2 + $0x338] sm:$0xf]
      %v604 = vld [vmem:[%s2 + $0x33c] sm:$0xff]
      %v605 = vld [vmem:[%s2 + $0x344] sm:$0xf]
      %v606 = vld [vmem:[%s2 + $0x348] sm:$0xff]
      %v607 = vld [vmem:[%s2 + $0x350] sm:$0xf]
      %v608 = vld [vmem:[%s2 + $0x354] sm:$0xff]
      %v609 = vld [vmem:[%s2 + $0x35c] sm:$0xf]
      %v610 = vld [vmem:[%s2 + $0x360] sm:$0xff]
      %v611 = vld [vmem:[%s2 + $0x368] sm:$0xf]
      %v612 = vld [vmem:[%s2 + $0x36c] sm:$0xff]
      %v613 = vld [vmem:[%s2 + $0x374] sm:$0xf]
      %v614 = vld [vmem:[%s2 + $0x378] sm:$0xff]
      %v615 = vld [vmem:[%s2 + $0x380] sm:$0xf]
      %v616 = vld [vmem:[%s2 + $0x384] sm:$0xff]
      %v617 = vld [vmem:[%s2 + $0x38c] sm:$0xf]
      %v618 = vld [vmem:[%s2 + $0x390] sm:$0xff]
      %v619 = vld [vmem:[%s2 + $0x398] sm:$0xf]
      %v620 = vld [vmem:[%s2 + $0x39c] sm:$0xff]
      %v621 = vld [vmem:[%s2 + $0x3a4] sm:$0xf]
      %v622 = vld [vmem:[%s2 + $0x3a8] sm:$0xff]
      %v623 = vld [vmem:[%s2 + $0x3b0] sm:$0xf]
      %v624 = vld [vmem:[%s2 + $0x3b4] sm:$0xff]
      %v625 = vld [vmem:[%s2 + $0x3bc] sm:$0xf]
      %v626 = vld [vmem:[%s2 + $0x3c0] sm:$0xff]
      %v627 = vld [vmem:[%s2 + $0x3c8] sm:$0xf]
      %v628 = vld [vmem:[%s2 + $0x3cc] sm:$0xff]
      %v629 = vld [vmem:[%s2 + $0x3d4] sm:$0xf]
      %v630 = vld [vmem:[%s2 + $0x3d8] sm:$0xff]
      %v631 = vld [vmem:[%s2 + $0x3e0] sm:$0xf]
      %v632 = vld [vmem:[%s2 + $0x3e4] sm:$0xff]
      %v633 = vld [vmem:[%s2 + $0x3ec] sm:$0xf]
      %v634 = vld [vmem:[%s2 + $0x3f0] sm:$0xff]
      %v635 = vld [vmem:[%s2 + $0x3f8] sm:$0xf]
      %v636 = vld [vmem:[%s2 + $0x3fc] sm:$0xff]
      %v637 = vld [vmem:[%s2 + $0x404] sm:$0xf]
      %v638 = vld [vmem:[%s2 + $0x408] sm:$0xff]
      %v639 = vld [vmem:[%s2 + $0x410] sm:$0xf]
      %v640 = vld [vmem:[%s2 + $0x414] sm:$0xff]
      %v641 = vld [vmem:[%s2 + $0x41c] sm:$0xf]
      %s642 = scalar_lea.vmem %s2, 1056
      %v643 = vld [vmem:[%s642] sm:$0xff]
      %v644 = vld [vmem:[%s642 + $0x8] sm:$0xf]
      %v645 = vld [vmem:[%s642 + $0xc] sm:$0xff]
      %v646 = vld [vmem:[%s642 + $0x14] sm:$0xf]
      %v647 = vld [vmem:[%s642 + $0x18] sm:$0xff]
      %v648 = vld [vmem:[%s642 + $0x20] sm:$0xf]
      %v649 = vld [vmem:[%s642 + $0x24] sm:$0xff]
      %v650 = vld [vmem:[%s642 + $0x2c] sm:$0xf]
      %v651 = vld [vmem:[%s642 + $0x30] sm:$0xff]
      %v652 = vld [vmem:[%s642 + $0x38] sm:$0xf]
      %v653 = vld [vmem:[%s642 + $0x3c] sm:$0xff]
      %v654 = vld [vmem:[%s642 + $0x44] sm:$0xf]
      %v655 = vld [vmem:[%s642 + $0x48] sm:$0xff]
      %v656 = vld [vmem:[%s642 + $0x50] sm:$0xf]
      %v657 = vld [vmem:[%s642 + $0x54] sm:$0xff]
      %v658 = vld [vmem:[%s642 + $0x5c] sm:$0xf]
      %v659 = vld [vmem:[%s642 + $0x60] sm:$0xff]
      %v660 = vld [vmem:[%s642 + $0x68] sm:$0xf]
      %v661 = vld [vmem:[%s642 + $0x6c] sm:$0xff]
      %v662 = vld [vmem:[%s642 + $0x74] sm:$0xf]
      %v663 = vld [vmem:[%s642 + $0x78] sm:$0xff]
      %v664 = vld [vmem:[%s642 + $0x80] sm:$0xf]
      %v665 = vld [vmem:[%s642 + $0x84] sm:$0xff]
      %v666 = vld [vmem:[%s642 + $0x8c] sm:$0xf]
      %v667 = vld [vmem:[%s642 + $0x90] sm:$0xff]
      %v668 = vld [vmem:[%s642 + $0x98] sm:$0xf]
      %v669 = vld [vmem:[%s642 + $0x9c] sm:$0xff]
      %v670 = vld [vmem:[%s642 + $0xa4] sm:$0xf]
      %v671 = vld [vmem:[%s642 + $0xa8] sm:$0xff]
      %v672 = vld [vmem:[%s642 + $0xb0] sm:$0xf]
      %v673 = vld [vmem:[%s642 + $0xb4] sm:$0xff]
      %v674 = vld [vmem:[%s642 + $0xbc] sm:$0xf]
      %v675 = vld [vmem:[%s642 + $0xc0] sm:$0xff]
      %v676 = vld [vmem:[%s642 + $0xc8] sm:$0xf]
      %v677 = vld [vmem:[%s642 + $0xcc] sm:$0xff]
      %v678 = vld [vmem:[%s642 + $0xd4] sm:$0xf]
      %v679 = vld [vmem:[%s642 + $0xd8] sm:$0xff]
      %v680 = vld [vmem:[%s642 + $0xe0] sm:$0xf]
      %v681 = vld [vmem:[%s642 + $0xe4] sm:$0xff]
      %v682 = vld [vmem:[%s642 + $0xec] sm:$0xf]
      %v683 = vld [vmem:[%s642 + $0xf0] sm:$0xff]
      %v684 = vld [vmem:[%s642 + $0xf8] sm:$0xf]
      %v685 = vld [vmem:[%s642 + $0xfc] sm:$0xff]
      %v686 = vld [vmem:[%s642 + $0x104] sm:$0xf]
      %v687 = vld [vmem:[%s642 + $0x108] sm:$0xff]
      %v688 = vld [vmem:[%s642 + $0x110] sm:$0xf]
      %v689 = vld [vmem:[%s642 + $0x114] sm:$0xff]
      %v690 = vld [vmem:[%s642 + $0x11c] sm:$0xf]
      %v691 = vld [vmem:[%s642 + $0x120] sm:$0xff]
      %v692 = vld [vmem:[%s642 + $0x128] sm:$0xf]
      %v693 = vld [vmem:[%s642 + $0x12c] sm:$0xff]
      %v694 = vld [vmem:[%s642 + $0x134] sm:$0xf]
      %v695 = vld [vmem:[%s642 + $0x138] sm:$0xff]
      %v696 = vld [vmem:[%s642 + $0x140] sm:$0xf]
      %v697 = vld [vmem:[%s642 + $0x144] sm:$0xff]
      %v698 = vld [vmem:[%s642 + $0x14c] sm:$0xf]
      %v699 = vld [vmem:[%s642 + $0x150] sm:$0xff]
      %v700 = vld [vmem:[%s642 + $0x158] sm:$0xf]
      %v701 = vld [vmem:[%s642 + $0x15c] sm:$0xff]
      %v702 = vld [vmem:[%s642 + $0x164] sm:$0xf]
      %v703 = vld [vmem:[%s642 + $0x168] sm:$0xff]
      %v704 = vld [vmem:[%s642 + $0x170] sm:$0xf]
      %v705 = vld [vmem:[%s642 + $0x174] sm:$0xff]
      %v706 = vld [vmem:[%s642 + $0x17c] sm:$0xf]
      %v707 = vld [vmem:[%s642 + $0x180] sm:$0xff]
      %v708 = vld [vmem:[%s642 + $0x188] sm:$0xf]
      %v709 = vld [vmem:[%s642 + $0x18c] sm:$0xff]
      %v710 = vld [vmem:[%s642 + $0x194] sm:$0xf]
      %v711 = vld [vmem:[%s642 + $0x198] sm:$0xff]
      %v712 = vld [vmem:[%s642 + $0x1a0] sm:$0xf]
      %v713 = vld [vmem:[%s642 + $0x1a4] sm:$0xff]
      %v714 = vld [vmem:[%s642 + $0x1ac] sm:$0xf]
      %v715 = vld [vmem:[%s642 + $0x1b0] sm:$0xff]
      %v716 = vld [vmem:[%s642 + $0x1b8] sm:$0xf]
      %v717 = vld [vmem:[%s642 + $0x1bc] sm:$0xff]
      %v718 = vld [vmem:[%s642 + $0x1c4] sm:$0xf]
      %v719 = vld [vmem:[%s642 + $0x1c8] sm:$0xff]
      %v720 = vld [vmem:[%s642 + $0x1d0] sm:$0xf]
      %v721 = vld [vmem:[%s642 + $0x1d4] sm:$0xff]
      %v722 = vld [vmem:[%s642 + $0x1dc] sm:$0xf]
      %v723 = vld [vmem:[%s642 + $0x1e0] sm:$0xff]
      %v724 = vld [vmem:[%s642 + $0x1e8] sm:$0xf]
      %v725 = vld [vmem:[%s642 + $0x1ec] sm:$0xff]
      %v726 = vld [vmem:[%s642 + $0x1f4] sm:$0xf]
      %v727 = vld [vmem:[%s642 + $0x1f8] sm:$0xff]
      %v728 = vld [vmem:[%s642 + $0x200] sm:$0xf]
      %v729 = vld [vmem:[%s642 + $0x204] sm:$0xff]
      %v730 = vld [vmem:[%s642 + $0x20c] sm:$0xf]
      %v731 = vld [vmem:[%s642 + $0x210] sm:$0xff]
      %v732 = vld [vmem:[%s642 + $0x218] sm:$0xf]
      %v733 = vld [vmem:[%s642 + $0x21c] sm:$0xff]
      %v734 = vld [vmem:[%s642 + $0x224] sm:$0xf]
      %v735 = vld [vmem:[%s642 + $0x228] sm:$0xff]
      %v736 = vld [vmem:[%s642 + $0x230] sm:$0xf]
      %v737 = vld [vmem:[%s642 + $0x234] sm:$0xff]
      %v738 = vld [vmem:[%s642 + $0x23c] sm:$0xf]
      %v739 = vld [vmem:[%s642 + $0x240] sm:$0xff]
      %v740 = vld [vmem:[%s642 + $0x248] sm:$0xf]
      %v741 = vld [vmem:[%s642 + $0x24c] sm:$0xff]
      %v742 = vld [vmem:[%s642 + $0x254] sm:$0xf]
      %v743 = vld [vmem:[%s642 + $0x258] sm:$0xff]
      %v744 = vld [vmem:[%s642 + $0x260] sm:$0xf]
      %v745 = vld [vmem:[%s642 + $0x264] sm:$0xff]
      %v746 = vld [vmem:[%s642 + $0x26c] sm:$0xf]
      %v747 = vld [vmem:[%s642 + $0x270] sm:$0xff]
      %v748 = vld [vmem:[%s642 + $0x278] sm:$0xf]
      %v749 = vld [vmem:[%s642 + $0x27c] sm:$0xff]
      %v750 = vld [vmem:[%s642 + $0x284] sm:$0xf]
      %v751 = vld [vmem:[%s642 + $0x288] sm:$0xff]
      %v752 = vld [vmem:[%s642 + $0x290] sm:$0xf]
      %v753 = vld [vmem:[%s642 + $0x294] sm:$0xff]
      %v754 = vld [vmem:[%s642 + $0x29c] sm:$0xf]
      %v755 = vld [vmem:[%s642 + $0x2a0] sm:$0xff]
      %v756 = vld [vmem:[%s642 + $0x2a8] sm:$0xf]
      %v757 = vld [vmem:[%s642 + $0x2ac] sm:$0xff]
      %v758 = vld [vmem:[%s642 + $0x2b4] sm:$0xf]
      %v759 = vld [vmem:[%s642 + $0x2b8] sm:$0xff]
      %v760 = vld [vmem:[%s642 + $0x2c0] sm:$0xf]
      %v761 = vld [vmem:[%s642 + $0x2c4] sm:$0xff]
      %v762 = vld [vmem:[%s642 + $0x2cc] sm:$0xf]
      %v763 = vld [vmem:[%s642 + $0x2d0] sm:$0xff]
      %v764 = vld [vmem:[%s642 + $0x2d8] sm:$0xf]
      %v765 = vld [vmem:[%s642 + $0x2dc] sm:$0xff]
      %v766 = vld [vmem:[%s642 + $0x2e4] sm:$0xf]
      %v767 = vld [vmem:[%s642 + $0x2e8] sm:$0xff]
      %v768 = vld [vmem:[%s642 + $0x2f0] sm:$0xf]
      %v769 = vld [vmem:[%s642 + $0x2f4] sm:$0xff]
      %v770 = vld [vmem:[%s642 + $0x2fc] sm:$0xf]
      %v771 = vld [vmem:[%s642 + $0x300] sm:$0xff]
      %v772 = vld [vmem:[%s642 + $0x308] sm:$0xf]
      %v773 = vld [vmem:[%s642 + $0x30c] sm:$0xff]
      %v774 = vld [vmem:[%s642 + $0x314] sm:$0xf]
      %v775 = vld [vmem:[%s642 + $0x318] sm:$0xff]
      %v776 = vld [vmem:[%s642 + $0x320] sm:$0xf]
      %v777 = vld [vmem:[%s642 + $0x324] sm:$0xff]
      %v778 = vld [vmem:[%s642 + $0x32c] sm:$0xf]
      %v779 = vld [vmem:[%s642 + $0x330] sm:$0xff]
      %v780 = vld [vmem:[%s642 + $0x338] sm:$0xf]
      %v781 = vld [vmem:[%s642 + $0x33c] sm:$0xff]
      %v782 = vld [vmem:[%s642 + $0x344] sm:$0xf]
      %v783 = vld [vmem:[%s642 + $0x348] sm:$0xff]
      %v784 = vld [vmem:[%s642 + $0x350] sm:$0xf]
      %v785 = vld [vmem:[%s642 + $0x354] sm:$0xff]
      %v786 = vld [vmem:[%s642 + $0x35c] sm:$0xf]
      %v787 = vld [vmem:[%s642 + $0x360] sm:$0xff]
      %v788 = vld [vmem:[%s642 + $0x368] sm:$0xf]
      %v789 = vld [vmem:[%s642 + $0x36c] sm:$0xff]
      %v790 = vld [vmem:[%s642 + $0x374] sm:$0xf]
      %v791 = vld [vmem:[%s642 + $0x378] sm:$0xff]
      %v792 = vld [vmem:[%s642 + $0x380] sm:$0xf]
      %v793 = vld [vmem:[%s642 + $0x384] sm:$0xff]
      %v794 = vld [vmem:[%s642 + $0x38c] sm:$0xf]
      %v795 = vld [vmem:[%s642 + $0x390] sm:$0xff]
      %v796 = vld [vmem:[%s642 + $0x398] sm:$0xf]
      %v797 = vld [vmem:[%s642 + $0x39c] sm:$0xff]
      %v798 = vld [vmem:[%s642 + $0x3a4] sm:$0xf]
      %v799 = vld [vmem:[%s642 + $0x3a8] sm:$0xff]
      %v800 = vld [vmem:[%s642 + $0x3b0] sm:$0xf]
      %v801 = vld [vmem:[%s642 + $0x3b4] sm:$0xff]
      %v802 = vld [vmem:[%s642 + $0x3bc] sm:$0xf]
      %v803 = vld [vmem:[%s642 + $0x3c0] sm:$0xff]
      %v804 = vld [vmem:[%s642 + $0x3c8] sm:$0xf]
      %v805 = vld [vmem:[%s642 + $0x3cc] sm:$0xff]
      %v806 = vld [vmem:[%s642 + $0x3d4] sm:$0xf]
      %v807 = vld [vmem:[%s642 + $0x3d8] sm:$0xff]
      %v808 = vld [vmem:[%s642 + $0x3e0] sm:$0xf]
      %v809 = vld [vmem:[%s642 + $0x3e4] sm:$0xff]
      %v810 = vld [vmem:[%s642 + $0x3ec] sm:$0xf]
      %v811 = vld [vmem:[%s642 + $0x3f0] sm:$0xff]
      %v812 = vld [vmem:[%s642 + $0x3f8] sm:$0xf]
      %v813 = vld [vmem:[%s642 + $0x3fc] sm:$0xff]
      %v814 = vld [vmem:[%s642 + $0x404] sm:$0xf]
      %v815 = vld [vmem:[%s642 + $0x408] sm:$0xff]
      %v816 = vld [vmem:[%s642 + $0x410] sm:$0xf]
      %v817 = vld [vmem:[%s642 + $0x414] sm:$0xff]
      %v818 = vld [vmem:[%s642 + $0x41c] sm:$0xf]
      %v834 = vunpack.c.l.b16 %v451
      %v835 = vunpack.c.h.b16 %v451
      %v836 = vunpack.c.l.b16 %v452
      %v837 = vunpack.c.h.b16 %v452
      %v838 = vunpack.c.l.b16 %v453
      %v839 = vunpack.c.h.b16 %v453
      %v840 = vunpack.c.l.b16 %v454
      %v841 = vunpack.c.h.b16 %v454
      %v842 = vunpack.c.l.b16 %v455
      %v843 = vunpack.c.h.b16 %v455
      %v844 = vunpack.c.l.b16 %v456
      %v845 = vunpack.c.h.b16 %v456
      %v846 = vunpack.c.l.b16 %v457
      %v847 = vunpack.c.h.b16 %v457
      %v848 = vunpack.c.l.b16 %v458
      %v849 = vunpack.c.h.b16 %v458
      %v850 = vunpack.c.l.b16 %v459
      %v851 = vunpack.c.h.b16 %v459
      %v852 = vunpack.c.l.b16 %v460
      %v853 = vunpack.c.h.b16 %v460
      %v854 = vunpack.c.l.b16 %v461
      %v855 = vunpack.c.h.b16 %v461
      %v856 = vunpack.c.l.b16 %v462
      %v857 = vunpack.c.h.b16 %v462
      %v858 = vunpack.c.l.b16 %v463
      %v859 = vunpack.c.h.b16 %v463
      %v860 = vunpack.c.l.b16 %v464
      %v861 = vunpack.c.h.b16 %v464
      %v862 = vunpack.c.l.b16 %v465
      %v863 = vunpack.c.h.b16 %v465
      %v864 = vpack.c.b16 %v840, %v834
      %v865 = vpack.c.b16 %v841, %v835
      %v866 = vpack.c.b16 %v842, %v836
      %v867 = vpack.c.b16 %v843, %v837
      %v868 = vpack.c.b16 %v844, %v838
      %v869 = vpack.c.b16 %v845, %v839
      %v870 = vpack.c.b16 %v852, %v846
      %v871 = vpack.c.b16 %v853, %v847
      %v872 = vpack.c.b16 %v854, %v848
      %v873 = vpack.c.b16 %v855, %v849
      %v874 = vpack.c.b16 %v856, %v850
      %v875 = vpack.c.b16 %v857, %v851
      %v876 = vpack.c.b16 %v858, %v858
      %v877 = vpack.c.b16 %v859, %v859
      %v878 = vpack.c.b16 %v860, %v860
      %v879 = vpack.c.b16 %v861, %v861
      %v880 = vpack.c.b16 %v862, %v862
      %v881 = vpack.c.b16 %v863, %v863
      %v1073 = vunpack.c.l.b16 %v643
      %v1074 = vunpack.c.h.b16 %v643
      %v1075 = vunpack.c.l.b16 %v644
      %v1076 = vunpack.c.l.b16 %v645
      %v1077 = vunpack.c.h.b16 %v645
      %v1078 = vunpack.c.l.b16 %v646
      %v1079 = vunpack.c.l.b16 %v647
      %v1080 = vunpack.c.h.b16 %v647
      %v1081 = vunpack.c.l.b16 %v648
      %v1082 = vunpack.c.l.b16 %v649
      %v1083 = vunpack.c.h.b16 %v649
      %v1084 = vunpack.c.l.b16 %v650
      %v1085 = vunpack.c.l.b16 %v651
      %v1086 = vunpack.c.h.b16 %v651
      %v1087 = vunpack.c.l.b16 %v652
      %v1088 = vunpack.c.l.b16 %v653
      %v1089 = vunpack.c.h.b16 %v653
      %v1090 = vunpack.c.l.b16 %v654
      %v1091 = vunpack.c.l.b16 %v655
      %v1092 = vunpack.c.h.b16 %v655
      %v1093 = vunpack.c.l.b16 %v656
      %v1094 = vunpack.c.l.b16 %v657
      %v1095 = vunpack.c.h.b16 %v657
      %v1096 = vunpack.c.l.b16 %v658
      %v1097 = vunpack.c.l.b16 %v659
      %v1098 = vunpack.c.h.b16 %v659
      %v1099 = vunpack.c.l.b16 %v660
      %v1100 = vunpack.c.l.b16 %v661
      %v1101 = vunpack.c.h.b16 %v661
      %v1102 = vunpack.c.l.b16 %v662
      %v1103 = vunpack.c.l.b16 %v663
      %v1104 = vunpack.c.h.b16 %v663
      %v1105 = vunpack.c.l.b16 %v664
      %v1106 = vunpack.c.l.b16 %v665
      %v1107 = vunpack.c.h.b16 %v665
      %v1108 = vunpack.c.l.b16 %v666
      %v1109 = vunpack.c.l.b16 %v667
      %v1110 = vunpack.c.h.b16 %v667
      %v1111 = vunpack.c.l.b16 %v668
      %v1112 = vunpack.c.l.b16 %v669
      %v1113 = vunpack.c.h.b16 %v669
      %v1114 = vunpack.c.l.b16 %v670
      %v1115 = vunpack.c.l.b16 %v671
      %v1116 = vunpack.c.h.b16 %v671
      %v1117 = vunpack.c.l.b16 %v672
      %v1118 = vunpack.c.l.b16 %v673
      %v1119 = vunpack.c.h.b16 %v673
      %v1120 = vunpack.c.l.b16 %v674
      %v1121 = vunpack.c.l.b16 %v675
      %v1122 = vunpack.c.h.b16 %v675
      %v1123 = vunpack.c.l.b16 %v676
      %v1124 = vunpack.c.l.b16 %v677
      %v1125 = vunpack.c.h.b16 %v677
      %v1126 = vunpack.c.l.b16 %v678
      %v1127 = vunpack.c.l.b16 %v679
      %v1128 = vunpack.c.h.b16 %v679
      %v1129 = vunpack.c.l.b16 %v680
      %v1130 = vunpack.c.l.b16 %v681
      %v1131 = vunpack.c.h.b16 %v681
      %v1132 = vunpack.c.l.b16 %v682
      %v1133 = vunpack.c.l.b16 %v683
      %v1134 = vunpack.c.h.b16 %v683
      %v1135 = vunpack.c.l.b16 %v684
      %v1136 = vunpack.c.l.b16 %v685
      %v1137 = vunpack.c.h.b16 %v685
      %v1138 = vunpack.c.l.b16 %v686
      %v1139 = vunpack.c.l.b16 %v687
      %v1140 = vunpack.c.h.b16 %v687
      %v1141 = vunpack.c.l.b16 %v688
      %v1142 = vunpack.c.l.b16 %v689
      %v1143 = vunpack.c.h.b16 %v689
      %v1144 = vunpack.c.l.b16 %v690
      %v1145 = vunpack.c.l.b16 %v691
      %v1146 = vunpack.c.h.b16 %v691
      %v1147 = vunpack.c.l.b16 %v692
      %v1148 = vunpack.c.l.b16 %v693
      %v1149 = vunpack.c.h.b16 %v693
      %v1150 = vunpack.c.l.b16 %v694
      %v1151 = vunpack.c.l.b16 %v695
      %v1152 = vunpack.c.h.b16 %v695
      %v1153 = vunpack.c.l.b16 %v696
      %v1154 = vunpack.c.l.b16 %v697
      %v1155 = vunpack.c.h.b16 %v697
      %v1156 = vunpack.c.l.b16 %v698
      %v1157 = vunpack.c.l.b16 %v699
      %v1158 = vunpack.c.h.b16 %v699
      %v1159 = vunpack.c.l.b16 %v700
      %v1160 = vunpack.c.l.b16 %v701
      %v1161 = vunpack.c.h.b16 %v701
      %v1162 = vunpack.c.l.b16 %v702
      %v1163 = vunpack.c.l.b16 %v703
      %v1164 = vunpack.c.h.b16 %v703
      %v1165 = vunpack.c.l.b16 %v704
      %v1166 = vunpack.c.l.b16 %v705
      %v1167 = vunpack.c.h.b16 %v705
      %v1168 = vunpack.c.l.b16 %v706
      %v1169 = vunpack.c.l.b16 %v707
      %v1170 = vunpack.c.h.b16 %v707
      %v1171 = vunpack.c.l.b16 %v708
      %v1172 = vunpack.c.l.b16 %v709
      %v1173 = vunpack.c.h.b16 %v709
      %v1174 = vunpack.c.l.b16 %v710
      %v1175 = vunpack.c.l.b16 %v711
      %v1176 = vunpack.c.h.b16 %v711
      %v1177 = vunpack.c.l.b16 %v712
      %v1178 = vunpack.c.l.b16 %v713
      %v1179 = vunpack.c.h.b16 %v713
      %v1180 = vunpack.c.l.b16 %v714
      %v1181 = vunpack.c.l.b16 %v715
      %v1182 = vunpack.c.h.b16 %v715
      %v1183 = vunpack.c.l.b16 %v716
      %v1184 = vunpack.c.l.b16 %v717
      %v1185 = vunpack.c.h.b16 %v717
      %v1186 = vunpack.c.l.b16 %v718
      %v1187 = vunpack.c.l.b16 %v719
      %v1188 = vunpack.c.h.b16 %v719
      %v1189 = vunpack.c.l.b16 %v720
      %v1190 = vunpack.c.l.b16 %v721
      %v1191 = vunpack.c.h.b16 %v721
      %v1192 = vunpack.c.l.b16 %v722
      %v1193 = vunpack.c.l.b16 %v723
      %v1194 = vunpack.c.h.b16 %v723
      %v1195 = vunpack.c.l.b16 %v724
      %v1196 = vunpack.c.l.b16 %v725
      %v1197 = vunpack.c.h.b16 %v725
      %v1198 = vunpack.c.l.b16 %v726
      %v1199 = vunpack.c.l.b16 %v727
      %v1200 = vunpack.c.h.b16 %v727
      %v1201 = vunpack.c.l.b16 %v728
      %v1202 = vunpack.c.l.b16 %v729
      %v1203 = vunpack.c.h.b16 %v729
      %v1204 = vunpack.c.l.b16 %v730
      %v1205 = vunpack.c.l.b16 %v731
      %v1206 = vunpack.c.h.b16 %v731
      %v1207 = vunpack.c.l.b16 %v732
      %v1208 = vunpack.c.l.b16 %v733
      %v1209 = vunpack.c.h.b16 %v733
      %v1210 = vunpack.c.l.b16 %v734
      %v1211 = vunpack.c.l.b16 %v735
      %v1212 = vunpack.c.h.b16 %v735
      %v1213 = vunpack.c.l.b16 %v736
      %v1214 = vunpack.c.l.b16 %v737
      %v1215 = vunpack.c.h.b16 %v737
      %v1216 = vunpack.c.l.b16 %v738
      %v1217 = vunpack.c.l.b16 %v739
      %v1218 = vunpack.c.h.b16 %v739
      %v1219 = vunpack.c.l.b16 %v740
      %v1220 = vunpack.c.l.b16 %v741
      %v1221 = vunpack.c.h.b16 %v741
      %v1222 = vunpack.c.l.b16 %v742
      %v1223 = vunpack.c.l.b16 %v743
      %v1224 = vunpack.c.h.b16 %v743
      %v1225 = vunpack.c.l.b16 %v744
      %v1226 = vunpack.c.l.b16 %v745
      %v1227 = vunpack.c.h.b16 %v745
      %v1228 = vunpack.c.l.b16 %v746
      %v1229 = vunpack.c.l.b16 %v747
      %v1230 = vunpack.c.h.b16 %v747
      %v1231 = vunpack.c.l.b16 %v748
      %v1232 = vunpack.c.l.b16 %v749
      %v1233 = vunpack.c.h.b16 %v749
      %v1234 = vunpack.c.l.b16 %v750
      %v1235 = vunpack.c.l.b16 %v751
      %v1236 = vunpack.c.h.b16 %v751
      %v1237 = vunpack.c.l.b16 %v752
      %v1238 = vunpack.c.l.b16 %v753
      %v1239 = vunpack.c.h.b16 %v753
      %v1240 = vunpack.c.l.b16 %v754
      %v1241 = vunpack.c.l.b16 %v755
      %v1242 = vunpack.c.h.b16 %v755
      %v1243 = vunpack.c.l.b16 %v756
      %v1244 = vunpack.c.l.b16 %v757
      %v1245 = vunpack.c.h.b16 %v757
      %v1246 = vunpack.c.l.b16 %v758
      %v1247 = vunpack.c.l.b16 %v759
      %v1248 = vunpack.c.h.b16 %v759
      %v1249 = vunpack.c.l.b16 %v760
      %v1250 = vunpack.c.l.b16 %v761
      %v1251 = vunpack.c.h.b16 %v761
      %v1252 = vunpack.c.l.b16 %v762
      %v1253 = vunpack.c.l.b16 %v763
      %v1254 = vunpack.c.h.b16 %v763
      %v1255 = vunpack.c.l.b16 %v764
      %v1256 = vunpack.c.l.b16 %v765
      %v1257 = vunpack.c.h.b16 %v765
      %v1258 = vunpack.c.l.b16 %v766
      %v1259 = vunpack.c.l.b16 %v767
      %v1260 = vunpack.c.h.b16 %v767
      %v1261 = vunpack.c.l.b16 %v768
      %v1262 = vunpack.c.l.b16 %v769
      %v1263 = vunpack.c.h.b16 %v769
      %v1264 = vunpack.c.l.b16 %v770
      %v1265 = vunpack.c.l.b16 %v771
      %v1266 = vunpack.c.h.b16 %v771
      %v1267 = vunpack.c.l.b16 %v772
      %v1268 = vunpack.c.l.b16 %v773
      %v1269 = vunpack.c.h.b16 %v773
      %v1270 = vunpack.c.l.b16 %v774
      %v1271 = vunpack.c.l.b16 %v775
      %v1272 = vunpack.c.h.b16 %v775
      %v1273 = vunpack.c.l.b16 %v776
      %v1274 = vunpack.c.l.b16 %v777
      %v1275 = vunpack.c.h.b16 %v777
      %v1276 = vunpack.c.l.b16 %v778
      %v1277 = vunpack.c.l.b16 %v779
      %v1278 = vunpack.c.h.b16 %v779
      %v1279 = vunpack.c.l.b16 %v780
      %v1280 = vunpack.c.l.b16 %v781
      %v1281 = vunpack.c.h.b16 %v781
      %v1282 = vunpack.c.l.b16 %v782
      %v1283 = vunpack.c.l.b16 %v783
      %v1284 = vunpack.c.h.b16 %v783
      %v1285 = vunpack.c.l.b16 %v784
      %v1286 = vunpack.c.l.b16 %v785
      %v1287 = vunpack.c.h.b16 %v785
      %v1288 = vunpack.c.l.b16 %v786
      %v1289 = vunpack.c.l.b16 %v787
      %v1290 = vunpack.c.h.b16 %v787
      %v1291 = vunpack.c.l.b16 %v788
      %v1292 = vunpack.c.l.b16 %v789
      %v1293 = vunpack.c.h.b16 %v789
      %v1294 = vunpack.c.l.b16 %v790
      %v1295 = vunpack.c.l.b16 %v791
      %v1296 = vunpack.c.h.b16 %v791
      %v1297 = vunpack.c.l.b16 %v792
      %v1298 = vunpack.c.l.b16 %v793
      %v1299 = vunpack.c.h.b16 %v793
      %v1300 = vunpack.c.l.b16 %v794
      %v1301 = vunpack.c.l.b16 %v795
      %v1302 = vunpack.c.h.b16 %v795
      %v1303 = vunpack.c.l.b16 %v796
      %v1304 = vunpack.c.l.b16 %v797
      %v1305 = vunpack.c.h.b16 %v797
      %v1306 = vunpack.c.l.b16 %v798
      %v1307 = vunpack.c.l.b16 %v799
      %v1308 = vunpack.c.h.b16 %v799
      %v1309 = vunpack.c.l.b16 %v800
      %v1310 = vunpack.c.l.b16 %v801
      %v1311 = vunpack.c.h.b16 %v801
      %v1312 = vunpack.c.l.b16 %v802
      %v1313 = vunpack.c.l.b16 %v803
      %v1314 = vunpack.c.h.b16 %v803
      %v1315 = vunpack.c.l.b16 %v804
      %v1316 = vunpack.c.l.b16 %v805
      %v1317 = vunpack.c.h.b16 %v805
      %v1318 = vunpack.c.l.b16 %v806
      %v1319 = vunpack.c.l.b16 %v807
      %v1320 = vunpack.c.h.b16 %v807
      %v1321 = vunpack.c.l.b16 %v808
      %v1322 = vunpack.c.l.b16 %v809
      %v1323 = vunpack.c.h.b16 %v809
      %v1324 = vunpack.c.l.b16 %v810
      %v1325 = vunpack.c.l.b16 %v811
      %v1326 = vunpack.c.h.b16 %v811
      %v1327 = vunpack.c.l.b16 %v812
      %v1328 = vunpack.c.l.b16 %v813
      %v1329 = vunpack.c.h.b16 %v813
      %v1330 = vunpack.c.l.b16 %v814
      %v1331 = vunpack.c.l.b16 %v815
      %v1332 = vunpack.c.h.b16 %v815
      %v1333 = vunpack.c.l.b16 %v816
      %v1334 = vunpack.c.l.b16 %v817
      %v1335 = vunpack.c.h.b16 %v817
      %v1336 = vunpack.c.l.b16 %v818
      %v1337 = vpack.c.b16 %v1076, %v1073
      %v1338 = vpack.c.b16 %v1077, %v1074
      %v1339 = vpack.c.b16 %v1078, %v1075
      %v1340 = vpack.c.b16 %v1082, %v1079
      %v1341 = vpack.c.b16 %v1083, %v1080
      %v1342 = vpack.c.b16 %v1084, %v1081
      %v1343 = vpack.c.b16 %v1088, %v1085
      %v1344 = vpack.c.b16 %v1089, %v1086
      %v1345 = vpack.c.b16 %v1090, %v1087
      %v1346 = vpack.c.b16 %v1094, %v1091
      %v1347 = vpack.c.b16 %v1095, %v1092
      %v1348 = vpack.c.b16 %v1096, %v1093
      %v1349 = vpack.c.b16 %v1100, %v1097
      %v1350 = vpack.c.b16 %v1101, %v1098
      %v1351 = vpack.c.b16 %v1102, %v1099
      %v1352 = vpack.c.b16 %v1106, %v1103
      %v1353 = vpack.c.b16 %v1107, %v1104
      %v1354 = vpack.c.b16 %v1108, %v1105
      %v1355 = vpack.c.b16 %v1112, %v1109
      %v1356 = vpack.c.b16 %v1113, %v1110
      %v1357 = vpack.c.b16 %v1114, %v1111
      %v1358 = vpack.c.b16 %v1118, %v1115
      %v1359 = vpack.c.b16 %v1119, %v1116
      %v1360 = vpack.c.b16 %v1120, %v1117
      %v1361 = vpack.c.b16 %v1124, %v1121
      %v1362 = vpack.c.b16 %v1125, %v1122
      %v1363 = vpack.c.b16 %v1126, %v1123
      %v1364 = vpack.c.b16 %v1130, %v1127
      %v1365 = vpack.c.b16 %v1131, %v1128
      %v1366 = vpack.c.b16 %v1132, %v1129
      %v1367 = vpack.c.b16 %v1136, %v1133
      %v1368 = vpack.c.b16 %v1137, %v1134
      %v1369 = vpack.c.b16 %v1138, %v1135
      %v1370 = vpack.c.b16 %v1142, %v1139
      %v1371 = vpack.c.b16 %v1143, %v1140
      %v1372 = vpack.c.b16 %v1144, %v1141
      %v1373 = vpack.c.b16 %v1148, %v1145
      %v1374 = vpack.c.b16 %v1149, %v1146
      %v1375 = vpack.c.b16 %v1150, %v1147
      %v1376 = vpack.c.b16 %v1154, %v1151
      %v1377 = vpack.c.b16 %v1155, %v1152
      %v1378 = vpack.c.b16 %v1156, %v1153
      %v1379 = vpack.c.b16 %v1160, %v1157
      %v1380 = vpack.c.b16 %v1161, %v1158
      %v1381 = vpack.c.b16 %v1162, %v1159
      %v1382 = vpack.c.b16 %v1166, %v1163
      %v1383 = vpack.c.b16 %v1167, %v1164
      %v1384 = vpack.c.b16 %v1168, %v1165
      %v1385 = vpack.c.b16 %v1172, %v1169
      %v1386 = vpack.c.b16 %v1173, %v1170
      %v1387 = vpack.c.b16 %v1174, %v1171
      %v1388 = vpack.c.b16 %v1178, %v1175
      %v1389 = vpack.c.b16 %v1179, %v1176
      %v1390 = vpack.c.b16 %v1180, %v1177
      %v1391 = vpack.c.b16 %v1184, %v1181
      %v1392 = vpack.c.b16 %v1185, %v1182
      %v1393 = vpack.c.b16 %v1186, %v1183
      %v1394 = vpack.c.b16 %v1190, %v1187
      %v1395 = vpack.c.b16 %v1191, %v1188
      %v1396 = vpack.c.b16 %v1192, %v1189
      %v1397 = vpack.c.b16 %v1196, %v1193
      %v1398 = vpack.c.b16 %v1197, %v1194
      %v1399 = vpack.c.b16 %v1198, %v1195
      %v1400 = vpack.c.b16 %v1202, %v1199
      %v1401 = vpack.c.b16 %v1203, %v1200
      %v1402 = vpack.c.b16 %v1204, %v1201
      %v1403 = vpack.c.b16 %v1208, %v1205
      %v1404 = vpack.c.b16 %v1209, %v1206
      %v1405 = vpack.c.b16 %v1210, %v1207
      %v1406 = vpack.c.b16 %v1214, %v1211
      %v1407 = vpack.c.b16 %v1215, %v1212
      %v1408 = vpack.c.b16 %v1216, %v1213
      %v1409 = vpack.c.b16 %v1220, %v1217
      %v1410 = vpack.c.b16 %v1221, %v1218
      %v1411 = vpack.c.b16 %v1222, %v1219
      %v1412 = vpack.c.b16 %v1226, %v1223
      %v1413 = vpack.c.b16 %v1227, %v1224
      %v1414 = vpack.c.b16 %v1228, %v1225
      %v1415 = vpack.c.b16 %v1232, %v1229
      %v1416 = vpack.c.b16 %v1233, %v1230
      %v1417 = vpack.c.b16 %v1234, %v1231
      %v1418 = vpack.c.b16 %v1238, %v1235
      %v1419 = vpack.c.b16 %v1239, %v1236
      %v1420 = vpack.c.b16 %v1240, %v1237
      %v1421 = vpack.c.b16 %v1244, %v1241
      %v1422 = vpack.c.b16 %v1245, %v1242
      %v1423 = vpack.c.b16 %v1246, %v1243
      %v1424 = vpack.c.b16 %v1250, %v1247
      %v1425 = vpack.c.b16 %v1251, %v1248
      %v1426 = vpack.c.b16 %v1252, %v1249
      %v1427 = vpack.c.b16 %v1256, %v1253
      %v1428 = vpack.c.b16 %v1257, %v1254
      %v1429 = vpack.c.b16 %v1258, %v1255
      %v1430 = vpack.c.b16 %v1262, %v1259
      %v1431 = vpack.c.b16 %v1263, %v1260
      %v1432 = vpack.c.b16 %v1264, %v1261
      %v1433 = vpack.c.b16 %v1268, %v1265
      %v1434 = vpack.c.b16 %v1269, %v1266
      %v1435 = vpack.c.b16 %v1270, %v1267
      %v1436 = vpack.c.b16 %v1274, %v1271
      %v1437 = vpack.c.b16 %v1275, %v1272
      %v1438 = vpack.c.b16 %v1276, %v1273
      %v1439 = vpack.c.b16 %v1280, %v1277
      %v1440 = vpack.c.b16 %v1281, %v1278
      %v1441 = vpack.c.b16 %v1282, %v1279
      %v1442 = vpack.c.b16 %v1286, %v1283
      %v1443 = vpack.c.b16 %v1287, %v1284
      %v1444 = vpack.c.b16 %v1288, %v1285
      %v1445 = vpack.c.b16 %v1292, %v1289
      %v1446 = vpack.c.b16 %v1293, %v1290
      %v1447 = vpack.c.b16 %v1294, %v1291
      %v1448 = vpack.c.b16 %v1298, %v1295
      %v1449 = vpack.c.b16 %v1299, %v1296
      %v1450 = vpack.c.b16 %v1300, %v1297
      %v1451 = vpack.c.b16 %v1304, %v1301
      %v1452 = vpack.c.b16 %v1305, %v1302
      %v1453 = vpack.c.b16 %v1306, %v1303
      %v1454 = vpack.c.b16 %v1310, %v1307
      %v1455 = vpack.c.b16 %v1311, %v1308
      %v1456 = vpack.c.b16 %v1312, %v1309
      %v1457 = vpack.c.b16 %v1316, %v1313
      %v1458 = vpack.c.b16 %v1317, %v1314
      %v1459 = vpack.c.b16 %v1318, %v1315
      %v1460 = vpack.c.b16 %v1322, %v1319
      %v1461 = vpack.c.b16 %v1323, %v1320
      %v1462 = vpack.c.b16 %v1324, %v1321
      %v1463 = vpack.c.b16 %v1328, %v1325
      %v1464 = vpack.c.b16 %v1329, %v1326
      %v1465 = vpack.c.b16 %v1330, %v1327
      %v1466 = vpack.c.b16 %v1334, %v1331
      %v1467 = vpack.c.b16 %v1335, %v1332
      %v1468 = vpack.c.b16 %v1336, %v1333
      %vm1601 = vcmask 523264
      %v1603 = vsel %vm1601, %v869, 0
      %v1606 = vsel %vm1601, %v875, 0
      %v1609 = vsel %vm1601, %v881, 0
      %1611 = vmatprep.subr.bf16.mxu0 %v1338
      %1612 = vmatpush1.bf16.msra.mxu0 %v1337
      %1613 = vmatprep.subr.bf16.mxu0 %v1341
      %1614 = vmatpush1.bf16.msra.mxu0 %v1340
      %1615 = vmatprep.subr.bf16.mxu0 %v1344
      %1616 = vmatpush1.bf16.msra.mxu0 %v1343
      %1617 = vmatprep.subr.bf16.mxu0 %v1347
      %1618 = vmatpush1.bf16.msra.mxu0 %v1346
      %1619 = vmatprep.subr.bf16.mxu0 %v1350
      %1620 = vmatpush1.bf16.msra.mxu0 %v1349
      %1621 = vmatprep.subr.bf16.mxu0 %v1353
      %1622 = vmatpush1.bf16.msra.mxu0 %v1352
      %1623 = vmatprep.subr.bf16.mxu0 %v1356
      %1624 = vmatpush1.bf16.msra.mxu0 %v1355
      %1625 = vmatprep.subr.bf16.mxu0 %v1359
      %1626 = vmatpush1.bf16.msra.mxu0 %v1358
      %1627 = vmatprep.subr.bf16.mxu0 %v1362
      %1628 = vmatpush1.bf16.msra.mxu0 %v1361
      %1629 = vmatprep.subr.bf16.mxu0 %v1365
      %1630 = vmatpush1.bf16.msra.mxu0 %v1364
      %1631 = vmatprep.subr.bf16.mxu0 %v1368
      %1632 = vmatpush1.bf16.msra.mxu0 %v1367
      %1633 = vmatprep.subr.bf16.mxu0 %v1371
      %1634 = vmatpush1.bf16.msra.mxu0 %v1370
      %1635 = vmatprep.subr.bf16.mxu0 %v1374
      %1636 = vmatpush1.bf16.msra.mxu0 %v1373
      %1637 = vmatprep.subr.bf16.mxu0 %v1377
      %1638 = vmatpush1.bf16.msra.mxu0 %v1376
      %1639 = vmatprep.subr.bf16.mxu0 %v1380
      %1640 = vmatpush1.bf16.msra.mxu0 %v1379
      %1641 = vmatprep.subr.bf16.mxu0 %v1383
      %1642 = vmatpush1.bf16.msra.mxu0 %v1382
      %1643 = vmatprep.mubr.bf16.mxu0 %v865
      %1644 = vmatmul.mubr.bf16.gmra.mrb[0].mxu0 %v864
      %v1645 = vpop.f32.mrb[0].mxu0
      %v1646 = vadd.f32 0.0, %v1645
      %v1647 = vpop.f32.mrb[0].mxu0
      %v1648 = vadd.f32 0.0, %v1647
      %v1649 = vpop.f32.mrb[0].mxu0
      %v1650 = vadd.f32 0.0, %v1649
      %v1651 = vpop.f32.mrb[0].mxu0
      %v1652 = vadd.f32 0.0, %v1651
      %1653 = vmatprep.mubr.bf16.mxu0 %v871
      %1654 = vmatmul.mubr.bf16.gmra.mrb[0].mxu0 %v870
      %v1655 = vpop.f32.mrb[0].mxu0
      %v1656 = vadd.f32 0.0, %v1655
      %v1657 = vpop.f32.mrb[0].mxu0
      %v1658 = vadd.f32 0.0, %v1657
      %v1659 = vpop.f32.mrb[0].mxu0
      %v1660 = vadd.f32 0.0, %v1659
      %v1661 = vpop.f32.mrb[0].mxu0
      %v1662 = vadd.f32 0.0, %v1661
      %1663 = vmatprep.mubr.bf16.mxu0 %v877
      %1664 = vmatmul.mubr.bf16.gmra.mrb[0].mxu0 %v876
      %v1665 = vpop.f32.mrb[0].mxu0
      %v1666 = vadd.f32 0.0, %v1665
      %v1667 = vpop.f32.mrb[0].mxu0
      %v1668 = vadd.f32 0.0, %v1667
      %v1669 = vpop.f32.mrb[0].mxu0
      %v1670 = vpop.f32.mrb[0].mxu0
      %1671 = vdwg.mxu0
      %1672 = vmatprep.subr.bf16.mxu0 %v1386
      %1673 = vmatpush1.bf16.msra.mxu0 %v1385
      %1674 = vmatprep.subr.bf16.mxu0 %v1389
      %1675 = vmatpush1.bf16.msra.mxu0 %v1388
      %1676 = vmatprep.subr.bf16.mxu0 %v1392
      %1677 = vmatpush1.bf16.msra.mxu0 %v1391
      %1678 = vmatprep.subr.bf16.mxu0 %v1395
      %1679 = vmatpush1.bf16.msra.mxu0 %v1394
      %1680 = vmatprep.subr.bf16.mxu0 %v1398
      %1681 = vmatpush1.bf16.msra.mxu0 %v1397
      %1682 = vmatprep.subr.bf16.mxu0 %v1401
      %1683 = vmatpush1.bf16.msra.mxu0 %v1400
      %1684 = vmatprep.subr.bf16.mxu0 %v1404
      %1685 = vmatpush1.bf16.msra.mxu0 %v1403
      %1686 = vmatprep.subr.bf16.mxu0 %v1407
      %1687 = vmatpush1.bf16.msra.mxu0 %v1406
      %1688 = vmatprep.subr.bf16.mxu0 %v1410
      %1689 = vmatpush1.bf16.msra.mxu0 %v1409
      %1690 = vmatprep.subr.bf16.mxu0 %v1413
      %1691 = vmatpush1.bf16.msra.mxu0 %v1412
      %1692 = vmatprep.subr.bf16.mxu0 %v1416
      %1693 = vmatpush1.bf16.msra.mxu0 %v1415
      %1694 = vmatprep.subr.bf16.mxu0 %v1419
      %1695 = vmatpush1.bf16.msra.mxu0 %v1418
      %1696 = vmatprep.subr.bf16.mxu0 %v1422
      %1697 = vmatpush1.bf16.msra.mxu0 %v1421
      %1698 = vmatprep.subr.bf16.mxu0 %v1425
      %1699 = vmatpush1.bf16.msra.mxu0 %v1424
      %1700 = vmatprep.subr.bf16.mxu0 %v1428
      %1701 = vmatpush1.bf16.msra.mxu0 %v1427
      %1702 = vmatprep.subr.bf16.mxu0 %v1431
      %1703 = vmatpush1.bf16.msra.mxu0 %v1430
      %1704 = vmatprep.mubr.bf16.mxu0 %v867
      %1705 = vmatmul.mubr.bf16.gmra.mrb[0].mxu0 %v866
      %v1706 = vpop.f32.mrb[0].mxu0
      %v1707 = vadd.f32 %v1646, %v1706
      %v1708 = vpop.f32.mrb[0].mxu0
      %v1709 = vadd.f32 %v1648, %v1708
      %v1710 = vpop.f32.mrb[0].mxu0
      %v1711 = vadd.f32 %v1650, %v1710
      %v1712 = vpop.f32.mrb[0].mxu0
      %v1713 = vadd.f32 %v1652, %v1712
      %1714 = vmatprep.mubr.bf16.mxu0 %v873
      %1715 = vmatmul.mubr.bf16.gmra.mrb[0].mxu0 %v872
      %v1716 = vpop.f32.mrb[0].mxu0
      %v1717 = vadd.f32 %v1656, %v1716
      %v1718 = vpop.f32.mrb[0].mxu0
      %v1719 = vadd.f32 %v1658, %v1718
      %v1720 = vpop.f32.mrb[0].mxu0
      %v1721 = vadd.f32 %v1660, %v1720
      %v1722 = vpop.f32.mrb[0].mxu0
      %v1723 = vadd.f32 %v1662, %v1722
      %1724 = vmatprep.mubr.bf16.mxu0 %v879
      %1725 = vmatmul.mubr.bf16.gmra.mrb[0].mxu0 %v878
      %v1726 = vpop.f32.mrb[0].mxu0
      %v1727 = vadd.f32 %v1666, %v1726
      %v1728 = vpop.f32.mrb[0].mxu0
      %v1729 = vadd.f32 %v1668, %v1728
      %v1730 = vpop.f32.mrb[0].mxu0
      %v1731 = vpop.f32.mrb[0].mxu0
      %1732 = vdwg.mxu0
      %1733 = vmatprep.subr.bf16.mxu0 %v1434
      %1734 = vmatpush1.bf16.msra.mxu0 %v1433
      %1735 = vmatprep.subr.bf16.mxu0 %v1437
      %1736 = vmatpush1.bf16.msra.mxu0 %v1436
      %1737 = vmatprep.subr.bf16.mxu0 %v1440
      %1738 = vmatpush1.bf16.msra.mxu0 %v1439
      %1739 = vmatprep.subr.bf16.mxu0 %v1443
      %1740 = vmatpush1.bf16.msra.mxu0 %v1442
      %1741 = vmatprep.subr.bf16.mxu0 %v1446
      %1742 = vmatpush1.bf16.msra.mxu0 %v1445
      %1743 = vmatprep.subr.bf16.mxu0 %v1449
      %1744 = vmatpush1.bf16.msra.mxu0 %v1448
      %1745 = vmatprep.subr.bf16.mxu0 %v1452
      %1746 = vmatpush1.bf16.msra.mxu0 %v1451
      %1747 = vmatprep.subr.bf16.mxu0 %v1455
      %1748 = vmatpush1.bf16.msra.mxu0 %v1454
      %1749 = vmatprep.subr.bf16.mxu0 %v1458
      %1750 = vmatpush1.bf16.msra.mxu0 %v1457
      %1751 = vmatprep.subr.bf16.mxu0 %v1461
      %1752 = vmatpush1.bf16.msra.mxu0 %v1460
      %1753 = vmatprep.subr.bf16.mxu0 %v1464
      %1754 = vmatpush1.bf16.msra.mxu0 %v1463
      %1755 = vmatprep.subr.bf16.mxu0 %v1467
      %1756 = vmatpush1.bf16.msra.mxu0 %v1466
      %1757 = vmatprep.subr.bf16.mxu0 0
      %1758 = vmatpush1.bf16.msra.mxu0 0
      %1759 = vmatprep.subr.bf16.mxu0 0
      %1760 = vmatpush1.bf16.msra.mxu0 0
      %1761 = vmatprep.subr.bf16.mxu0 0
      %1762 = vmatpush1.bf16.msra.mxu0 0
      %1763 = vmatprep.subr.bf16.mxu0 0
      %1764 = vmatpush1.bf16.msra.mxu0 0
      %1765 = vmatprep.mubr.bf16.mxu0 %v1603
      %1766 = vmatmul.mubr.bf16.gmra.mrb[0].mxu0 %v868
      %v1767 = vpop.f32.mrb[0].mxu0
      %v1768 = vadd.f32 %v1707, %v1767
      %v1769 = vpop.f32.mrb[0].mxu0
      %v1770 = vadd.f32 %v1709, %v1769
      %v1771 = vpop.f32.mrb[0].mxu0
      %v1772 = vadd.f32 %v1711, %v1771
      %v1773 = vpop.f32.mrb[0].mxu0
      %v1774 = vadd.f32 %v1713, %v1773
      %1775 = vmatprep.mubr.bf16.mxu0 %v1606
      %1776 = vmatmul.mubr.bf16.gmra.mrb[0].mxu0 %v874
      %v1777 = vpop.f32.mrb[0].mxu0
      %v1778 = vadd.f32 %v1717, %v1777
      %v1779 = vpop.f32.mrb[0].mxu0
      %v1780 = vadd.f32 %v1719, %v1779
      %v1781 = vpop.f32.mrb[0].mxu0
      %v1782 = vadd.f32 %v1721, %v1781
      %v1783 = vpop.f32.mrb[0].mxu0
      %v1784 = vadd.f32 %v1723, %v1783
      %1785 = vmatprep.mubr.bf16.mxu0 %v1609
      %1786 = vmatmul.mubr.bf16.gmra.mrb[0].mxu0 %v880
      %v1787 = vpop.f32.mrb[0].mxu0
      %v1788 = vadd.f32 %v1727, %v1787
      %v1789 = vpop.f32.mrb[0].mxu0
      %v1790 = vadd.f32 %v1729, %v1789
      %v1791 = vpop.f32.mrb[0].mxu0
      %v1792 = vpop.f32.mrb[0].mxu0
      %1793 = vdwg.mxu0
      %1794 = vmatprep.subr.bf16.mxu0 0
      %1795 = vmatpush1.bf16.msra.mxu0 %v1339
      %1796 = vmatprep.subr.bf16.mxu0 0
      %1797 = vmatpush1.bf16.msra.mxu0 %v1342
      %1798 = vmatprep.subr.bf16.mxu0 0
      %1799 = vmatpush1.bf16.msra.mxu0 %v1345
      %1800 = vmatprep.subr.bf16.mxu0 0
      %1801 = vmatpush1.bf16.msra.mxu0 %v1348
      %1802 = vmatprep.subr.bf16.mxu0 0
      %1803 = vmatpush1.bf16.msra.mxu0 %v1351
      %1804 = vmatprep.subr.bf16.mxu0 0
      %1805 = vmatpush1.bf16.msra.mxu0 %v1354
      %1806 = vmatprep.subr.bf16.mxu0 0
      %1807 = vmatpush1.bf16.msra.mxu0 %v1357
      %1808 = vmatprep.subr.bf16.mxu0 0
      %1809 = vmatpush1.bf16.msra.mxu0 %v1360
      %1810 = vmatprep.subr.bf16.mxu0 0
      %1811 = vmatpush1.bf16.msra.mxu0 %v1363
      %1812 = vmatprep.subr.bf16.mxu0 0
      %1813 = vmatpush1.bf16.msra.mxu0 %v1366
      %1814 = vmatprep.subr.bf16.mxu0 0
      %1815 = vmatpush1.bf16.msra.mxu0 %v1369
      %1816 = vmatprep.subr.bf16.mxu0 0
      %1817 = vmatpush1.bf16.msra.mxu0 %v1372
      %1818 = vmatprep.subr.bf16.mxu0 0
      %1819 = vmatpush1.bf16.msra.mxu0 %v1375
      %1820 = vmatprep.subr.bf16.mxu0 0
      %1821 = vmatpush1.bf16.msra.mxu0 %v1378
      %1822 = vmatprep.subr.bf16.mxu0 0
      %1823 = vmatpush1.bf16.msra.mxu0 %v1381
      %1824 = vmatprep.subr.bf16.mxu0 0
      %1825 = vmatpush1.bf16.msra.mxu0 %v1384
      %1826 = vmatprep.mubr.bf16.mxu0 %v865
      %1827 = vmatmul.mubr.bf16.gmra.mrb[0].mxu0 %v864
      %v1828 = vpop.f32.mrb[0].mxu0
      %v1829 = vadd.f32 0.0, %v1828
      %v1830 = vpop.f32.mrb[0].mxu0
      %v1831 = vpop.f32.mrb[0].mxu0
      %v1832 = vadd.f32 0.0, %v1831
      %v1833 = vpop.f32.mrb[0].mxu0
      %1834 = vmatprep.mubr.bf16.mxu0 %v871
      %1835 = vmatmul.mubr.bf16.gmra.mrb[0].mxu0 %v870
      %v1836 = vpop.f32.mrb[0].mxu0
      %v1837 = vadd.f32 0.0, %v1836
      %v1838 = vpop.f32.mrb[0].mxu0
      %v1839 = vpop.f32.mrb[0].mxu0
      %v1840 = vadd.f32 0.0, %v1839
      %v1841 = vpop.f32.mrb[0].mxu0
      %1842 = vmatprep.mubr.bf16.mxu0 %v877
      %1843 = vmatmul.mubr.bf16.gmra.mrb[0].mxu0 %v876
      %v1844 = vpop.f32.mrb[0].mxu0
      %v1845 = vadd.f32 0.0, %v1844
      %v1846 = vpop.f32.mrb[0].mxu0
      %v1847 = vpop.f32.mrb[0].mxu0
      %v1848 = vpop.f32.mrb[0].mxu0
      %1849 = vdwg.mxu0
      %1850 = vmatprep.subr.bf16.mxu0 0
      %1851 = vmatpush1.bf16.msra.mxu0 %v1387
      %1852 = vmatprep.subr.bf16.mxu0 0
      %1853 = vmatpush1.bf16.msra.mxu0 %v1390
      %1854 = vmatprep.subr.bf16.mxu0 0
      %1855 = vmatpush1.bf16.msra.mxu0 %v1393
      %1856 = vmatprep.subr.bf16.mxu0 0
      %1857 = vmatpush1.bf16.msra.mxu0 %v1396
      %1858 = vmatprep.subr.bf16.mxu0 0
      %1859 = vmatpush1.bf16.msra.mxu0 %v1399
      %1860 = vmatprep.subr.bf16.mxu0 0
      %1861 = vmatpush1.bf16.msra.mxu0 %v1402
      %1862 = vmatprep.subr.bf16.mxu0 0
      %1863 = vmatpush1.bf16.msra.mxu0 %v1405
      %1864 = vmatprep.subr.bf16.mxu0 0
      %1865 = vmatpush1.bf16.msra.mxu0 %v1408
      %1866 = vmatprep.subr.bf16.mxu0 0
      %1867 = vmatpush1.bf16.msra.mxu0 %v1411
      %1868 = vmatprep.subr.bf16.mxu0 0
      %1869 = vmatpush1.bf16.msra.mxu0 %v1414
      %1870 = vmatprep.subr.bf16.mxu0 0
      %1871 = vmatpush1.bf16.msra.mxu0 %v1417
      %1872 = vmatprep.subr.bf16.mxu0 0
      %1873 = vmatpush1.bf16.msra.mxu0 %v1420
      %1874 = vmatprep.subr.bf16.mxu0 0
      %1875 = vmatpush1.bf16.msra.mxu0 %v1423
      %1876 = vmatprep.subr.bf16.mxu0 0
      %1877 = vmatpush1.bf16.msra.mxu0 %v1426
      %1878 = vmatprep.subr.bf16.mxu0 0
      %1879 = vmatpush1.bf16.msra.mxu0 %v1429
      %1880 = vmatprep.subr.bf16.mxu0 0
      %1881 = vmatpush1.bf16.msra.mxu0 %v1432
      %1882 = vmatprep.mubr.bf16.mxu0 %v867
      %1883 = vmatmul.mubr.bf16.gmra.mrb[0].mxu0 %v866
      %v1884 = vpop.f32.mrb[0].mxu0
      %v1885 = vadd.f32 %v1829, %v1884
      %v1886 = vpop.f32.mrb[0].mxu0
      %v1887 = vpop.f32.mrb[0].mxu0
      %v1888 = vadd.f32 %v1832, %v1887
      %v1889 = vpop.f32.mrb[0].mxu0
      %1890 = vmatprep.mubr.bf16.mxu0 %v873
      %1891 = vmatmul.mubr.bf16.gmra.mrb[0].mxu0 %v872
      %v1892 = vpop.f32.mrb[0].mxu0
      %v1893 = vadd.f32 %v1837, %v1892
      %v1894 = vpop.f32.mrb[0].mxu0
      %v1895 = vpop.f32.mrb[0].mxu0
      %v1896 = vadd.f32 %v1840, %v1895
      %v1897 = vpop.f32.mrb[0].mxu0
      %1898 = vmatprep.mubr.bf16.mxu0 %v879
      %1899 = vmatmul.mubr.bf16.gmra.mrb[0].mxu0 %v878
      %v1900 = vpop.f32.mrb[0].mxu0
      %v1901 = vadd.f32 %v1845, %v1900
      %v1902 = vpop.f32.mrb[0].mxu0
      %v1903 = vpop.f32.mrb[0].mxu0
      %v1904 = vpop.f32.mrb[0].mxu0
      %1905 = vdwg.mxu0
      %1906 = vmatprep.subr.bf16.mxu0 0
      %1907 = vmatpush1.bf16.msra.mxu0 %v1435
      %1908 = vmatprep.subr.bf16.mxu0 0
      %1909 = vmatpush1.bf16.msra.mxu0 %v1438
      %1910 = vmatprep.subr.bf16.mxu0 0
      %1911 = vmatpush1.bf16.msra.mxu0 %v1441
      %1912 = vmatprep.subr.bf16.mxu0 0
      %1913 = vmatpush1.bf16.msra.mxu0 %v1444
      %1914 = vmatprep.subr.bf16.mxu0 0
      %1915 = vmatpush1.bf16.msra.mxu0 %v1447
      %1916 = vmatprep.subr.bf16.mxu0 0
      %1917 = vmatpush1.bf16.msra.mxu0 %v1450
      %1918 = vmatprep.subr.bf16.mxu0 0
      %1919 = vmatpush1.bf16.msra.mxu0 %v1453
      %1920 = vmatprep.subr.bf16.mxu0 0
      %1921 = vmatpush1.bf16.msra.mxu0 %v1456
      %1922 = vmatprep.subr.bf16.mxu0 0
      %1923 = vmatpush1.bf16.msra.mxu0 %v1459
      %1924 = vmatprep.subr.bf16.mxu0 0
      %1925 = vmatpush1.bf16.msra.mxu0 %v1462
      %1926 = vmatprep.subr.bf16.mxu0 0
      %1927 = vmatpush1.bf16.msra.mxu0 %v1465
      %1928 = vmatprep.subr.bf16.mxu0 0
      %1929 = vmatpush1.bf16.msra.mxu0 %v1468
      %1930 = vmatprep.subr.bf16.mxu0 0
      %1931 = vmatpush1.bf16.msra.mxu0 0
      %1932 = vmatprep.subr.bf16.mxu0 0
      %1933 = vmatpush1.bf16.msra.mxu0 0
      %1934 = vmatprep.subr.bf16.mxu0 0
      %1935 = vmatpush1.bf16.msra.mxu0 0
      %1936 = vmatprep.subr.bf16.mxu0 0
      %1937 = vmatpush1.bf16.msra.mxu0 0
      %1938 = vmatprep.mubr.bf16.mxu0 %v1603
      %1939 = vmatmul.mubr.bf16.gmra.mrb[0].mxu0 %v868
      %v1940 = vpop.f32.mrb[0].mxu0
      %v1941 = vadd.f32 %v1885, %v1940
      %v1942 = vpop.f32.mrb[0].mxu0
      %v1943 = vpop.f32.mrb[0].mxu0
      %v1944 = vadd.f32 %v1888, %v1943
      %v1945 = vpop.f32.mrb[0].mxu0
      %1946 = vmatprep.mubr.bf16.mxu0 %v1606
      %1947 = vmatmul.mubr.bf16.gmra.mrb[0].mxu0 %v874
      %v1948 = vpop.f32.mrb[0].mxu0
      %v1949 = vadd.f32 %v1893, %v1948
      %v1950 = vpop.f32.mrb[0].mxu0
      %v1951 = vpop.f32.mrb[0].mxu0
      %v1952 = vadd.f32 %v1896, %v1951
      %v1953 = vpop.f32.mrb[0].mxu0
      %1954 = vmatprep.mubr.bf16.mxu0 %v1609
      %1955 = vmatmul.mubr.bf16.gmra.mrb[0].mxu0 %v880
      %v1956 = vpop.f32.mrb[0].mxu0
      %v1957 = vadd.f32 %v1901, %v1956
      %v1958 = vpop.f32.mrb[0].mxu0
      %v1959 = vpop.f32.mrb[0].mxu0
      %v1960 = vpop.f32.mrb[0].mxu0
      %1961 = vdwg.mxu0
      %v1977 = vunpack.c.l.b16 %v433
      %v1978 = vunpack.c.h.b16 %v433
      %v1979 = vunpack.c.l.b16 %v434
      %v1980 = vunpack.c.h.b16 %v434
      %v1981 = vunpack.c.l.b16 %v435
      %v1982 = vunpack.c.h.b16 %v435
      %v1983 = vunpack.c.l.b16 %v436
      %v1984 = vunpack.c.h.b16 %v436
      %v1985 = vunpack.c.l.b16 %v437
      %v1986 = vunpack.c.h.b16 %v437
      %v1987 = vunpack.c.l.b16 %v438
      %v1988 = vunpack.c.h.b16 %v438
      %v1989 = vunpack.c.l.b16 %v439
      %v1990 = vunpack.c.h.b16 %v439
      %v1991 = vunpack.c.l.b16 %v440
      %v1992 = vunpack.c.h.b16 %v440
      %v1993 = vunpack.c.l.b16 %v441
      %v1994 = vunpack.c.h.b16 %v441
      %v1995 = vunpack.c.l.b16 %v442
      %v1996 = vunpack.c.h.b16 %v442
      %v1997 = vunpack.c.l.b16 %v443
      %v1998 = vunpack.c.h.b16 %v443
      %v1999 = vunpack.c.l.b16 %v444
      %v2000 = vunpack.c.h.b16 %v444
      %v2001 = vunpack.c.l.b16 %v445
      %v2002 = vunpack.c.h.b16 %v445
      %v2003 = vunpack.c.l.b16 %v446
      %v2004 = vunpack.c.h.b16 %v446
      %v2005 = vunpack.c.l.b16 %v447
      %v2006 = vunpack.c.h.b16 %v447
      %v2007 = vpack.c.b16 %v1983, %v1977
      %v2008 = vpack.c.b16 %v1984, %v1978
      %v2009 = vpack.c.b16 %v1985, %v1979
      %v2010 = vpack.c.b16 %v1986, %v1980
      %v2011 = vpack.c.b16 %v1987, %v1981
      %v2012 = vpack.c.b16 %v1988, %v1982
      %v2013 = vpack.c.b16 %v1995, %v1989
      %v2014 = vpack.c.b16 %v1996, %v1990
      %v2015 = vpack.c.b16 %v1997, %v1991
      %v2016 = vpack.c.b16 %v1998, %v1992
      %v2017 = vpack.c.b16 %v1999, %v1993
      %v2018 = vpack.c.b16 %v2000, %v1994
      %v2019 = vpack.c.b16 %v2001, %v2001
      %v2020 = vpack.c.b16 %v2002, %v2002
      %v2021 = vpack.c.b16 %v2003, %v2003
      %v2022 = vpack.c.b16 %v2004, %v2004
      %v2023 = vpack.c.b16 %v2005, %v2005
      %v2024 = vpack.c.b16 %v2006, %v2006
      %v2216 = vunpack.c.l.b16 %v466
      %v2217 = vunpack.c.h.b16 %v466
      %v2218 = vunpack.c.l.b16 %v467
      %v2219 = vunpack.c.l.b16 %v468
      %v2220 = vunpack.c.h.b16 %v468
      %v2221 = vunpack.c.l.b16 %v469
      %v2222 = vunpack.c.l.b16 %v470
      %v2223 = vunpack.c.h.b16 %v470
      %v2224 = vunpack.c.l.b16 %v471
      %v2225 = vunpack.c.l.b16 %v472
      %v2226 = vunpack.c.h.b16 %v472
      %v2227 = vunpack.c.l.b16 %v473
      %v2228 = vunpack.c.l.b16 %v474
      %v2229 = vunpack.c.h.b16 %v474
      %v2230 = vunpack.c.l.b16 %v475
      %v2231 = vunpack.c.l.b16 %v476
      %v2232 = vunpack.c.h.b16 %v476
      %v2233 = vunpack.c.l.b16 %v477
      %v2234 = vunpack.c.l.b16 %v478
      %v2235 = vunpack.c.h.b16 %v478
      %v2236 = vunpack.c.l.b16 %v479
      %v2237 = vunpack.c.l.b16 %v480
      %v2238 = vunpack.c.h.b16 %v480
      %v2239 = vunpack.c.l.b16 %v481
      %v2240 = vunpack.c.l.b16 %v482
      %v2241 = vunpack.c.h.b16 %v482
      %v2242 = vunpack.c.l.b16 %v483
      %v2243 = vunpack.c.l.b16 %v484
      %v2244 = vunpack.c.h.b16 %v484
      %v2245 = vunpack.c.l.b16 %v485
      %v2246 = vunpack.c.l.b16 %v486
      %v2247 = vunpack.c.h.b16 %v486
      %v2248 = vunpack.c.l.b16 %v487
      %v2249 = vunpack.c.l.b16 %v488
      %v2250 = vunpack.c.h.b16 %v488
      %v2251 = vunpack.c.l.b16 %v489
      %v2252 = vunpack.c.l.b16 %v490
      %v2253 = vunpack.c.h.b16 %v490
      %v2254 = vunpack.c.l.b16 %v491
      %v2255 = vunpack.c.l.b16 %v492
      %v2256 = vunpack.c.h.b16 %v492
      %v2257 = vunpack.c.l.b16 %v493
      %v2258 = vunpack.c.l.b16 %v494
      %v2259 = vunpack.c.h.b16 %v494
      %v2260 = vunpack.c.l.b16 %v495
      %v2261 = vunpack.c.l.b16 %v496
      %v2262 = vunpack.c.h.b16 %v496
      %v2263 = vunpack.c.l.b16 %v497
      %v2264 = vunpack.c.l.b16 %v498
      %v2265 = vunpack.c.h.b16 %v498
      %v2266 = vunpack.c.l.b16 %v499
      %v2267 = vunpack.c.l.b16 %v500
      %v2268 = vunpack.c.h.b16 %v500
      %v2269 = vunpack.c.l.b16 %v501
      %v2270 = vunpack.c.l.b16 %v502
      %v2271 = vunpack.c.h.b16 %v502
      %v2272 = vunpack.c.l.b16 %v503
      %v2273 = vunpack.c.l.b16 %v504
      %v2274 = vunpack.c.h.b16 %v504
      %v2275 = vunpack.c.l.b16 %v505
      %v2276 = vunpack.c.l.b16 %v506
      %v2277 = vunpack.c.h.b16 %v506
      %v2278 = vunpack.c.l.b16 %v507
      %v2279 = vunpack.c.l.b16 %v508
      %v2280 = vunpack.c.h.b16 %v508
      %v2281 = vunpack.c.l.b16 %v509
      %v2282 = vunpack.c.l.b16 %v510
      %v2283 = vunpack.c.h.b16 %v510
      %v2284 = vunpack.c.l.b16 %v511
      %v2285 = vunpack.c.l.b16 %v512
      %v2286 = vunpack.c.h.b16 %v512
      %v2287 = vunpack.c.l.b16 %v513
      %v2288 = vunpack.c.l.b16 %v514
      %v2289 = vunpack.c.h.b16 %v514
      %v2290 = vunpack.c.l.b16 %v515
      %v2291 = vunpack.c.l.b16 %v516
      %v2292 = vunpack.c.h.b16 %v516
      %v2293 = vunpack.c.l.b16 %v517
      %v2294 = vunpack.c.l.b16 %v518
      %v2295 = vunpack.c.h.b16 %v518
      %v2296 = vunpack.c.l.b16 %v519
      %v2297 = vunpack.c.l.b16 %v520
      %v2298 = vunpack.c.h.b16 %v520
      %v2299 = vunpack.c.l.b16 %v521
      %v2300 = vunpack.c.l.b16 %v522
      %v2301 = vunpack.c.h.b16 %v522
      %v2302 = vunpack.c.l.b16 %v523
      %v2303 = vunpack.c.l.b16 %v524
      %v2304 = vunpack.c.h.b16 %v524
      %v2305 = vunpack.c.l.b16 %v525
      %v2306 = vunpack.c.l.b16 %v526
      %v2307 = vunpack.c.h.b16 %v526
      %v2308 = vunpack.c.l.b16 %v527
      %v2309 = vunpack.c.l.b16 %v528
      %v2310 = vunpack.c.h.b16 %v528
      %v2311 = vunpack.c.l.b16 %v529
      %v2312 = vunpack.c.l.b16 %v530
      %v2313 = vunpack.c.h.b16 %v530
      %v2314 = vunpack.c.l.b16 %v531
      %v2315 = vunpack.c.l.b16 %v532
      %v2316 = vunpack.c.h.b16 %v532
      %v2317 = vunpack.c.l.b16 %v533
      %v2318 = vunpack.c.l.b16 %v534
      %v2319 = vunpack.c.h.b16 %v534
      %v2320 = vunpack.c.l.b16 %v535
      %v2321 = vunpack.c.l.b16 %v536
      %v2322 = vunpack.c.h.b16 %v536
      %v2323 = vunpack.c.l.b16 %v537
      %v2324 = vunpack.c.l.b16 %v538
      %v2325 = vunpack.c.h.b16 %v538
      %v2326 = vunpack.c.l.b16 %v539
      %v2327 = vunpack.c.l.b16 %v540
      %v2328 = vunpack.c.h.b16 %v540
      %v2329 = vunpack.c.l.b16 %v541
      %v2330 = vunpack.c.l.b16 %v542
      %v2331 = vunpack.c.h.b16 %v542
      %v2332 = vunpack.c.l.b16 %v543
      %v2333 = vunpack.c.l.b16 %v544
      %v2334 = vunpack.c.h.b16 %v544
      %v2335 = vunpack.c.l.b16 %v545
      %v2336 = vunpack.c.l.b16 %v546
      %v2337 = vunpack.c.h.b16 %v546
      %v2338 = vunpack.c.l.b16 %v547
      %v2339 = vunpack.c.l.b16 %v548
      %v2340 = vunpack.c.h.b16 %v548
      %v2341 = vunpack.c.l.b16 %v549
      %v2342 = vunpack.c.l.b16 %v550
      %v2343 = vunpack.c.h.b16 %v550
      %v2344 = vunpack.c.l.b16 %v551
      %v2345 = vunpack.c.l.b16 %v552
      %v2346 = vunpack.c.h.b16 %v552
      %v2347 = vunpack.c.l.b16 %v553
      %v2348 = vunpack.c.l.b16 %v554
      %v2349 = vunpack.c.h.b16 %v554
      %v2350 = vunpack.c.l.b16 %v555
      %v2351 = vunpack.c.l.b16 %v556
      %v2352 = vunpack.c.h.b16 %v556
      %v2353 = vunpack.c.l.b16 %v557
      %v2354 = vunpack.c.l.b16 %v558
      %v2355 = vunpack.c.h.b16 %v558
      %v2356 = vunpack.c.l.b16 %v559
      %v2357 = vunpack.c.l.b16 %v560
      %v2358 = vunpack.c.h.b16 %v560
      %v2359 = vunpack.c.l.b16 %v561
      %v2360 = vunpack.c.l.b16 %v562
      %v2361 = vunpack.c.h.b16 %v562
      %v2362 = vunpack.c.l.b16 %v563
      %v2363 = vunpack.c.l.b16 %v564
      %v2364 = vunpack.c.h.b16 %v564
      %v2365 = vunpack.c.l.b16 %v565
      %v2366 = vunpack.c.l.b16 %v566
      %v2367 = vunpack.c.h.b16 %v566
      %v2368 = vunpack.c.l.b16 %v567
      %v2369 = vunpack.c.l.b16 %v568
      %v2370 = vunpack.c.h.b16 %v568
      %v2371 = vunpack.c.l.b16 %v569
      %v2372 = vunpack.c.l.b16 %v570
      %v2373 = vunpack.c.h.b16 %v570
      %v2374 = vunpack.c.l.b16 %v571
      %v2375 = vunpack.c.l.b16 %v572
      %v2376 = vunpack.c.h.b16 %v572
      %v2377 = vunpack.c.l.b16 %v573
      %v2378 = vunpack.c.l.b16 %v574
      %v2379 = vunpack.c.h.b16 %v574
      %v2380 = vunpack.c.l.b16 %v575
      %v2381 = vunpack.c.l.b16 %v576
      %v2382 = vunpack.c.h.b16 %v576
      %v2383 = vunpack.c.l.b16 %v577
      %v2384 = vunpack.c.l.b16 %v578
      %v2385 = vunpack.c.h.b16 %v578
      %v2386 = vunpack.c.l.b16 %v579
      %v2387 = vunpack.c.l.b16 %v580
      %v2388 = vunpack.c.h.b16 %v580
      %v2389 = vunpack.c.l.b16 %v581
      %v2390 = vunpack.c.l.b16 %v582
      %v2391 = vunpack.c.h.b16 %v582
      %v2392 = vunpack.c.l.b16 %v583
      %v2393 = vunpack.c.l.b16 %v584
      %v2394 = vunpack.c.h.b16 %v584
      %v2395 = vunpack.c.l.b16 %v585
      %v2396 = vunpack.c.l.b16 %v586
      %v2397 = vunpack.c.h.b16 %v586
      %v2398 = vunpack.c.l.b16 %v587
      %v2399 = vunpack.c.l.b16 %v588
      %v2400 = vunpack.c.h.b16 %v588
      %v2401 = vunpack.c.l.b16 %v589
      %v2402 = vunpack.c.l.b16 %v590
      %v2403 = vunpack.c.h.b16 %v590
      %v2404 = vunpack.c.l.b16 %v591
      %v2405 = vunpack.c.l.b16 %v592
      %v2406 = vunpack.c.h.b16 %v592
      %v2407 = vunpack.c.l.b16 %v593
      %v2408 = vunpack.c.l.b16 %v594
      %v2409 = vunpack.c.h.b16 %v594
      %v2410 = vunpack.c.l.b16 %v595
      %v2411 = vunpack.c.l.b16 %v596
      %v2412 = vunpack.c.h.b16 %v596
      %v2413 = vunpack.c.l.b16 %v597
      %v2414 = vunpack.c.l.b16 %v598
      %v2415 = vunpack.c.h.b16 %v598
      %v2416 = vunpack.c.l.b16 %v599
      %v2417 = vunpack.c.l.b16 %v600
      %v2418 = vunpack.c.h.b16 %v600
      %v2419 = vunpack.c.l.b16 %v601
      %v2420 = vunpack.c.l.b16 %v602
      %v2421 = vunpack.c.h.b16 %v602
      %v2422 = vunpack.c.l.b16 %v603
      %v2423 = vunpack.c.l.b16 %v604
      %v2424 = vunpack.c.h.b16 %v604
      %v2425 = vunpack.c.l.b16 %v605
      %v2426 = vunpack.c.l.b16 %v606
      %v2427 = vunpack.c.h.b16 %v606
      %v2428 = vunpack.c.l.b16 %v607
      %v2429 = vunpack.c.l.b16 %v608
      %v2430 = vunpack.c.h.b16 %v608
      %v2431 = vunpack.c.l.b16 %v609
      %v2432 = vunpack.c.l.b16 %v610
      %v2433 = vunpack.c.h.b16 %v610
      %v2434 = vunpack.c.l.b16 %v611
      %v2435 = vunpack.c.l.b16 %v612
      %v2436 = vunpack.c.h.b16 %v612
      %v2437 = vunpack.c.l.b16 %v613
      %v2438 = vunpack.c.l.b16 %v614
      %v2439 = vunpack.c.h.b16 %v614
      %v2440 = vunpack.c.l.b16 %v615
      %v2441 = vunpack.c.l.b16 %v616
      %v2442 = vunpack.c.h.b16 %v616
      %v2443 = vunpack.c.l.b16 %v617
      %v2444 = vunpack.c.l.b16 %v618
      %v2445 = vunpack.c.h.b16 %v618
      %v2446 = vunpack.c.l.b16 %v619
      %v2447 = vunpack.c.l.b16 %v620
      %v2448 = vunpack.c.h.b16 %v620
      %v2449 = vunpack.c.l.b16 %v621
      %v2450 = vunpack.c.l.b16 %v622
      %v2451 = vunpack.c.h.b16 %v622
      %v2452 = vunpack.c.l.b16 %v623
      %v2453 = vunpack.c.l.b16 %v624
      %v2454 = vunpack.c.h.b16 %v624
      %v2455 = vunpack.c.l.b16 %v625
      %v2456 = vunpack.c.l.b16 %v626
      %v2457 = vunpack.c.h.b16 %v626
      %v2458 = vunpack.c.l.b16 %v627
      %v2459 = vunpack.c.l.b16 %v628
      %v2460 = vunpack.c.h.b16 %v628
      %v2461 = vunpack.c.l.b16 %v629
      %v2462 = vunpack.c.l.b16 %v630
      %v2463 = vunpack.c.h.b16 %v630
      %v2464 = vunpack.c.l.b16 %v631
      %v2465 = vunpack.c.l.b16 %v632
      %v2466 = vunpack.c.h.b16 %v632
      %v2467 = vunpack.c.l.b16 %v633
      %v2468 = vunpack.c.l.b16 %v634
      %v2469 = vunpack.c.h.b16 %v634
      %v2470 = vunpack.c.l.b16 %v635
      %v2471 = vunpack.c.l.b16 %v636
      %v2472 = vunpack.c.h.b16 %v636
      %v2473 = vunpack.c.l.b16 %v637
      %v2474 = vunpack.c.l.b16 %v638
      %v2475 = vunpack.c.h.b16 %v638
      %v2476 = vunpack.c.l.b16 %v639
      %v2477 = vunpack.c.l.b16 %v640
      %v2478 = vunpack.c.h.b16 %v640
      %v2479 = vunpack.c.l.b16 %v641
      %v2480 = vpack.c.b16 %v2219, %v2216
      %v2481 = vpack.c.b16 %v2220, %v2217
      %v2482 = vpack.c.b16 %v2221, %v2218
      %v2483 = vpack.c.b16 %v2225, %v2222
      %v2484 = vpack.c.b16 %v2226, %v2223
      %v2485 = vpack.c.b16 %v2227, %v2224
      %v2486 = vpack.c.b16 %v2231, %v2228
      %v2487 = vpack.c.b16 %v2232, %v2229
      %v2488 = vpack.c.b16 %v2233, %v2230
      %v2489 = vpack.c.b16 %v2237, %v2234
      %v2490 = vpack.c.b16 %v2238, %v2235
      %v2491 = vpack.c.b16 %v2239, %v2236
      %v2492 = vpack.c.b16 %v2243, %v2240
      %v2493 = vpack.c.b16 %v2244, %v2241
      %v2494 = vpack.c.b16 %v2245, %v2242
      %v2495 = vpack.c.b16 %v2249, %v2246
      %v2496 = vpack.c.b16 %v2250, %v2247
      %v2497 = vpack.c.b16 %v2251, %v2248
      %v2498 = vpack.c.b16 %v2255, %v2252
      %v2499 = vpack.c.b16 %v2256, %v2253
      %v2500 = vpack.c.b16 %v2257, %v2254
      %v2501 = vpack.c.b16 %v2261, %v2258
      %v2502 = vpack.c.b16 %v2262, %v2259
      %v2503 = vpack.c.b16 %v2263, %v2260
      %v2504 = vpack.c.b16 %v2267, %v2264
      %v2505 = vpack.c.b16 %v2268, %v2265
      %v2506 = vpack.c.b16 %v2269, %v2266
      %v2507 = vpack.c.b16 %v2273, %v2270
      %v2508 = vpack.c.b16 %v2274, %v2271
      %v2509 = vpack.c.b16 %v2275, %v2272
      %v2510 = vpack.c.b16 %v2279, %v2276
      %v2511 = vpack.c.b16 %v2280, %v2277
      %v2512 = vpack.c.b16 %v2281, %v2278
      %v2513 = vpack.c.b16 %v2285, %v2282
      %v2514 = vpack.c.b16 %v2286, %v2283
      %v2515 = vpack.c.b16 %v2287, %v2284
      %v2516 = vpack.c.b16 %v2291, %v2288
      %v2517 = vpack.c.b16 %v2292, %v2289
      %v2518 = vpack.c.b16 %v2293, %v2290
      %v2519 = vpack.c.b16 %v2297, %v2294
      %v2520 = vpack.c.b16 %v2298, %v2295
      %v2521 = vpack.c.b16 %v2299, %v2296
      %v2522 = vpack.c.b16 %v2303, %v2300
      %v2523 = vpack.c.b16 %v2304, %v2301
      %v2524 = vpack.c.b16 %v2305, %v2302
      %v2525 = vpack.c.b16 %v2309, %v2306
      %v2526 = vpack.c.b16 %v2310, %v2307
      %v2527 = vpack.c.b16 %v2311, %v2308
      %v2528 = vpack.c.b16 %v2315, %v2312
      %v2529 = vpack.c.b16 %v2316, %v2313
      %v2530 = vpack.c.b16 %v2317, %v2314
      %v2531 = vpack.c.b16 %v2321, %v2318
      %v2532 = vpack.c.b16 %v2322, %v2319
      %v2533 = vpack.c.b16 %v2323, %v2320
      %v2534 = vpack.c.b16 %v2327, %v2324
      %v2535 = vpack.c.b16 %v2328, %v2325
      %v2536 = vpack.c.b16 %v2329, %v2326
      %v2537 = vpack.c.b16 %v2333, %v2330
      %v2538 = vpack.c.b16 %v2334, %v2331
      %v2539 = vpack.c.b16 %v2335, %v2332
      %v2540 = vpack.c.b16 %v2339, %v2336
      %v2541 = vpack.c.b16 %v2340, %v2337
      %v2542 = vpack.c.b16 %v2341, %v2338
      %v2543 = vpack.c.b16 %v2345, %v2342
      %v2544 = vpack.c.b16 %v2346, %v2343
      %v2545 = vpack.c.b16 %v2347, %v2344
      %v2546 = vpack.c.b16 %v2351, %v2348
      %v2547 = vpack.c.b16 %v2352, %v2349
      %v2548 = vpack.c.b16 %v2353, %v2350
      %v2549 = vpack.c.b16 %v2357, %v2354
      %v2550 = vpack.c.b16 %v2358, %v2355
      %v2551 = vpack.c.b16 %v2359, %v2356
      %v2552 = vpack.c.b16 %v2363, %v2360
      %v2553 = vpack.c.b16 %v2364, %v2361
      %v2554 = vpack.c.b16 %v2365, %v2362
      %v2555 = vpack.c.b16 %v2369, %v2366
      %v2556 = vpack.c.b16 %v2370, %v2367
      %v2557 = vpack.c.b16 %v2371, %v2368
      %v2558 = vpack.c.b16 %v2375, %v2372
      %v2559 = vpack.c.b16 %v2376, %v2373
      %v2560 = vpack.c.b16 %v2377, %v2374
      %v2561 = vpack.c.b16 %v2381, %v2378
      %v2562 = vpack.c.b16 %v2382, %v2379
      %v2563 = vpack.c.b16 %v2383, %v2380
      %v2564 = vpack.c.b16 %v2387, %v2384
      %v2565 = vpack.c.b16 %v2388, %v2385
      %v2566 = vpack.c.b16 %v2389, %v2386
      %v2567 = vpack.c.b16 %v2393, %v2390
      %v2568 = vpack.c.b16 %v2394, %v2391
      %v2569 = vpack.c.b16 %v2395, %v2392
      %v2570 = vpack.c.b16 %v2399, %v2396
      %v2571 = vpack.c.b16 %v2400, %v2397
      %v2572 = vpack.c.b16 %v2401, %v2398
      %v2573 = vpack.c.b16 %v2405, %v2402
      %v2574 = vpack.c.b16 %v2406, %v2403
      %v2575 = vpack.c.b16 %v2407, %v2404
      %v2576 = vpack.c.b16 %v2411, %v2408
      %v2577 = vpack.c.b16 %v2412, %v2409
      %v2578 = vpack.c.b16 %v2413, %v2410
      %v2579 = vpack.c.b16 %v2417, %v2414
      %v2580 = vpack.c.b16 %v2418, %v2415
      %v2581 = vpack.c.b16 %v2419, %v2416
      %v2582 = vpack.c.b16 %v2423, %v2420
      %v2583 = vpack.c.b16 %v2424, %v2421
      %v2584 = vpack.c.b16 %v2425, %v2422
      %v2585 = vpack.c.b16 %v2429, %v2426
      %v2586 = vpack.c.b16 %v2430, %v2427
      %v2587 = vpack.c.b16 %v2431, %v2428
      %v2588 = vpack.c.b16 %v2435, %v2432
      %v2589 = vpack.c.b16 %v2436, %v2433
      %v2590 = vpack.c.b16 %v2437, %v2434
      %v2591 = vpack.c.b16 %v2441, %v2438
      %v2592 = vpack.c.b16 %v2442, %v2439
      %v2593 = vpack.c.b16 %v2443, %v2440
      %v2594 = vpack.c.b16 %v2447, %v2444
      %v2595 = vpack.c.b16 %v2448, %v2445
      %v2596 = vpack.c.b16 %v2449, %v2446
      %v2597 = vpack.c.b16 %v2453, %v2450
      %v2598 = vpack.c.b16 %v2454, %v2451
      %v2599 = vpack.c.b16 %v2455, %v2452
      %v2600 = vpack.c.b16 %v2459, %v2456
      %v2601 = vpack.c.b16 %v2460, %v2457
      %v2602 = vpack.c.b16 %v2461, %v2458
      %v2603 = vpack.c.b16 %v2465, %v2462
      %v2604 = vpack.c.b16 %v2466, %v2463
      %v2605 = vpack.c.b16 %v2467, %v2464
      %v2606 = vpack.c.b16 %v2471, %v2468
      %v2607 = vpack.c.b16 %v2472, %v2469
      %v2608 = vpack.c.b16 %v2473, %v2470
      %v2609 = vpack.c.b16 %v2477, %v2474
      %v2610 = vpack.c.b16 %v2478, %v2475
      %v2611 = vpack.c.b16 %v2479, %v2476
      %v2745 = vsel %vm1601, %v2012, 0
      %v2748 = vsel %vm1601, %v2018, 0
      %v2751 = vsel %vm1601, %v2024, 0
      %2753 = vmatprep.subr.bf16.mxu0 %v2481
      %2754 = vmatpush1.bf16.msra.mxu0 %v2480
      %2755 = vmatprep.subr.bf16.mxu0 %v2484
      %2756 = vmatpush1.bf16.msra.mxu0 %v2483
      %2757 = vmatprep.subr.bf16.mxu0 %v2487
      %2758 = vmatpush1.bf16.msra.mxu0 %v2486
      %2759 = vmatprep.subr.bf16.mxu0 %v2490
      %2760 = vmatpush1.bf16.msra.mxu0 %v2489
      %2761 = vmatprep.subr.bf16.mxu0 %v2493
      %2762 = vmatpush1.bf16.msra.mxu0 %v2492
      %2763 = vmatprep.subr.bf16.mxu0 %v2496
      %2764 = vmatpush1.bf16.msra.mxu0 %v2495
      %2765 = vmatprep.subr.bf16.mxu0 %v2499
      %2766 = vmatpush1.bf16.msra.mxu0 %v2498
      %2767 = vmatprep.subr.bf16.mxu0 %v2502
      %2768 = vmatpush1.bf16.msra.mxu0 %v2501
      %2769 = vmatprep.subr.bf16.mxu0 %v2505
      %2770 = vmatpush1.bf16.msra.mxu0 %v2504
      %2771 = vmatprep.subr.bf16.mxu0 %v2508
      %2772 = vmatpush1.bf16.msra.mxu0 %v2507
      %2773 = vmatprep.subr.bf16.mxu0 %v2511
      %2774 = vmatpush1.bf16.msra.mxu0 %v2510
      %2775 = vmatprep.subr.bf16.mxu0 %v2514
      %2776 = vmatpush1.bf16.msra.mxu0 %v2513
      %2777 = vmatprep.subr.bf16.mxu0 %v2517
      %2778 = vmatpush1.bf16.msra.mxu0 %v2516
      %2779 = vmatprep.subr.bf16.mxu0 %v2520
      %2780 = vmatpush1.bf16.msra.mxu0 %v2519
      %2781 = vmatprep.subr.bf16.mxu0 %v2523
      %2782 = vmatpush1.bf16.msra.mxu0 %v2522
      %2783 = vmatprep.subr.bf16.mxu0 %v2526
      %2784 = vmatpush1.bf16.msra.mxu0 %v2525
      %2785 = vmatprep.mubr.bf16.mxu0 %v2008
      %2786 = vmatmul.mubr.bf16.gmra.mrb[0].mxu0 %v2007
      %v2787 = vpop.f32.mrb[0].mxu0
      %v2788 = vadd.f32 %v1768, %v2787
      %v2789 = vpop.f32.mrb[0].mxu0
      %v2790 = vadd.f32 %v1770, %v2789
      %v2791 = vpop.f32.mrb[0].mxu0
      %v2792 = vadd.f32 %v1772, %v2791
      %v2793 = vpop.f32.mrb[0].mxu0
      %v2794 = vadd.f32 %v1774, %v2793
      %2795 = vmatprep.mubr.bf16.mxu0 %v2014
      %2796 = vmatmul.mubr.bf16.gmra.mrb[0].mxu0 %v2013
      %v2797 = vpop.f32.mrb[0].mxu0
      %v2798 = vadd.f32 %v1778, %v2797
      %v2799 = vpop.f32.mrb[0].mxu0
      %v2800 = vadd.f32 %v1780, %v2799
      %v2801 = vpop.f32.mrb[0].mxu0
      %v2802 = vadd.f32 %v1782, %v2801
      %v2803 = vpop.f32.mrb[0].mxu0
      %v2804 = vadd.f32 %v1784, %v2803
      %2805 = vmatprep.mubr.bf16.mxu0 %v2020
      %2806 = vmatmul.mubr.bf16.gmra.mrb[0].mxu0 %v2019
      %v2807 = vpop.f32.mrb[0].mxu0
      %v2808 = vadd.f32 %v1788, %v2807
      %v2809 = vpop.f32.mrb[0].mxu0
      %v2810 = vadd.f32 %v1790, %v2809
      %v2811 = vpop.f32.mrb[0].mxu0
      %v2812 = vpop.f32.mrb[0].mxu0
      %2813 = vdwg.mxu0
      %2814 = vmatprep.subr.bf16.mxu0 %v2529
      %2815 = vmatpush1.bf16.msra.mxu0 %v2528
      %2816 = vmatprep.subr.bf16.mxu0 %v2532
      %2817 = vmatpush1.bf16.msra.mxu0 %v2531
      %2818 = vmatprep.subr.bf16.mxu0 %v2535
      %2819 = vmatpush1.bf16.msra.mxu0 %v2534
      %2820 = vmatprep.subr.bf16.mxu0 %v2538
      %2821 = vmatpush1.bf16.msra.mxu0 %v2537
      %2822 = vmatprep.subr.bf16.mxu0 %v2541
      %2823 = vmatpush1.bf16.msra.mxu0 %v2540
      %2824 = vmatprep.subr.bf16.mxu0 %v2544
      %2825 = vmatpush1.bf16.msra.mxu0 %v2543
      %2826 = vmatprep.subr.bf16.mxu0 %v2547
      %2827 = vmatpush1.bf16.msra.mxu0 %v2546
      %2828 = vmatprep.subr.bf16.mxu0 %v2550
      %2829 = vmatpush1.bf16.msra.mxu0 %v2549
      %2830 = vmatprep.subr.bf16.mxu0 %v2553
      %2831 = vmatpush1.bf16.msra.mxu0 %v2552
      %2832 = vmatprep.subr.bf16.mxu0 %v2556
      %2833 = vmatpush1.bf16.msra.mxu0 %v2555
      %2834 = vmatprep.subr.bf16.mxu0 %v2559
      %2835 = vmatpush1.bf16.msra.mxu0 %v2558
      %2836 = vmatprep.subr.bf16.mxu0 %v2562
      %2837 = vmatpush1.bf16.msra.mxu0 %v2561
      %2838 = vmatprep.subr.bf16.mxu0 %v2565
      %2839 = vmatpush1.bf16.msra.mxu0 %v2564
      %2840 = vmatprep.subr.bf16.mxu0 %v2568
      %2841 = vmatpush1.bf16.msra.mxu0 %v2567
      %2842 = vmatprep.subr.bf16.mxu0 %v2571
      %2843 = vmatpush1.bf16.msra.mxu0 %v2570
      %2844 = vmatprep.subr.bf16.mxu0 %v2574
      %2845 = vmatpush1.bf16.msra.mxu0 %v2573
      %2846 = vmatprep.mubr.bf16.mxu0 %v2010
      %2847 = vmatmul.mubr.bf16.gmra.mrb[0].mxu0 %v2009
      %v2848 = vpop.f32.mrb[0].mxu0
      %v2849 = vadd.f32 %v2788, %v2848
      %v2850 = vpop.f32.mrb[0].mxu0
      %v2851 = vadd.f32 %v2790, %v2850
      %v2852 = vpop.f32.mrb[0].mxu0
      %v2853 = vadd.f32 %v2792, %v2852
      %v2854 = vpop.f32.mrb[0].mxu0
      %v2855 = vadd.f32 %v2794, %v2854
      %2856 = vmatprep.mubr.bf16.mxu0 %v2016
      %2857 = vmatmul.mubr.bf16.gmra.mrb[0].mxu0 %v2015
      %v2858 = vpop.f32.mrb[0].mxu0
      %v2859 = vadd.f32 %v2798, %v2858
      %v2860 = vpop.f32.mrb[0].mxu0
      %v2861 = vadd.f32 %v2800, %v2860
      %v2862 = vpop.f32.mrb[0].mxu0
      %v2863 = vadd.f32 %v2802, %v2862
      %v2864 = vpop.f32.mrb[0].mxu0
      %v2865 = vadd.f32 %v2804, %v2864
      %2866 = vmatprep.mubr.bf16.mxu0 %v2022
      %2867 = vmatmul.mubr.bf16.gmra.mrb[0].mxu0 %v2021
      %v2868 = vpop.f32.mrb[0].mxu0
      %v2869 = vadd.f32 %v2808, %v2868
      %v2870 = vpop.f32.mrb[0].mxu0
      %v2871 = vadd.f32 %v2810, %v2870
      %v2872 = vpop.f32.mrb[0].mxu0
      %v2873 = vpop.f32.mrb[0].mxu0
      %2874 = vdwg.mxu0
      %2875 = vmatprep.subr.bf16.mxu0 %v2577
      %2876 = vmatpush1.bf16.msra.mxu0 %v2576
      %2877 = vmatprep.subr.bf16.mxu0 %v2580
      %2878 = vmatpush1.bf16.msra.mxu0 %v2579
      %2879 = vmatprep.subr.bf16.mxu0 %v2583
      %2880 = vmatpush1.bf16.msra.mxu0 %v2582
      %2881 = vmatprep.subr.bf16.mxu0 %v2586
      %2882 = vmatpush1.bf16.msra.mxu0 %v2585
      %2883 = vmatprep.subr.bf16.mxu0 %v2589
      %2884 = vmatpush1.bf16.msra.mxu0 %v2588
      %2885 = vmatprep.subr.bf16.mxu0 %v2592
      %2886 = vmatpush1.bf16.msra.mxu0 %v2591
      %2887 = vmatprep.subr.bf16.mxu0 %v2595
      %2888 = vmatpush1.bf16.msra.mxu0 %v2594
      %2889 = vmatprep.subr.bf16.mxu0 %v2598
      %2890 = vmatpush1.bf16.msra.mxu0 %v2597
      %2891 = vmatprep.subr.bf16.mxu0 %v2601
      %2892 = vmatpush1.bf16.msra.mxu0 %v2600
      %2893 = vmatprep.subr.bf16.mxu0 %v2604
      %2894 = vmatpush1.bf16.msra.mxu0 %v2603
      %2895 = vmatprep.subr.bf16.mxu0 %v2607
      %2896 = vmatpush1.bf16.msra.mxu0 %v2606
      %2897 = vmatprep.subr.bf16.mxu0 %v2610
      %2898 = vmatpush1.bf16.msra.mxu0 %v2609
      %2899 = vmatprep.subr.bf16.mxu0 0
      %2900 = vmatpush1.bf16.msra.mxu0 0
      %2901 = vmatprep.subr.bf16.mxu0 0
      %2902 = vmatpush1.bf16.msra.mxu0 0
      %2903 = vmatprep.subr.bf16.mxu0 0
      %2904 = vmatpush1.bf16.msra.mxu0 0
      %2905 = vmatprep.subr.bf16.mxu0 0
      %2906 = vmatpush1.bf16.msra.mxu0 0
      %2907 = vmatprep.mubr.bf16.mxu0 %v2745
      %2908 = vmatmul.mubr.bf16.gmra.mrb[0].mxu0 %v2011
      %v2909 = vpop.f32.mrb[0].mxu0
      %v2910 = vadd.f32 %v2849, %v2909
      %v2911 = vpop.f32.mrb[0].mxu0
      %v2912 = vadd.f32 %v2851, %v2911
      %v2913 = vpop.f32.mrb[0].mxu0
      %v2914 = vadd.f32 %v2853, %v2913
      %v2915 = vpop.f32.mrb[0].mxu0
      %v2916 = vadd.f32 %v2855, %v2915
      %2917 = vmatprep.mubr.bf16.mxu0 %v2748
      %2918 = vmatmul.mubr.bf16.gmra.mrb[0].mxu0 %v2017
      %v2919 = vpop.f32.mrb[0].mxu0
      %v2920 = vadd.f32 %v2859, %v2919
      %v2921 = vpop.f32.mrb[0].mxu0
      %v2922 = vadd.f32 %v2861, %v2921
      %v2923 = vpop.f32.mrb[0].mxu0
      %v2924 = vadd.f32 %v2863, %v2923
      %v2925 = vpop.f32.mrb[0].mxu0
      %v2926 = vadd.f32 %v2865, %v2925
      %2927 = vmatprep.mubr.bf16.mxu0 %v2751
      %2928 = vmatmul.mubr.bf16.gmra.mrb[0].mxu0 %v2023
      %v2929 = vpop.f32.mrb[0].mxu0
      %v2930 = vadd.f32 %v2869, %v2929
      %v2931 = vpop.f32.mrb[0].mxu0
      %v2932 = vadd.f32 %v2871, %v2931
      %v2933 = vpop.f32.mrb[0].mxu0
      %v2934 = vpop.f32.mrb[0].mxu0
      %2935 = vdwg.mxu0
      %2936 = vmatprep.subr.bf16.mxu0 0
      %2937 = vmatpush1.bf16.msra.mxu0 %v2482
      %2938 = vmatprep.subr.bf16.mxu0 0
      %2939 = vmatpush1.bf16.msra.mxu0 %v2485
      %2940 = vmatprep.subr.bf16.mxu0 0
      %2941 = vmatpush1.bf16.msra.mxu0 %v2488
      %2942 = vmatprep.subr.bf16.mxu0 0
      %2943 = vmatpush1.bf16.msra.mxu0 %v2491
      %2944 = vmatprep.subr.bf16.mxu0 0
      %2945 = vmatpush1.bf16.msra.mxu0 %v2494
      %2946 = vmatprep.subr.bf16.mxu0 0
      %2947 = vmatpush1.bf16.msra.mxu0 %v2497
      %2948 = vmatprep.subr.bf16.mxu0 0
      %2949 = vmatpush1.bf16.msra.mxu0 %v2500
      %2950 = vmatprep.subr.bf16.mxu0 0
      %2951 = vmatpush1.bf16.msra.mxu0 %v2503
      %2952 = vmatprep.subr.bf16.mxu0 0
      %2953 = vmatpush1.bf16.msra.mxu0 %v2506
      %2954 = vmatprep.subr.bf16.mxu0 0
      %2955 = vmatpush1.bf16.msra.mxu0 %v2509
      %2956 = vmatprep.subr.bf16.mxu0 0
      %2957 = vmatpush1.bf16.msra.mxu0 %v2512
      %2958 = vmatprep.subr.bf16.mxu0 0
      %2959 = vmatpush1.bf16.msra.mxu0 %v2515
      %2960 = vmatprep.subr.bf16.mxu0 0
      %2961 = vmatpush1.bf16.msra.mxu0 %v2518
      %2962 = vmatprep.subr.bf16.mxu0 0
      %2963 = vmatpush1.bf16.msra.mxu0 %v2521
      %2964 = vmatprep.subr.bf16.mxu0 0
      %2965 = vmatpush1.bf16.msra.mxu0 %v2524
      %2966 = vmatprep.subr.bf16.mxu0 0
      %2967 = vmatpush1.bf16.msra.mxu0 %v2527
      %2968 = vmatprep.mubr.bf16.mxu0 %v2008
      %2969 = vmatmul.mubr.bf16.gmra.mrb[0].mxu0 %v2007
      %v2970 = vpop.f32.mrb[0].mxu0
      %v2971 = vadd.f32 %v1941, %v2970
      %v2972 = vpop.f32.mrb[0].mxu0
      %v2973 = vpop.f32.mrb[0].mxu0
      %v2974 = vadd.f32 %v1944, %v2973
      %v2975 = vpop.f32.mrb[0].mxu0
      %2976 = vmatprep.mubr.bf16.mxu0 %v2014
      %2977 = vmatmul.mubr.bf16.gmra.mrb[0].mxu0 %v2013
      %v2978 = vpop.f32.mrb[0].mxu0
      %v2979 = vadd.f32 %v1949, %v2978
      %v2980 = vpop.f32.mrb[0].mxu0
      %v2981 = vpop.f32.mrb[0].mxu0
      %v2982 = vadd.f32 %v1952, %v2981
      %v2983 = vpop.f32.mrb[0].mxu0
      %2984 = vmatprep.mubr.bf16.mxu0 %v2020
      %2985 = vmatmul.mubr.bf16.gmra.mrb[0].mxu0 %v2019
      %v2986 = vpop.f32.mrb[0].mxu0
      %v2987 = vadd.f32 %v1957, %v2986
      %v2988 = vpop.f32.mrb[0].mxu0
      %v2989 = vpop.f32.mrb[0].mxu0
      %v2990 = vpop.f32.mrb[0].mxu0
      %2991 = vdwg.mxu0
      %2992 = vmatprep.subr.bf16.mxu0 0
      %2993 = vmatpush1.bf16.msra.mxu0 %v2530
      %2994 = vmatprep.subr.bf16.mxu0 0
      %2995 = vmatpush1.bf16.msra.mxu0 %v2533
      %2996 = vmatprep.subr.bf16.mxu0 0
      %2997 = vmatpush1.bf16.msra.mxu0 %v2536
      %2998 = vmatprep.subr.bf16.mxu0 0
      %2999 = vmatpush1.bf16.msra.mxu0 %v2539
      %3000 = vmatprep.subr.bf16.mxu0 0
      %3001 = vmatpush1.bf16.msra.mxu0 %v2542
      %3002 = vmatprep.subr.bf16.mxu0 0
      %3003 = vmatpush1.bf16.msra.mxu0 %v2545
      %3004 = vmatprep.subr.bf16.mxu0 0
      %3005 = vmatpush1.bf16.msra.mxu0 %v2548
      %3006 = vmatprep.subr.bf16.mxu0 0
      %3007 = vmatpush1.bf16.msra.mxu0 %v2551
      %3008 = vmatprep.subr.bf16.mxu0 0
      %3009 = vmatpush1.bf16.msra.mxu0 %v2554
      %3010 = vmatprep.subr.bf16.mxu0 0
      %3011 = vmatpush1.bf16.msra.mxu0 %v2557
      %3012 = vmatprep.subr.bf16.mxu0 0
      %3013 = vmatpush1.bf16.msra.mxu0 %v2560
      %3014 = vmatprep.subr.bf16.mxu0 0
      %3015 = vmatpush1.bf16.msra.mxu0 %v2563
      %3016 = vmatprep.subr.bf16.mxu0 0
      %3017 = vmatpush1.bf16.msra.mxu0 %v2566
      %3018 = vmatprep.subr.bf16.mxu0 0
      %3019 = vmatpush1.bf16.msra.mxu0 %v2569
      %3020 = vmatprep.subr.bf16.mxu0 0
      %3021 = vmatpush1.bf16.msra.mxu0 %v2572
      %3022 = vmatprep.subr.bf16.mxu0 0
      %3023 = vmatpush1.bf16.msra.mxu0 %v2575
      %3024 = vmatprep.mubr.bf16.mxu0 %v2010
      %3025 = vmatmul.mubr.bf16.gmra.mrb[0].mxu0 %v2009
      %v3026 = vpop.f32.mrb[0].mxu0
      %v3027 = vadd.f32 %v2971, %v3026
      %v3028 = vpop.f32.mrb[0].mxu0
      %v3029 = vpop.f32.mrb[0].mxu0
      %v3030 = vadd.f32 %v2974, %v3029
      %v3031 = vpop.f32.mrb[0].mxu0
      %3032 = vmatprep.mubr.bf16.mxu0 %v2016
      %3033 = vmatmul.mubr.bf16.gmra.mrb[0].mxu0 %v2015
      %v3034 = vpop.f32.mrb[0].mxu0
      %v3035 = vadd.f32 %v2979, %v3034
      %v3036 = vpop.f32.mrb[0].mxu0
      %v3037 = vpop.f32.mrb[0].mxu0
      %v3038 = vadd.f32 %v2982, %v3037
      %v3039 = vpop.f32.mrb[0].mxu0
      %3040 = vmatprep.mubr.bf16.mxu0 %v2022
      %3041 = vmatmul.mubr.bf16.gmra.mrb[0].mxu0 %v2021
      %v3042 = vpop.f32.mrb[0].mxu0
      %v3043 = vadd.f32 %v2987, %v3042
      %v3044 = vpop.f32.mrb[0].mxu0
      %v3045 = vpop.f32.mrb[0].mxu0
      %v3046 = vpop.f32.mrb[0].mxu0
      %3047 = vdwg.mxu0
      %3048 = vmatprep.subr.bf16.mxu0 0
      %3049 = vmatpush1.bf16.msra.mxu0 %v2578
      %3050 = vmatprep.subr.bf16.mxu0 0
      %3051 = vmatpush1.bf16.msra.mxu0 %v2581
      %3052 = vmatprep.subr.bf16.mxu0 0
      %3053 = vmatpush1.bf16.msra.mxu0 %v2584
      %3054 = vmatprep.subr.bf16.mxu0 0
      %3055 = vmatpush1.bf16.msra.mxu0 %v2587
      %3056 = vmatprep.subr.bf16.mxu0 0
      %3057 = vmatpush1.bf16.msra.mxu0 %v2590
      %3058 = vmatprep.subr.bf16.mxu0 0
      %3059 = vmatpush1.bf16.msra.mxu0 %v2593
      %3060 = vmatprep.subr.bf16.mxu0 0
      %3061 = vmatpush1.bf16.msra.mxu0 %v2596
      %3062 = vmatprep.subr.bf16.mxu0 0
      %3063 = vmatpush1.bf16.msra.mxu0 %v2599
      %3064 = vmatprep.subr.bf16.mxu0 0
      %3065 = vmatpush1.bf16.msra.mxu0 %v2602
      %3066 = vmatprep.subr.bf16.mxu0 0
      %3067 = vmatpush1.bf16.msra.mxu0 %v2605
      %3068 = vmatprep.subr.bf16.mxu0 0
      %3069 = vmatpush1.bf16.msra.mxu0 %v2608
      %3070 = vmatprep.subr.bf16.mxu0 0
      %3071 = vmatpush1.bf16.msra.mxu0 %v2611
      %3072 = vmatprep.subr.bf16.mxu0 0
      %3073 = vmatpush1.bf16.msra.mxu0 0
      %3074 = vmatprep.subr.bf16.mxu0 0
      %3075 = vmatpush1.bf16.msra.mxu0 0
      %3076 = vmatprep.subr.bf16.mxu0 0
      %3077 = vmatpush1.bf16.msra.mxu0 0
      %3078 = vmatprep.subr.bf16.mxu0 0
      %3079 = vmatpush1.bf16.msra.mxu0 0
      %3080 = vmatprep.mubr.bf16.mxu0 %v2745
      %3081 = vmatmul.mubr.bf16.gmra.mrb[0].mxu0 %v2011
      %v3082 = vpop.f32.mrb[0].mxu0
      %v3083 = vadd.f32 %v3027, %v3082
      %v3084 = vpop.f32.mrb[0].mxu0
      %v3085 = vpop.f32.mrb[0].mxu0
      %v3086 = vadd.f32 %v3030, %v3085
      %v3087 = vpop.f32.mrb[0].mxu0
      %3088 = vmatprep.mubr.bf16.mxu0 %v2748
      %3089 = vmatmul.mubr.bf16.gmra.mrb[0].mxu0 %v2017
      %v3090 = vpop.f32.mrb[0].mxu0
      %v3091 = vadd.f32 %v3035, %v3090
      %v3092 = vpop.f32.mrb[0].mxu0
      %v3093 = vpop.f32.mrb[0].mxu0
      %v3094 = vadd.f32 %v3038, %v3093
      %v3095 = vpop.f32.mrb[0].mxu0
      %3096 = vmatprep.mubr.bf16.mxu0 %v2751
      %3097 = vmatmul.mubr.bf16.gmra.mrb[0].mxu0 %v2023
      %v3098 = vpop.f32.mrb[0].mxu0
      %v3099 = vadd.f32 %v3043, %v3098
      %v3100 = vpop.f32.mrb[0].mxu0
      %v3101 = vpop.f32.mrb[0].mxu0
      %v3102 = vpop.f32.mrb[0].mxu0
      %3103 = vdwg.mxu0
      %v3107 = vunpack.c.l.b16 %v448
      %v3108 = vunpack.c.h.b16 %v448
      %v3109 = vunpack.c.l.b16 %v449
      %v3110 = vunpack.c.h.b16 %v449
      %v3111 = vunpack.c.l.b16 %v450
      %v3112 = vunpack.c.h.b16 %v450
      %v3113 = vpack.c.b16 %v1989, %v1983
      %v3114 = vpack.c.b16 %v1990, %v1984
      %v3115 = vpack.c.b16 %v1991, %v1985
      %v3116 = vpack.c.b16 %v1992, %v1986
      %v3117 = vpack.c.b16 %v1993, %v1987
      %v3118 = vpack.c.b16 %v1994, %v1988
      %v3119 = vpack.c.b16 %v2001, %v1995
      %v3120 = vpack.c.b16 %v2002, %v1996
      %v3121 = vpack.c.b16 %v2003, %v1997
      %v3122 = vpack.c.b16 %v2004, %v1998
      %v3123 = vpack.c.b16 %v2005, %v1999
      %v3124 = vpack.c.b16 %v2006, %v2000
      %v3125 = vpack.c.b16 %v3107, %v3107
      %v3126 = vpack.c.b16 %v3108, %v3108
      %v3127 = vpack.c.b16 %v3109, %v3109
      %v3128 = vpack.c.b16 %v3110, %v3110
      %v3129 = vpack.c.b16 %v3111, %v3111
      %v3130 = vpack.c.b16 %v3112, %v3112
      %v3147 = vsel %vm1601, %v3118, 0
      %v3150 = vsel %vm1601, %v3124, 0
      %v3153 = vsel %vm1601, %v3130, 0
      %3155 = vmatprep.subr.bf16.mxu0 %v1338
      %3156 = vmatpush1.bf16.msra.mxu0 %v1337
      %3157 = vmatprep.subr.bf16.mxu0 %v1341
      %3158 = vmatpush1.bf16.msra.mxu0 %v1340
      %3159 = vmatprep.subr.bf16.mxu0 %v1344
      %3160 = vmatpush1.bf16.msra.mxu0 %v1343
      %3161 = vmatprep.subr.bf16.mxu0 %v1347
      %3162 = vmatpush1.bf16.msra.mxu0 %v1346
      %3163 = vmatprep.subr.bf16.mxu0 %v1350
      %3164 = vmatpush1.bf16.msra.mxu0 %v1349
      %3165 = vmatprep.subr.bf16.mxu0 %v1353
      %3166 = vmatpush1.bf16.msra.mxu0 %v1352
      %3167 = vmatprep.subr.bf16.mxu0 %v1356
      %3168 = vmatpush1.bf16.msra.mxu0 %v1355
      %3169 = vmatprep.subr.bf16.mxu0 %v1359
      %3170 = vmatpush1.bf16.msra.mxu0 %v1358
      %3171 = vmatprep.subr.bf16.mxu0 %v1362
      %3172 = vmatpush1.bf16.msra.mxu0 %v1361
      %3173 = vmatprep.subr.bf16.mxu0 %v1365
      %3174 = vmatpush1.bf16.msra.mxu0 %v1364
      %3175 = vmatprep.subr.bf16.mxu0 %v1368
      %3176 = vmatpush1.bf16.msra.mxu0 %v1367
      %3177 = vmatprep.subr.bf16.mxu0 %v1371
      %3178 = vmatpush1.bf16.msra.mxu0 %v1370
      %3179 = vmatprep.subr.bf16.mxu0 %v1374
      %3180 = vmatpush1.bf16.msra.mxu0 %v1373
      %3181 = vmatprep.subr.bf16.mxu0 %v1377
      %3182 = vmatpush1.bf16.msra.mxu0 %v1376
      %3183 = vmatprep.subr.bf16.mxu0 %v1380
      %3184 = vmatpush1.bf16.msra.mxu0 %v1379
      %3185 = vmatprep.subr.bf16.mxu0 %v1383
      %3186 = vmatpush1.bf16.msra.mxu0 %v1382
      %3187 = vmatprep.mubr.bf16.mxu0 %v3114
      %3188 = vmatmul.mubr.bf16.gmra.mrb[0].mxu0 %v3113
      %v3189 = vpop.f32.mrb[0].mxu0
      %v3190 = vadd.f32 0.0, %v3189
      %v3191 = vpop.f32.mrb[0].mxu0
      %v3192 = vadd.f32 0.0, %v3191
      %v3193 = vpop.f32.mrb[0].mxu0
      %v3194 = vadd.f32 0.0, %v3193
      %v3195 = vpop.f32.mrb[0].mxu0
      %v3196 = vadd.f32 0.0, %v3195
      %3197 = vmatprep.mubr.bf16.mxu0 %v3120
      %3198 = vmatmul.mubr.bf16.gmra.mrb[0].mxu0 %v3119
      %v3199 = vpop.f32.mrb[0].mxu0
      %v3200 = vadd.f32 0.0, %v3199
      %v3201 = vpop.f32.mrb[0].mxu0
      %v3202 = vadd.f32 0.0, %v3201
      %v3203 = vpop.f32.mrb[0].mxu0
      %v3204 = vadd.f32 0.0, %v3203
      %v3205 = vpop.f32.mrb[0].mxu0
      %v3206 = vadd.f32 0.0, %v3205
      %3207 = vmatprep.mubr.bf16.mxu0 %v3126
      %3208 = vmatmul.mubr.bf16.gmra.mrb[0].mxu0 %v3125
      %v3209 = vpop.f32.mrb[0].mxu0
      %v3210 = vadd.f32 0.0, %v3209
      %v3211 = vpop.f32.mrb[0].mxu0
      %v3212 = vadd.f32 0.0, %v3211
      %v3213 = vpop.f32.mrb[0].mxu0
      %v3214 = vpop.f32.mrb[0].mxu0
      %3215 = vdwg.mxu0
      %3216 = vmatprep.subr.bf16.mxu0 %v1386
      %3217 = vmatpush1.bf16.msra.mxu0 %v1385
      %3218 = vmatprep.subr.bf16.mxu0 %v1389
      %3219 = vmatpush1.bf16.msra.mxu0 %v1388
      %3220 = vmatprep.subr.bf16.mxu0 %v1392
      %3221 = vmatpush1.bf16.msra.mxu0 %v1391
      %3222 = vmatprep.subr.bf16.mxu0 %v1395
      %3223 = vmatpush1.bf16.msra.mxu0 %v1394
      %3224 = vmatprep.subr.bf16.mxu0 %v1398
      %3225 = vmatpush1.bf16.msra.mxu0 %v1397
      %3226 = vmatprep.subr.bf16.mxu0 %v1401
      %3227 = vmatpush1.bf16.msra.mxu0 %v1400
      %3228 = vmatprep.subr.bf16.mxu0 %v1404
      %3229 = vmatpush1.bf16.msra.mxu0 %v1403
      %3230 = vmatprep.subr.bf16.mxu0 %v1407
      %3231 = vmatpush1.bf16.msra.mxu0 %v1406
      %3232 = vmatprep.subr.bf16.mxu0 %v1410
      %3233 = vmatpush1.bf16.msra.mxu0 %v1409
      %3234 = vmatprep.subr.bf16.mxu0 %v1413
      %3235 = vmatpush1.bf16.msra.mxu0 %v1412
      %3236 = vmatprep.subr.bf16.mxu0 %v1416
      %3237 = vmatpush1.bf16.msra.mxu0 %v1415
      %3238 = vmatprep.subr.bf16.mxu0 %v1419
      %3239 = vmatpush1.bf16.msra.mxu0 %v1418
      %3240 = vmatprep.subr.bf16.mxu0 %v1422
      %3241 = vmatpush1.bf16.msra.mxu0 %v1421
      %3242 = vmatprep.subr.bf16.mxu0 %v1425
      %3243 = vmatpush1.bf16.msra.mxu0 %v1424
      %3244 = vmatprep.subr.bf16.mxu0 %v1428
      %3245 = vmatpush1.bf16.msra.mxu0 %v1427
      %3246 = vmatprep.subr.bf16.mxu0 %v1431
      %3247 = vmatpush1.bf16.msra.mxu0 %v1430
      %3248 = vmatprep.mubr.bf16.mxu0 %v3116
      %3249 = vmatmul.mubr.bf16.gmra.mrb[0].mxu0 %v3115
      %v3250 = vpop.f32.mrb[0].mxu0
      %v3251 = vadd.f32 %v3190, %v3250
      %v3252 = vpop.f32.mrb[0].mxu0
      %v3253 = vadd.f32 %v3192, %v3252
      %v3254 = vpop.f32.mrb[0].mxu0
      %v3255 = vadd.f32 %v3194, %v3254
      %v3256 = vpop.f32.mrb[0].mxu0
      %v3257 = vadd.f32 %v3196, %v3256
      %3258 = vmatprep.mubr.bf16.mxu0 %v3122
      %3259 = vmatmul.mubr.bf16.gmra.mrb[0].mxu0 %v3121
      %v3260 = vpop.f32.mrb[0].mxu0
      %v3261 = vadd.f32 %v3200, %v3260
      %v3262 = vpop.f32.mrb[0].mxu0
      %v3263 = vadd.f32 %v3202, %v3262
      %v3264 = vpop.f32.mrb[0].mxu0
      %v3265 = vadd.f32 %v3204, %v3264
      %v3266 = vpop.f32.mrb[0].mxu0
      %v3267 = vadd.f32 %v3206, %v3266
      %3268 = vmatprep.mubr.bf16.mxu0 %v3128
      %3269 = vmatmul.mubr.bf16.gmra.mrb[0].mxu0 %v3127
      %v3270 = vpop.f32.mrb[0].mxu0
      %v3271 = vadd.f32 %v3210, %v3270
      %v3272 = vpop.f32.mrb[0].mxu0
      %v3273 = vadd.f32 %v3212, %v3272
      %v3274 = vpop.f32.mrb[0].mxu0
      %v3275 = vpop.f32.mrb[0].mxu0
      %3276 = vdwg.mxu0
      %3277 = vmatprep.subr.bf16.mxu0 %v1434
      %3278 = vmatpush1.bf16.msra.mxu0 %v1433
      %3279 = vmatprep.subr.bf16.mxu0 %v1437
      %3280 = vmatpush1.bf16.msra.mxu0 %v1436
      %3281 = vmatprep.subr.bf16.mxu0 %v1440
      %3282 = vmatpush1.bf16.msra.mxu0 %v1439
      %3283 = vmatprep.subr.bf16.mxu0 %v1443
      %3284 = vmatpush1.bf16.msra.mxu0 %v1442
      %3285 = vmatprep.subr.bf16.mxu0 %v1446
      %3286 = vmatpush1.bf16.msra.mxu0 %v1445
      %3287 = vmatprep.subr.bf16.mxu0 %v1449
      %3288 = vmatpush1.bf16.msra.mxu0 %v1448
      %3289 = vmatprep.subr.bf16.mxu0 %v1452
      %3290 = vmatpush1.bf16.msra.mxu0 %v1451
      %3291 = vmatprep.subr.bf16.mxu0 %v1455
      %3292 = vmatpush1.bf16.msra.mxu0 %v1454
      %3293 = vmatprep.subr.bf16.mxu0 %v1458
      %3294 = vmatpush1.bf16.msra.mxu0 %v1457
      %3295 = vmatprep.subr.bf16.mxu0 %v1461
      %3296 = vmatpush1.bf16.msra.mxu0 %v1460
      %3297 = vmatprep.subr.bf16.mxu0 %v1464
      %3298 = vmatpush1.bf16.msra.mxu0 %v1463
      %3299 = vmatprep.subr.bf16.mxu0 %v1467
      %3300 = vmatpush1.bf16.msra.mxu0 %v1466
      %3301 = vmatprep.subr.bf16.mxu0 0
      %3302 = vmatpush1.bf16.msra.mxu0 0
      %3303 = vmatprep.subr.bf16.mxu0 0
      %3304 = vmatpush1.bf16.msra.mxu0 0
      %3305 = vmatprep.subr.bf16.mxu0 0
      %3306 = vmatpush1.bf16.msra.mxu0 0
      %3307 = vmatprep.subr.bf16.mxu0 0
      %3308 = vmatpush1.bf16.msra.mxu0 0
      %3309 = vmatprep.mubr.bf16.mxu0 %v3147
      %3310 = vmatmul.mubr.bf16.gmra.mrb[0].mxu0 %v3117
      %v3311 = vpop.f32.mrb[0].mxu0
      %v3312 = vadd.f32 %v3251, %v3311
      %v3313 = vpop.f32.mrb[0].mxu0
      %v3314 = vadd.f32 %v3253, %v3313
      %v3315 = vpop.f32.mrb[0].mxu0
      %v3316 = vadd.f32 %v3255, %v3315
      %v3317 = vpop.f32.mrb[0].mxu0
      %v3318 = vadd.f32 %v3257, %v3317
      %3319 = vmatprep.mubr.bf16.mxu0 %v3150
      %3320 = vmatmul.mubr.bf16.gmra.mrb[0].mxu0 %v3123
      %v3321 = vpop.f32.mrb[0].mxu0
      %v3322 = vadd.f32 %v3261, %v3321
      %v3323 = vpop.f32.mrb[0].mxu0
      %v3324 = vadd.f32 %v3263, %v3323
      %v3325 = vpop.f32.mrb[0].mxu0
      %v3326 = vadd.f32 %v3265, %v3325
      %v3327 = vpop.f32.mrb[0].mxu0
      %v3328 = vadd.f32 %v3267, %v3327
      %3329 = vmatprep.mubr.bf16.mxu0 %v3153
      %3330 = vmatmul.mubr.bf16.gmra.mrb[0].mxu0 %v3129
      %v3331 = vpop.f32.mrb[0].mxu0
      %v3332 = vadd.f32 %v3271, %v3331
      %v3333 = vpop.f32.mrb[0].mxu0
      %v3334 = vadd.f32 %v3273, %v3333
      %v3335 = vpop.f32.mrb[0].mxu0
      %v3336 = vpop.f32.mrb[0].mxu0
      %3337 = vdwg.mxu0
      %3338 = vmatprep.subr.bf16.mxu0 0
      %3339 = vmatpush1.bf16.msra.mxu0 %v1339
      %3340 = vmatprep.subr.bf16.mxu0 0
      %3341 = vmatpush1.bf16.msra.mxu0 %v1342
      %3342 = vmatprep.subr.bf16.mxu0 0
      %3343 = vmatpush1.bf16.msra.mxu0 %v1345
      %3344 = vmatprep.subr.bf16.mxu0 0
      %3345 = vmatpush1.bf16.msra.mxu0 %v1348
      %3346 = vmatprep.subr.bf16.mxu0 0
      %3347 = vmatpush1.bf16.msra.mxu0 %v1351
      %3348 = vmatprep.subr.bf16.mxu0 0
      %3349 = vmatpush1.bf16.msra.mxu0 %v1354
      %3350 = vmatprep.subr.bf16.mxu0 0
      %3351 = vmatpush1.bf16.msra.mxu0 %v1357
      %3352 = vmatprep.subr.bf16.mxu0 0
      %3353 = vmatpush1.bf16.msra.mxu0 %v1360
      %3354 = vmatprep.subr.bf16.mxu0 0
      %3355 = vmatpush1.bf16.msra.mxu0 %v1363
      %3356 = vmatprep.subr.bf16.mxu0 0
      %3357 = vmatpush1.bf16.msra.mxu0 %v1366
      %3358 = vmatprep.subr.bf16.mxu0 0
      %3359 = vmatpush1.bf16.msra.mxu0 %v1369
      %3360 = vmatprep.subr.bf16.mxu0 0
      %3361 = vmatpush1.bf16.msra.mxu0 %v1372
      %3362 = vmatprep.subr.bf16.mxu0 0
      %3363 = vmatpush1.bf16.msra.mxu0 %v1375
      %3364 = vmatprep.subr.bf16.mxu0 0
      %3365 = vmatpush1.bf16.msra.mxu0 %v1378
      %3366 = vmatprep.subr.bf16.mxu0 0
      %3367 = vmatpush1.bf16.msra.mxu0 %v1381
      %3368 = vmatprep.subr.bf16.mxu0 0
      %3369 = vmatpush1.bf16.msra.mxu0 %v1384
      %3370 = vmatprep.mubr.bf16.mxu0 %v3114
      %3371 = vmatmul.mubr.bf16.gmra.mrb[0].mxu0 %v3113
      %v3372 = vpop.f32.mrb[0].mxu0
      %v3373 = vadd.f32 0.0, %v3372
      %v3374 = vpop.f32.mrb[0].mxu0
      %v3375 = vpop.f32.mrb[0].mxu0
      %v3376 = vadd.f32 0.0, %v3375
      %v3377 = vpop.f32.mrb[0].mxu0
      %3378 = vmatprep.mubr.bf16.mxu0 %v3120
      %3379 = vmatmul.mubr.bf16.gmra.mrb[0].mxu0 %v3119
      %v3380 = vpop.f32.mrb[0].mxu0
      %v3381 = vadd.f32 0.0, %v3380
      %v3382 = vpop.f32.mrb[0].mxu0
      %v3383 = vpop.f32.mrb[0].mxu0
      %v3384 = vadd.f32 0.0, %v3383
      %v3385 = vpop.f32.mrb[0].mxu0
      %3386 = vmatprep.mubr.bf16.mxu0 %v3126
      %3387 = vmatmul.mubr.bf16.gmra.mrb[0].mxu0 %v3125
      %v3388 = vpop.f32.mrb[0].mxu0
      %v3389 = vadd.f32 0.0, %v3388
      %v3390 = vpop.f32.mrb[0].mxu0
      %v3391 = vpop.f32.mrb[0].mxu0
      %v3392 = vpop.f32.mrb[0].mxu0
      %3393 = vdwg.mxu0
      %3394 = vmatprep.subr.bf16.mxu0 0
      %3395 = vmatpush1.bf16.msra.mxu0 %v1387
      %3396 = vmatprep.subr.bf16.mxu0 0
      %3397 = vmatpush1.bf16.msra.mxu0 %v1390
      %3398 = vmatprep.subr.bf16.mxu0 0
      %3399 = vmatpush1.bf16.msra.mxu0 %v1393
      %3400 = vmatprep.subr.bf16.mxu0 0
      %3401 = vmatpush1.bf16.msra.mxu0 %v1396
      %3402 = vmatprep.subr.bf16.mxu0 0
      %3403 = vmatpush1.bf16.msra.mxu0 %v1399
      %3404 = vmatprep.subr.bf16.mxu0 0
      %3405 = vmatpush1.bf16.msra.mxu0 %v1402
      %3406 = vmatprep.subr.bf16.mxu0 0
      %3407 = vmatpush1.bf16.msra.mxu0 %v1405
      %3408 = vmatprep.subr.bf16.mxu0 0
      %3409 = vmatpush1.bf16.msra.mxu0 %v1408
      %3410 = vmatprep.subr.bf16.mxu0 0
      %3411 = vmatpush1.bf16.msra.mxu0 %v1411
      %3412 = vmatprep.subr.bf16.mxu0 0
      %3413 = vmatpush1.bf16.msra.mxu0 %v1414
      %3414 = vmatprep.subr.bf16.mxu0 0
      %3415 = vmatpush1.bf16.msra.mxu0 %v1417
      %3416 = vmatprep.subr.bf16.mxu0 0
      %3417 = vmatpush1.bf16.msra.mxu0 %v1420
      %3418 = vmatprep.subr.bf16.mxu0 0
      %3419 = vmatpush1.bf16.msra.mxu0 %v1423
      %3420 = vmatprep.subr.bf16.mxu0 0
      %3421 = vmatpush1.bf16.msra.mxu0 %v1426
      %3422 = vmatprep.subr.bf16.mxu0 0
      %3423 = vmatpush1.bf16.msra.mxu0 %v1429
      %3424 = vmatprep.subr.bf16.mxu0 0
      %3425 = vmatpush1.bf16.msra.mxu0 %v1432
      %3426 = vmatprep.mubr.bf16.mxu0 %v3116
      %3427 = vmatmul.mubr.bf16.gmra.mrb[0].mxu0 %v3115
      %v3428 = vpop.f32.mrb[0].mxu0
      %v3429 = vadd.f32 %v3373, %v3428
      %v3430 = vpop.f32.mrb[0].mxu0
      %v3431 = vpop.f32.mrb[0].mxu0
      %v3432 = vadd.f32 %v3376, %v3431
      %v3433 = vpop.f32.mrb[0].mxu0
      %3434 = vmatprep.mubr.bf16.mxu0 %v3122
      %3435 = vmatmul.mubr.bf16.gmra.mrb[0].mxu0 %v3121
      %v3436 = vpop.f32.mrb[0].mxu0
      %v3437 = vadd.f32 %v3381, %v3436
      %v3438 = vpop.f32.mrb[0].mxu0
      %v3439 = vpop.f32.mrb[0].mxu0
      %v3440 = vadd.f32 %v3384, %v3439
      %v3441 = vpop.f32.mrb[0].mxu0
      %3442 = vmatprep.mubr.bf16.mxu0 %v3128
      %3443 = vmatmul.mubr.bf16.gmra.mrb[0].mxu0 %v3127
      %v3444 = vpop.f32.mrb[0].mxu0
      %v3445 = vadd.f32 %v3389, %v3444
      %v3446 = vpop.f32.mrb[0].mxu0
      %v3447 = vpop.f32.mrb[0].mxu0
      %v3448 = vpop.f32.mrb[0].mxu0
      %3449 = vdwg.mxu0
      %3450 = vmatprep.subr.bf16.mxu0 0
      %3451 = vmatpush1.bf16.msra.mxu0 %v1435
      %3452 = vmatprep.subr.bf16.mxu0 0
      %3453 = vmatpush1.bf16.msra.mxu0 %v1438
      %3454 = vmatprep.subr.bf16.mxu0 0
      %3455 = vmatpush1.bf16.msra.mxu0 %v1441
      %3456 = vmatprep.subr.bf16.mxu0 0
      %3457 = vmatpush1.bf16.msra.mxu0 %v1444
      %3458 = vmatprep.subr.bf16.mxu0 0
      %3459 = vmatpush1.bf16.msra.mxu0 %v1447
      %3460 = vmatprep.subr.bf16.mxu0 0
      %3461 = vmatpush1.bf16.msra.mxu0 %v1450
      %3462 = vmatprep.subr.bf16.mxu0 0
      %3463 = vmatpush1.bf16.msra.mxu0 %v1453
      %3464 = vmatprep.subr.bf16.mxu0 0
      %3465 = vmatpush1.bf16.msra.mxu0 %v1456
      %3466 = vmatprep.subr.bf16.mxu0 0
      %3467 = vmatpush1.bf16.msra.mxu0 %v1459
      %3468 = vmatprep.subr.bf16.mxu0 0
      %3469 = vmatpush1.bf16.msra.mxu0 %v1462
      %3470 = vmatprep.subr.bf16.mxu0 0
      %3471 = vmatpush1.bf16.msra.mxu0 %v1465
      %3472 = vmatprep.subr.bf16.mxu0 0
      %3473 = vmatpush1.bf16.msra.mxu0 %v1468
      %3474 = vmatprep.subr.bf16.mxu0 0
      %3475 = vmatpush1.bf16.msra.mxu0 0
      %3476 = vmatprep.subr.bf16.mxu0 0
      %3477 = vmatpush1.bf16.msra.mxu0 0
      %3478 = vmatprep.subr.bf16.mxu0 0
      %3479 = vmatpush1.bf16.msra.mxu0 0
      %3480 = vmatprep.subr.bf16.mxu0 0
      %3481 = vmatpush1.bf16.msra.mxu0 0
      %3482 = vmatprep.mubr.bf16.mxu0 %v3147
      %3483 = vmatmul.mubr.bf16.gmra.mrb[0].mxu0 %v3117
      %v3484 = vpop.f32.mrb[0].mxu0
      %v3485 = vadd.f32 %v3429, %v3484
      %v3486 = vpop.f32.mrb[0].mxu0
      %v3487 = vpop.f32.mrb[0].mxu0
      %v3488 = vadd.f32 %v3432, %v3487
      %v3489 = vpop.f32.mrb[0].mxu0
      %3490 = vmatprep.mubr.bf16.mxu0 %v3150
      %3491 = vmatmul.mubr.bf16.gmra.mrb[0].mxu0 %v3123
      %v3492 = vpop.f32.mrb[0].mxu0
      %v3493 = vadd.f32 %v3437, %v3492
      %v3494 = vpop.f32.mrb[0].mxu0
      %v3495 = vpop.f32.mrb[0].mxu0
      %v3496 = vadd.f32 %v3440, %v3495
      %v3497 = vpop.f32.mrb[0].mxu0
      %3498 = vmatprep.mubr.bf16.mxu0 %v3153
      %3499 = vmatmul.mubr.bf16.gmra.mrb[0].mxu0 %v3129
      %v3500 = vpop.f32.mrb[0].mxu0
      %v3501 = vadd.f32 %v3445, %v3500
      %v3502 = vpop.f32.mrb[0].mxu0
      %v3503 = vpop.f32.mrb[0].mxu0
      %v3504 = vpop.f32.mrb[0].mxu0
      %3505 = vdwg.mxu0
      %3506 = vmatprep.subr.bf16.mxu0 %v2481
      %3507 = vmatpush1.bf16.msra.mxu0 %v2480
      %3508 = vmatprep.subr.bf16.mxu0 %v2484
      %3509 = vmatpush1.bf16.msra.mxu0 %v2483
      %3510 = vmatprep.subr.bf16.mxu0 %v2487
      %3511 = vmatpush1.bf16.msra.mxu0 %v2486
      %3512 = vmatprep.subr.bf16.mxu0 %v2490
      %3513 = vmatpush1.bf16.msra.mxu0 %v2489
      %3514 = vmatprep.subr.bf16.mxu0 %v2493
      %3515 = vmatpush1.bf16.msra.mxu0 %v2492
      %3516 = vmatprep.subr.bf16.mxu0 %v2496
      %3517 = vmatpush1.bf16.msra.mxu0 %v2495
      %3518 = vmatprep.subr.bf16.mxu0 %v2499
      %3519 = vmatpush1.bf16.msra.mxu0 %v2498
      %3520 = vmatprep.subr.bf16.mxu0 %v2502
      %3521 = vmatpush1.bf16.msra.mxu0 %v2501
      %3522 = vmatprep.subr.bf16.mxu0 %v2505
      %3523 = vmatpush1.bf16.msra.mxu0 %v2504
      %3524 = vmatprep.subr.bf16.mxu0 %v2508
      %3525 = vmatpush1.bf16.msra.mxu0 %v2507
      %3526 = vmatprep.subr.bf16.mxu0 %v2511
      %3527 = vmatpush1.bf16.msra.mxu0 %v2510
      %3528 = vmatprep.subr.bf16.mxu0 %v2514
      %3529 = vmatpush1.bf16.msra.mxu0 %v2513
      %3530 = vmatprep.subr.bf16.mxu0 %v2517
      %3531 = vmatpush1.bf16.msra.mxu0 %v2516
      %3532 = vmatprep.subr.bf16.mxu0 %v2520
      %3533 = vmatpush1.bf16.msra.mxu0 %v2519
      %3534 = vmatprep.subr.bf16.mxu0 %v2523
      %3535 = vmatpush1.bf16.msra.mxu0 %v2522
      %3536 = vmatprep.subr.bf16.mxu0 %v2526
      %3537 = vmatpush1.bf16.msra.mxu0 %v2525
      %3538 = vmatprep.mubr.bf16.mxu0 %v865
      %3539 = vmatmul.mubr.bf16.gmra.mrb[0].mxu0 %v864
      %v3540 = vpop.f32.mrb[0].mxu0
      %v3541 = vadd.f32 %v3312, %v3540
      %v3542 = vpop.f32.mrb[0].mxu0
      %v3543 = vadd.f32 %v3314, %v3542
      %v3544 = vpop.f32.mrb[0].mxu0
      %v3545 = vadd.f32 %v3316, %v3544
      %v3546 = vpop.f32.mrb[0].mxu0
      %v3547 = vadd.f32 %v3318, %v3546
      %3548 = vmatprep.mubr.bf16.mxu0 %v871
      %3549 = vmatmul.mubr.bf16.gmra.mrb[0].mxu0 %v870
      %v3550 = vpop.f32.mrb[0].mxu0
      %v3551 = vadd.f32 %v3322, %v3550
      %v3552 = vpop.f32.mrb[0].mxu0
      %v3553 = vadd.f32 %v3324, %v3552
      %v3554 = vpop.f32.mrb[0].mxu0
      %v3555 = vadd.f32 %v3326, %v3554
      %v3556 = vpop.f32.mrb[0].mxu0
      %v3557 = vadd.f32 %v3328, %v3556
      %3558 = vmatprep.mubr.bf16.mxu0 %v877
      %3559 = vmatmul.mubr.bf16.gmra.mrb[0].mxu0 %v876
      %v3560 = vpop.f32.mrb[0].mxu0
      %v3561 = vadd.f32 %v3332, %v3560
      %v3562 = vpop.f32.mrb[0].mxu0
      %v3563 = vadd.f32 %v3334, %v3562
      %v3564 = vpop.f32.mrb[0].mxu0
      %v3565 = vpop.f32.mrb[0].mxu0
      %3566 = vdwg.mxu0
      %3567 = vmatprep.subr.bf16.mxu0 %v2529
      %3568 = vmatpush1.bf16.msra.mxu0 %v2528
      %3569 = vmatprep.subr.bf16.mxu0 %v2532
      %3570 = vmatpush1.bf16.msra.mxu0 %v2531
      %3571 = vmatprep.subr.bf16.mxu0 %v2535
      %3572 = vmatpush1.bf16.msra.mxu0 %v2534
      %3573 = vmatprep.subr.bf16.mxu0 %v2538
      %3574 = vmatpush1.bf16.msra.mxu0 %v2537
      %3575 = vmatprep.subr.bf16.mxu0 %v2541
      %3576 = vmatpush1.bf16.msra.mxu0 %v2540
      %3577 = vmatprep.subr.bf16.mxu0 %v2544
      %3578 = vmatpush1.bf16.msra.mxu0 %v2543
      %3579 = vmatprep.subr.bf16.mxu0 %v2547
      %3580 = vmatpush1.bf16.msra.mxu0 %v2546
      %3581 = vmatprep.subr.bf16.mxu0 %v2550
      %3582 = vmatpush1.bf16.msra.mxu0 %v2549
      %3583 = vmatprep.subr.bf16.mxu0 %v2553
      %3584 = vmatpush1.bf16.msra.mxu0 %v2552
      %3585 = vmatprep.subr.bf16.mxu0 %v2556
      %3586 = vmatpush1.bf16.msra.mxu0 %v2555
      %3587 = vmatprep.subr.bf16.mxu0 %v2559
      %3588 = vmatpush1.bf16.msra.mxu0 %v2558
      %3589 = vmatprep.subr.bf16.mxu0 %v2562
      %3590 = vmatpush1.bf16.msra.mxu0 %v2561
      %3591 = vmatprep.subr.bf16.mxu0 %v2565
      %3592 = vmatpush1.bf16.msra.mxu0 %v2564
      %3593 = vmatprep.subr.bf16.mxu0 %v2568
      %3594 = vmatpush1.bf16.msra.mxu0 %v2567
      %3595 = vmatprep.subr.bf16.mxu0 %v2571
      %3596 = vmatpush1.bf16.msra.mxu0 %v2570
      %3597 = vmatprep.subr.bf16.mxu0 %v2574
      %3598 = vmatpush1.bf16.msra.mxu0 %v2573
      %3599 = vmatprep.mubr.bf16.mxu0 %v867
      %3600 = vmatmul.mubr.bf16.gmra.mrb[0].mxu0 %v866
      %v3601 = vpop.f32.mrb[0].mxu0
      %v3602 = vadd.f32 %v3541, %v3601
      %v3603 = vpop.f32.mrb[0].mxu0
      %v3604 = vadd.f32 %v3543, %v3603
      %v3605 = vpop.f32.mrb[0].mxu0
      %v3606 = vadd.f32 %v3545, %v3605
      %v3607 = vpop.f32.mrb[0].mxu0
      %v3608 = vadd.f32 %v3547, %v3607
      %3609 = vmatprep.mubr.bf16.mxu0 %v873
      %3610 = vmatmul.mubr.bf16.gmra.mrb[0].mxu0 %v872
      %v3611 = vpop.f32.mrb[0].mxu0
      %v3612 = vadd.f32 %v3551, %v3611
      %v3613 = vpop.f32.mrb[0].mxu0
      %v3614 = vadd.f32 %v3553, %v3613
      %v3615 = vpop.f32.mrb[0].mxu0
      %v3616 = vadd.f32 %v3555, %v3615
      %v3617 = vpop.f32.mrb[0].mxu0
      %v3618 = vadd.f32 %v3557, %v3617
      %3619 = vmatprep.mubr.bf16.mxu0 %v879
      %3620 = vmatmul.mubr.bf16.gmra.mrb[0].mxu0 %v878
      %v3621 = vpop.f32.mrb[0].mxu0
      %v3622 = vadd.f32 %v3561, %v3621
      %v3623 = vpop.f32.mrb[0].mxu0
      %v3624 = vadd.f32 %v3563, %v3623
      %v3625 = vpop.f32.mrb[0].mxu0
      %v3626 = vpop.f32.mrb[0].mxu0
      %3627 = vdwg.mxu0
      %3628 = vmatprep.subr.bf16.mxu0 %v2577
      %3629 = vmatpush1.bf16.msra.mxu0 %v2576
      %3630 = vmatprep.subr.bf16.mxu0 %v2580
      %3631 = vmatpush1.bf16.msra.mxu0 %v2579
      %3632 = vmatprep.subr.bf16.mxu0 %v2583
      %3633 = vmatpush1.bf16.msra.mxu0 %v2582
      %3634 = vmatprep.subr.bf16.mxu0 %v2586
      %3635 = vmatpush1.bf16.msra.mxu0 %v2585
      %3636 = vmatprep.subr.bf16.mxu0 %v2589
      %3637 = vmatpush1.bf16.msra.mxu0 %v2588
      %3638 = vmatprep.subr.bf16.mxu0 %v2592
      %3639 = vmatpush1.bf16.msra.mxu0 %v2591
      %3640 = vmatprep.subr.bf16.mxu0 %v2595
      %3641 = vmatpush1.bf16.msra.mxu0 %v2594
      %3642 = vmatprep.subr.bf16.mxu0 %v2598
      %3643 = vmatpush1.bf16.msra.mxu0 %v2597
      %3644 = vmatprep.subr.bf16.mxu0 %v2601
      %3645 = vmatpush1.bf16.msra.mxu0 %v2600
      %3646 = vmatprep.subr.bf16.mxu0 %v2604
      %3647 = vmatpush1.bf16.msra.mxu0 %v2603
      %3648 = vmatprep.subr.bf16.mxu0 %v2607
      %3649 = vmatpush1.bf16.msra.mxu0 %v2606
      %3650 = vmatprep.subr.bf16.mxu0 %v2610
      %3651 = vmatpush1.bf16.msra.mxu0 %v2609
      %3652 = vmatprep.subr.bf16.mxu0 0
      %3653 = vmatpush1.bf16.msra.mxu0 0
      %3654 = vmatprep.subr.bf16.mxu0 0
      %3655 = vmatpush1.bf16.msra.mxu0 0
      %3656 = vmatprep.subr.bf16.mxu0 0
      %3657 = vmatpush1.bf16.msra.mxu0 0
      %3658 = vmatprep.subr.bf16.mxu0 0
      %3659 = vmatpush1.bf16.msra.mxu0 0
      %3660 = vmatprep.mubr.bf16.mxu0 %v1603
      %3661 = vmatmul.mubr.bf16.gmra.mrb[0].mxu0 %v868
      %v3662 = vpop.f32.mrb[0].mxu0
      %v3663 = vadd.f32 %v3602, %v3662
      %v3664 = vpop.f32.mrb[0].mxu0
      %v3665 = vadd.f32 %v3604, %v3664
      %v3666 = vpop.f32.mrb[0].mxu0
      %v3667 = vadd.f32 %v3606, %v3666
      %v3668 = vpop.f32.mrb[0].mxu0
      %v3669 = vadd.f32 %v3608, %v3668
      %3670 = vmatprep.mubr.bf16.mxu0 %v1606
      %3671 = vmatmul.mubr.bf16.gmra.mrb[0].mxu0 %v874
      %v3672 = vpop.f32.mrb[0].mxu0
      %v3673 = vadd.f32 %v3612, %v3672
      %v3674 = vpop.f32.mrb[0].mxu0
      %v3675 = vadd.f32 %v3614, %v3674
      %v3676 = vpop.f32.mrb[0].mxu0
      %v3677 = vadd.f32 %v3616, %v3676
      %v3678 = vpop.f32.mrb[0].mxu0
      %v3679 = vadd.f32 %v3618, %v3678
      %3680 = vmatprep.mubr.bf16.mxu0 %v1609
      %3681 = vmatmul.mubr.bf16.gmra.mrb[0].mxu0 %v880
      %v3682 = vpop.f32.mrb[0].mxu0
      %v3683 = vadd.f32 %v3622, %v3682
      %v3684 = vpop.f32.mrb[0].mxu0
      %v3685 = vadd.f32 %v3624, %v3684
      %v3686 = vpop.f32.mrb[0].mxu0
      %v3687 = vpop.f32.mrb[0].mxu0
      %3688 = vdwg.mxu0
      %3689 = vmatprep.subr.bf16.mxu0 0
      %3690 = vmatpush1.bf16.msra.mxu0 %v2482
      %3691 = vmatprep.subr.bf16.mxu0 0
      %3692 = vmatpush1.bf16.msra.mxu0 %v2485
      %3693 = vmatprep.subr.bf16.mxu0 0
      %3694 = vmatpush1.bf16.msra.mxu0 %v2488
      %3695 = vmatprep.subr.bf16.mxu0 0
      %3696 = vmatpush1.bf16.msra.mxu0 %v2491
      %3697 = vmatprep.subr.bf16.mxu0 0
      %3698 = vmatpush1.bf16.msra.mxu0 %v2494
      %3699 = vmatprep.subr.bf16.mxu0 0
      %3700 = vmatpush1.bf16.msra.mxu0 %v2497
      %3701 = vmatprep.subr.bf16.mxu0 0
      %3702 = vmatpush1.bf16.msra.mxu0 %v2500
      %3703 = vmatprep.subr.bf16.mxu0 0
      %3704 = vmatpush1.bf16.msra.mxu0 %v2503
      %3705 = vmatprep.subr.bf16.mxu0 0
      %3706 = vmatpush1.bf16.msra.mxu0 %v2506
      %3707 = vmatprep.subr.bf16.mxu0 0
      %3708 = vmatpush1.bf16.msra.mxu0 %v2509
      %3709 = vmatprep.subr.bf16.mxu0 0
      %3710 = vmatpush1.bf16.msra.mxu0 %v2512
      %3711 = vmatprep.subr.bf16.mxu0 0
      %3712 = vmatpush1.bf16.msra.mxu0 %v2515
      %3713 = vmatprep.subr.bf16.mxu0 0
      %3714 = vmatpush1.bf16.msra.mxu0 %v2518
      %3715 = vmatprep.subr.bf16.mxu0 0
      %3716 = vmatpush1.bf16.msra.mxu0 %v2521
      %3717 = vmatprep.subr.bf16.mxu0 0
      %3718 = vmatpush1.bf16.msra.mxu0 %v2524
      %3719 = vmatprep.subr.bf16.mxu0 0
      %3720 = vmatpush1.bf16.msra.mxu0 %v2527
      %3721 = vmatprep.mubr.bf16.mxu0 %v865
      %3722 = vmatmul.mubr.bf16.gmra.mrb[0].mxu0 %v864
      %v3723 = vpop.f32.mrb[0].mxu0
      %v3724 = vadd.f32 %v3485, %v3723
      %v3725 = vpop.f32.mrb[0].mxu0
      %v3726 = vpop.f32.mrb[0].mxu0
      %v3727 = vadd.f32 %v3488, %v3726
      %v3728 = vpop.f32.mrb[0].mxu0
      %3729 = vmatprep.mubr.bf16.mxu0 %v871
      %3730 = vmatmul.mubr.bf16.gmra.mrb[0].mxu0 %v870
      %v3731 = vpop.f32.mrb[0].mxu0
      %v3732 = vadd.f32 %v3493, %v3731
      %v3733 = vpop.f32.mrb[0].mxu0
      %v3734 = vpop.f32.mrb[0].mxu0
      %v3735 = vadd.f32 %v3496, %v3734
      %v3736 = vpop.f32.mrb[0].mxu0
      %3737 = vmatprep.mubr.bf16.mxu0 %v877
      %3738 = vmatmul.mubr.bf16.gmra.mrb[0].mxu0 %v876
      %v3739 = vpop.f32.mrb[0].mxu0
      %v3740 = vadd.f32 %v3501, %v3739
      %v3741 = vpop.f32.mrb[0].mxu0
      %v3742 = vpop.f32.mrb[0].mxu0
      %v3743 = vpop.f32.mrb[0].mxu0
      %3744 = vdwg.mxu0
      %3745 = vmatprep.subr.bf16.mxu0 0
      %3746 = vmatpush1.bf16.msra.mxu0 %v2530
      %3747 = vmatprep.subr.bf16.mxu0 0
      %3748 = vmatpush1.bf16.msra.mxu0 %v2533
      %3749 = vmatprep.subr.bf16.mxu0 0
      %3750 = vmatpush1.bf16.msra.mxu0 %v2536
      %3751 = vmatprep.subr.bf16.mxu0 0
      %3752 = vmatpush1.bf16.msra.mxu0 %v2539
      %3753 = vmatprep.subr.bf16.mxu0 0
      %3754 = vmatpush1.bf16.msra.mxu0 %v2542
      %3755 = vmatprep.subr.bf16.mxu0 0
      %3756 = vmatpush1.bf16.msra.mxu0 %v2545
      %3757 = vmatprep.subr.bf16.mxu0 0
      %3758 = vmatpush1.bf16.msra.mxu0 %v2548
      %3759 = vmatprep.subr.bf16.mxu0 0
      %3760 = vmatpush1.bf16.msra.mxu0 %v2551
      %3761 = vmatprep.subr.bf16.mxu0 0
      %3762 = vmatpush1.bf16.msra.mxu0 %v2554
      %3763 = vmatprep.subr.bf16.mxu0 0
      %3764 = vmatpush1.bf16.msra.mxu0 %v2557
      %3765 = vmatprep.subr.bf16.mxu0 0
      %3766 = vmatpush1.bf16.msra.mxu0 %v2560
      %3767 = vmatprep.subr.bf16.mxu0 0
      %3768 = vmatpush1.bf16.msra.mxu0 %v2563
      %3769 = vmatprep.subr.bf16.mxu0 0
      %3770 = vmatpush1.bf16.msra.mxu0 %v2566
      %3771 = vmatprep.subr.bf16.mxu0 0
      %3772 = vmatpush1.bf16.msra.mxu0 %v2569
      %3773 = vmatprep.subr.bf16.mxu0 0
      %3774 = vmatpush1.bf16.msra.mxu0 %v2572
      %3775 = vmatprep.subr.bf16.mxu0 0
      %3776 = vmatpush1.bf16.msra.mxu0 %v2575
      %3777 = vmatprep.mubr.bf16.mxu0 %v867
      %3778 = vmatmul.mubr.bf16.gmra.mrb[0].mxu0 %v866
      %v3779 = vpop.f32.mrb[0].mxu0
      %v3780 = vadd.f32 %v3724, %v3779
      %v3781 = vpop.f32.mrb[0].mxu0
      %v3782 = vpop.f32.mrb[0].mxu0
      %v3783 = vadd.f32 %v3727, %v3782
      %v3784 = vpop.f32.mrb[0].mxu0
      %3785 = vmatprep.mubr.bf16.mxu0 %v873
      %3786 = vmatmul.mubr.bf16.gmra.mrb[0].mxu0 %v872
      %v3787 = vpop.f32.mrb[0].mxu0
      %v3788 = vadd.f32 %v3732, %v3787
      %v3789 = vpop.f32.mrb[0].mxu0
      %v3790 = vpop.f32.mrb[0].mxu0
      %v3791 = vadd.f32 %v3735, %v3790
      %v3792 = vpop.f32.mrb[0].mxu0
      %3793 = vmatprep.mubr.bf16.mxu0 %v879
      %3794 = vmatmul.mubr.bf16.gmra.mrb[0].mxu0 %v878
      %v3795 = vpop.f32.mrb[0].mxu0
      %v3796 = vadd.f32 %v3740, %v3795
      %v3797 = vpop.f32.mrb[0].mxu0
      %v3798 = vpop.f32.mrb[0].mxu0
      %v3799 = vpop.f32.mrb[0].mxu0
      %3800 = vdwg.mxu0
      %3801 = vmatprep.subr.bf16.mxu0 0
      %3802 = vmatpush1.bf16.msra.mxu0 %v2578
      %3803 = vmatprep.subr.bf16.mxu0 0
      %3804 = vmatpush1.bf16.msra.mxu0 %v2581
      %3805 = vmatprep.subr.bf16.mxu0 0
      %3806 = vmatpush1.bf16.msra.mxu0 %v2584
      %3807 = vmatprep.subr.bf16.mxu0 0
      %3808 = vmatpush1.bf16.msra.mxu0 %v2587
      %3809 = vmatprep.subr.bf16.mxu0 0
      %3810 = vmatpush1.bf16.msra.mxu0 %v2590
      %3811 = vmatprep.subr.bf16.mxu0 0
      %3812 = vmatpush1.bf16.msra.mxu0 %v2593
      %3813 = vmatprep.subr.bf16.mxu0 0
      %3814 = vmatpush1.bf16.msra.mxu0 %v2596
      %3815 = vmatprep.subr.bf16.mxu0 0
      %3816 = vmatpush1.bf16.msra.mxu0 %v2599
      %3817 = vmatprep.subr.bf16.mxu0 0
      %3818 = vmatpush1.bf16.msra.mxu0 %v2602
      %3819 = vmatprep.subr.bf16.mxu0 0
      %3820 = vmatpush1.bf16.msra.mxu0 %v2605
      %3821 = vmatprep.subr.bf16.mxu0 0
      %3822 = vmatpush1.bf16.msra.mxu0 %v2608
      %3823 = vmatprep.subr.bf16.mxu0 0
      %3824 = vmatpush1.bf16.msra.mxu0 %v2611
      %3825 = vmatprep.subr.bf16.mxu0 0
      %3826 = vmatpush1.bf16.msra.mxu0 0
      %3827 = vmatprep.subr.bf16.mxu0 0
      %3828 = vmatpush1.bf16.msra.mxu0 0
      %3829 = vmatprep.subr.bf16.mxu0 0
      %3830 = vmatpush1.bf16.msra.mxu0 0
      %3831 = vmatprep.subr.bf16.mxu0 0
      %3832 = vmatpush1.bf16.msra.mxu0 0
      %3833 = vmatprep.mubr.bf16.mxu0 %v1603
      %3834 = vmatmul.mubr.bf16.gmra.mrb[0].mxu0 %v868
      %v3835 = vpop.f32.mrb[0].mxu0
      %v3836 = vadd.f32 %v3780, %v3835
      %v3837 = vpop.f32.mrb[0].mxu0
      %v3838 = vpop.f32.mrb[0].mxu0
      %v3839 = vadd.f32 %v3783, %v3838
      %v3840 = vpop.f32.mrb[0].mxu0
      %3841 = vmatprep.mubr.bf16.mxu0 %v1606
      %3842 = vmatmul.mubr.bf16.gmra.mrb[0].mxu0 %v874
      %v3843 = vpop.f32.mrb[0].mxu0
      %v3844 = vadd.f32 %v3788, %v3843
      %v3845 = vpop.f32.mrb[0].mxu0
      %v3846 = vpop.f32.mrb[0].mxu0
      %v3847 = vadd.f32 %v3791, %v3846
      %v3848 = vpop.f32.mrb[0].mxu0
      %3849 = vmatprep.mubr.bf16.mxu0 %v1609
      %3850 = vmatmul.mubr.bf16.gmra.mrb[0].mxu0 %v880
      %v3851 = vpop.f32.mrb[0].mxu0
      %v3852 = vadd.f32 %v3796, %v3851
      %v3853 = vpop.f32.mrb[0].mxu0
      %v3854 = vpop.f32.mrb[0].mxu0
      %v3855 = vpop.f32.mrb[0].mxu0
      %3856 = vdwg.mxu0
      %v3857 = vld [vmem:[%s3] sm:$0x7]
      %v3859 = vlaneseq
      %v3860 = vshrl.u32 %v3859, 7
      %v3861 = vsub.s32 0, %v3860
      %v3862 = vrot.slane %v3857, %v3861
      %v3863 = vlaneseq
      %v3864 = vshrl.u32 %v3863, 7
      %v3865 = vsub.s32 1, %v3864
      %v3866 = vrot.slane %v3857, %v3865
      %v3867 = vlaneseq
      %v3868 = vshrl.u32 %v3867, 7
      %v3869 = vsub.s32 2, %v3868
      %v3870 = vrot.slane %v3857, %v3869
      %v3874 = vadd.f32 %v2910, %v3862
      %v3875 = vadd.f32 %v2912, %v3866
      %v3876 = vadd.f32 %v3083, %v3870
      %v3877 = vadd.f32 %v2914, %v3862
      %v3878 = vadd.f32 %v2916, %v3866
      %v3879 = vadd.f32 %v3086, %v3870
      %v3880 = vadd.f32 %v2920, %v3862
      %v3881 = vadd.f32 %v2922, %v3866
      %v3882 = vadd.f32 %v3091, %v3870
      %v3883 = vadd.f32 %v2924, %v3862
      %v3884 = vadd.f32 %v2926, %v3866
      %v3885 = vadd.f32 %v3094, %v3870
      %v3886 = vadd.f32 %v2930, %v3862
      %v3887 = vadd.f32 %v2932, %v3866
      %v3888 = vadd.f32 %v3099, %v3870
      %v3889 = vmax.f32 %v3874, 0.0
      %v3890 = vmax.f32 %v3875, 0.0
      %v3891 = vmax.f32 %v3876, 0.0
      %v3892 = vmax.f32 %v3877, 0.0
      %v3893 = vmax.f32 %v3878, 0.0
      %v3894 = vmax.f32 %v3879, 0.0
      %v3895 = vmax.f32 %v3880, 0.0
      %v3896 = vmax.f32 %v3881, 0.0
      %v3897 = vmax.f32 %v3882, 0.0
      %v3898 = vmax.f32 %v3883, 0.0
      %v3899 = vmax.f32 %v3884, 0.0
      %v3900 = vmax.f32 %v3885, 0.0
      %v3901 = vmax.f32 %v3886, 0.0
      %v3902 = vmax.f32 %v3887, 0.0
      %v3903 = vmax.f32 %v3888, 0.0
      %v3904 = vpack.c.bf16 %v3892, %v3889
      %v3905 = vpack.c.bf16 %v3893, %v3890
      %v3906 = vpack.c.bf16 %v3894, %v3891
      %v3907 = vpack.c.bf16 %v3898, %v3895
      %v3908 = vpack.c.bf16 %v3899, %v3896
      %v3909 = vpack.c.bf16 %v3900, %v3897
      %v3910 = vpack.c.bf16 %v3901, %v3901
      %v3911 = vpack.c.bf16 %v3902, %v3902
      %v3912 = vpack.c.bf16 %v3903, %v3903
      %v3913 = vadd.f32 %v3663, %v3862
      %v3914 = vadd.f32 %v3665, %v3866
      %v3915 = vadd.f32 %v3836, %v3870
      %v3916 = vadd.f32 %v3667, %v3862
      %v3917 = vadd.f32 %v3669, %v3866
      %v3918 = vadd.f32 %v3839, %v3870
      %v3919 = vadd.f32 %v3673, %v3862
      %v3920 = vadd.f32 %v3675, %v3866
      %v3921 = vadd.f32 %v3844, %v3870
      %v3922 = vadd.f32 %v3677, %v3862
      %v3923 = vadd.f32 %v3679, %v3866
      %v3924 = vadd.f32 %v3847, %v3870
      %v3925 = vadd.f32 %v3683, %v3862
      %v3926 = vadd.f32 %v3685, %v3866
      %v3927 = vadd.f32 %v3852, %v3870
      %v3928 = vmax.f32 %v3913, 0.0
      %v3929 = vmax.f32 %v3914, 0.0
      %v3930 = vmax.f32 %v3915, 0.0
      %v3931 = vmax.f32 %v3916, 0.0
      %v3932 = vmax.f32 %v3917, 0.0
      %v3933 = vmax.f32 %v3918, 0.0
      %v3934 = vmax.f32 %v3919, 0.0
      %v3935 = vmax.f32 %v3920, 0.0
      %v3936 = vmax.f32 %v3921, 0.0
      %v3937 = vmax.f32 %v3922, 0.0
      %v3938 = vmax.f32 %v3923, 0.0
      %v3939 = vmax.f32 %v3924, 0.0
      %v3940 = vmax.f32 %v3925, 0.0
      %v3941 = vmax.f32 %v3926, 0.0
      %v3942 = vmax.f32 %v3927, 0.0
      %v3943 = vpack.c.bf16 %v3931, %v3928
      %v3944 = vpack.c.bf16 %v3932, %v3929
      %v3945 = vpack.c.bf16 %v3933, %v3930
      %v3946 = vpack.c.bf16 %v3937, %v3934
      %v3947 = vpack.c.bf16 %v3938, %v3935
      %v3948 = vpack.c.bf16 %v3939, %v3936
      %v3949 = vpack.c.bf16 %v3940, %v3940
      %v3950 = vpack.c.bf16 %v3941, %v3941
      %v3951 = vpack.c.bf16 %v3942, %v3942
      %v3952 = vld [vmem:[%s4] sm:$0xff]
      %v3953 = vld [vmem:[%s4 + $0x8] sm:$0xff]
      %v3954 = vld [vmem:[%s4 + $0x10] sm:$0xff]
      %v3955 = vld [vmem:[%s4 + $0x18] sm:$0xff]
      %v3956 = vld [vmem:[%s4 + $0x20] sm:$0xff]
      %v3957 = vld [vmem:[%s4 + $0x28] sm:$0xff]
      %v3958 = vld [vmem:[%s4 + $0x30] sm:$0xff]
      %v3959 = vld [vmem:[%s4 + $0x38] sm:$0xff]
      %v3960 = vld [vmem:[%s4 + $0x40] sm:$0xff]
      %v3961 = vld [vmem:[%s4 + $0x48] sm:$0xff]
      %v3962 = vld [vmem:[%s4 + $0x50] sm:$0xff]
      %v3963 = vld [vmem:[%s4 + $0x58] sm:$0xff]
      %v3964 = vld [vmem:[%s4 + $0x60] sm:$0xff]
      %v3965 = vld [vmem:[%s4 + $0x68] sm:$0xff]
      %v3966 = vld [vmem:[%s4 + $0x70] sm:$0xff]
      %v3967 = vld [vmem:[%s4 + $0x78] sm:$0xff]
      %v3968 = vld [vmem:[%s4 + $0x80] sm:$0xff]
      %v3969 = vld [vmem:[%s4 + $0x88] sm:$0xff]
      %v3970 = vld [vmem:[%s4 + $0x90] sm:$0xff]
      %v3971 = vld [vmem:[%s4 + $0x98] sm:$0xff]
      %v3972 = vld [vmem:[%s4 + $0xa0] sm:$0xff]
      %v3973 = vld [vmem:[%s4 + $0xa8] sm:$0xff]
      %v3974 = vld [vmem:[%s4 + $0xb0] sm:$0xff]
      %v3975 = vld [vmem:[%s4 + $0xb8] sm:$0xff]
      %v3976 = vld [vmem:[%s4 + $0xc0] sm:$0xff]
      %v3977 = vld [vmem:[%s4 + $0xc8] sm:$0xff]
      %v3978 = vld [vmem:[%s4 + $0xd0] sm:$0xff]
      %v3979 = vld [vmem:[%s4 + $0xd8] sm:$0xff]
      %v3980 = vld [vmem:[%s4 + $0xe0] sm:$0xff]
      %v3981 = vld [vmem:[%s4 + $0xe8] sm:$0xff]
      %v3982 = vld [vmem:[%s4 + $0xf0] sm:$0xff]
      %v3983 = vld [vmem:[%s4 + $0xf8] sm:$0xff]
      %v3984 = vld [vmem:[%s4 + $0x100] sm:$0xff]
      %v3985 = vld [vmem:[%s4 + $0x108] sm:$0xff]
      %v3986 = vld [vmem:[%s4 + $0x110] sm:$0xff]
      %v3987 = vld [vmem:[%s4 + $0x118] sm:$0xff]
      %v3988 = vld [vmem:[%s4 + $0x120] sm:$0xff]
      %v3989 = vld [vmem:[%s4 + $0x128] sm:$0xff]
      %v3990 = vld [vmem:[%s4 + $0x130] sm:$0xff]
      %v3991 = vld [vmem:[%s4 + $0x138] sm:$0xff]
      %s3992 = scalar_lea.vmem %s4, 320
      %v3993 = vld [vmem:[%s3992] sm:$0xff]
      %v3994 = vld [vmem:[%s3992 + $0x8] sm:$0xff]
      %v3995 = vld [vmem:[%s3992 + $0x10] sm:$0xff]
      %v3996 = vld [vmem:[%s3992 + $0x18] sm:$0xff]
      %v3997 = vld [vmem:[%s3992 + $0x20] sm:$0xff]
      %v3998 = vld [vmem:[%s3992 + $0x28] sm:$0xff]
      %v3999 = vld [vmem:[%s3992 + $0x30] sm:$0xff]
      %v4000 = vld [vmem:[%s3992 + $0x38] sm:$0xff]
      %v4001 = vld [vmem:[%s3992 + $0x40] sm:$0xff]
      %v4002 = vld [vmem:[%s3992 + $0x48] sm:$0xff]
      %v4003 = vld [vmem:[%s3992 + $0x50] sm:$0xff]
      %v4004 = vld [vmem:[%s3992 + $0x58] sm:$0xff]
      %v4005 = vld [vmem:[%s3992 + $0x60] sm:$0xff]
      %v4006 = vld [vmem:[%s3992 + $0x68] sm:$0xff]
      %v4007 = vld [vmem:[%s3992 + $0x70] sm:$0xff]
      %v4008 = vld [vmem:[%s3992 + $0x78] sm:$0xff]
      %v4009 = vld [vmem:[%s3992 + $0x80] sm:$0xff]
      %v4010 = vld [vmem:[%s3992 + $0x88] sm:$0xff]
      %v4011 = vld [vmem:[%s3992 + $0x90] sm:$0xff]
      %v4012 = vld [vmem:[%s3992 + $0x98] sm:$0xff]
      %v4013 = vld [vmem:[%s3992 + $0xa0] sm:$0xff]
      %v4014 = vld [vmem:[%s3992 + $0xa8] sm:$0xff]
      %v4015 = vld [vmem:[%s3992 + $0xb0] sm:$0xff]
      %v4016 = vld [vmem:[%s3992 + $0xb8] sm:$0xff]
      %v4017 = vld [vmem:[%s3992 + $0xc0] sm:$0xff]
      %v4018 = vld [vmem:[%s3992 + $0xc8] sm:$0xff]
      %v4019 = vld [vmem:[%s3992 + $0xd0] sm:$0xff]
      %v4020 = vld [vmem:[%s3992 + $0xd8] sm:$0xff]
      %v4021 = vld [vmem:[%s3992 + $0xe0] sm:$0xff]
      %v4022 = vld [vmem:[%s3992 + $0xe8] sm:$0xff]
      %v4023 = vld [vmem:[%s3992 + $0xf0] sm:$0xff]
      %v4024 = vld [vmem:[%s3992 + $0xf8] sm:$0xff]
      %v4025 = vld [vmem:[%s3992 + $0x100] sm:$0xff]
      %v4026 = vld [vmem:[%s3992 + $0x108] sm:$0xff]
      %v4027 = vld [vmem:[%s3992 + $0x110] sm:$0xff]
      %v4028 = vld [vmem:[%s3992 + $0x118] sm:$0xff]
      %v4029 = vld [vmem:[%s3992 + $0x120] sm:$0xff]
      %v4030 = vld [vmem:[%s3992 + $0x128] sm:$0xff]
      %v4031 = vld [vmem:[%s3992 + $0x130] sm:$0xff]
      %v4032 = vld [vmem:[%s3992 + $0x138] sm:$0xff]
      %v4073 = vunpack.c.l.b16 %v3993
      %v4074 = vunpack.c.h.b16 %v3993
      %v4075 = vunpack.c.l.b16 %v3994
      %v4076 = vunpack.c.h.b16 %v3994
      %v4077 = vunpack.c.l.b16 %v3995
      %v4078 = vunpack.c.h.b16 %v3995
      %v4079 = vunpack.c.l.b16 %v3996
      %v4080 = vunpack.c.h.b16 %v3996
      %v4081 = vunpack.c.l.b16 %v3997
      %v4082 = vunpack.c.h.b16 %v3997
      %v4083 = vunpack.c.l.b16 %v3998
      %v4084 = vunpack.c.h.b16 %v3998
      %v4085 = vunpack.c.l.b16 %v3999
      %v4086 = vunpack.c.h.b16 %v3999
      %v4087 = vunpack.c.l.b16 %v4000
      %v4088 = vunpack.c.h.b16 %v4000
      %v4089 = vunpack.c.l.b16 %v4001
      %v4090 = vunpack.c.h.b16 %v4001
      %v4091 = vunpack.c.l.b16 %v4002
      %v4092 = vunpack.c.h.b16 %v4002
      %v4093 = vunpack.c.l.b16 %v4003
      %v4094 = vunpack.c.h.b16 %v4003
      %v4095 = vunpack.c.l.b16 %v4004
      %v4096 = vunpack.c.h.b16 %v4004
      %v4097 = vunpack.c.l.b16 %v4005
      %v4098 = vunpack.c.h.b16 %v4005
      %v4099 = vunpack.c.l.b16 %v4006
      %v4100 = vunpack.c.h.b16 %v4006
      %v4101 = vunpack.c.l.b16 %v4007
      %v4102 = vunpack.c.h.b16 %v4007
      %v4103 = vunpack.c.l.b16 %v4008
      %v4104 = vunpack.c.h.b16 %v4008
      %v4105 = vunpack.c.l.b16 %v4009
      %v4106 = vunpack.c.h.b16 %v4009
      %v4107 = vunpack.c.l.b16 %v4010
      %v4108 = vunpack.c.h.b16 %v4010
      %v4109 = vunpack.c.l.b16 %v4011
      %v4110 = vunpack.c.h.b16 %v4011
      %v4111 = vunpack.c.l.b16 %v4012
      %v4112 = vunpack.c.h.b16 %v4012
      %v4113 = vunpack.c.l.b16 %v4013
      %v4114 = vunpack.c.h.b16 %v4013
      %v4115 = vunpack.c.l.b16 %v4014
      %v4116 = vunpack.c.h.b16 %v4014
      %v4117 = vunpack.c.l.b16 %v4015
      %v4118 = vunpack.c.h.b16 %v4015
      %v4119 = vunpack.c.l.b16 %v4016
      %v4120 = vunpack.c.h.b16 %v4016
      %v4121 = vunpack.c.l.b16 %v4017
      %v4122 = vunpack.c.h.b16 %v4017
      %v4123 = vunpack.c.l.b16 %v4018
      %v4124 = vunpack.c.h.b16 %v4018
      %v4125 = vunpack.c.l.b16 %v4019
      %v4126 = vunpack.c.h.b16 %v4019
      %v4127 = vunpack.c.l.b16 %v4020
      %v4128 = vunpack.c.h.b16 %v4020
      %v4129 = vunpack.c.l.b16 %v4021
      %v4130 = vunpack.c.h.b16 %v4021
      %v4131 = vunpack.c.l.b16 %v4022
      %v4132 = vunpack.c.h.b16 %v4022
      %v4133 = vunpack.c.l.b16 %v4023
      %v4134 = vunpack.c.h.b16 %v4023
      %v4135 = vunpack.c.l.b16 %v4024
      %v4136 = vunpack.c.h.b16 %v4024
      %v4137 = vunpack.c.l.b16 %v4025
      %v4138 = vunpack.c.h.b16 %v4025
      %v4139 = vunpack.c.l.b16 %v4026
      %v4140 = vunpack.c.h.b16 %v4026
      %v4141 = vunpack.c.l.b16 %v4027
      %v4142 = vunpack.c.h.b16 %v4027
      %v4143 = vunpack.c.l.b16 %v4028
      %v4144 = vunpack.c.h.b16 %v4028
      %v4145 = vunpack.c.l.b16 %v4029
      %v4146 = vunpack.c.h.b16 %v4029
      %v4147 = vunpack.c.l.b16 %v4030
      %v4148 = vunpack.c.h.b16 %v4030
      %v4149 = vunpack.c.l.b16 %v4031
      %v4150 = vunpack.c.h.b16 %v4031
      %v4151 = vunpack.c.l.b16 %v4032
      %v4152 = vunpack.c.h.b16 %v4032
      %v4153 = vpack.c.b16 %v4075, %v4073
      %v4154 = vpack.c.b16 %v4076, %v4074
      %v4155 = vpack.c.b16 %v4079, %v4077
      %v4156 = vpack.c.b16 %v4080, %v4078
      %v4157 = vpack.c.b16 %v4083, %v4081
      %v4158 = vpack.c.b16 %v4084, %v4082
      %v4159 = vpack.c.b16 %v4087, %v4085
      %v4160 = vpack.c.b16 %v4088, %v4086
      %v4161 = vpack.c.b16 %v4091, %v4089
      %v4162 = vpack.c.b16 %v4092, %v4090
      %v4163 = vpack.c.b16 %v4095, %v4093
      %v4164 = vpack.c.b16 %v4096, %v4094
      %v4165 = vpack.c.b16 %v4099, %v4097
      %v4166 = vpack.c.b16 %v4100, %v4098
      %v4167 = vpack.c.b16 %v4103, %v4101
      %v4168 = vpack.c.b16 %v4104, %v4102
      %v4169 = vpack.c.b16 %v4107, %v4105
      %v4170 = vpack.c.b16 %v4108, %v4106
      %v4171 = vpack.c.b16 %v4111, %v4109
      %v4172 = vpack.c.b16 %v4112, %v4110
      %v4173 = vpack.c.b16 %v4115, %v4113
      %v4174 = vpack.c.b16 %v4116, %v4114
      %v4175 = vpack.c.b16 %v4119, %v4117
      %v4176 = vpack.c.b16 %v4120, %v4118
      %v4177 = vpack.c.b16 %v4123, %v4121
      %v4178 = vpack.c.b16 %v4124, %v4122
      %v4179 = vpack.c.b16 %v4127, %v4125
      %v4180 = vpack.c.b16 %v4128, %v4126
      %v4181 = vpack.c.b16 %v4131, %v4129
      %v4182 = vpack.c.b16 %v4132, %v4130
      %v4183 = vpack.c.b16 %v4135, %v4133
      %v4184 = vpack.c.b16 %v4136, %v4134
      %v4185 = vpack.c.b16 %v4139, %v4137
      %v4186 = vpack.c.b16 %v4140, %v4138
      %v4187 = vpack.c.b16 %v4143, %v4141
      %v4188 = vpack.c.b16 %v4144, %v4142
      %v4189 = vpack.c.b16 %v4147, %v4145
      %v4190 = vpack.c.b16 %v4148, %v4146
      %v4191 = vpack.c.b16 %v4151, %v4149
      %v4192 = vpack.c.b16 %v4152, %v4150
      %v4234 = vsel %vm1601, %v3945, 0
      %v4237 = vsel %vm1601, %v3948, 0
      %4239 = vmatprep.subr.bf16.mxu0 %v4154
      %4240 = vmatpush1.bf16.msra.mxu0 %v4153
      %4241 = vmatprep.subr.bf16.mxu0 %v4156
      %4242 = vmatpush1.bf16.msra.mxu0 %v4155
      %4243 = vmatprep.subr.bf16.mxu0 %v4158
      %4244 = vmatpush1.bf16.msra.mxu0 %v4157
      %4245 = vmatprep.subr.bf16.mxu0 %v4160
      %4246 = vmatpush1.bf16.msra.mxu0 %v4159
      %4247 = vmatprep.subr.bf16.mxu0 %v4162
      %4248 = vmatpush1.bf16.msra.mxu0 %v4161
      %4249 = vmatprep.subr.bf16.mxu0 %v4164
      %4250 = vmatpush1.bf16.msra.mxu0 %v4163
      %4251 = vmatprep.subr.bf16.mxu0 %v4166
      %4252 = vmatpush1.bf16.msra.mxu0 %v4165
      %4253 = vmatprep.subr.bf16.mxu0 %v4168
      %4254 = vmatpush1.bf16.msra.mxu0 %v4167
      %4255 = vmatprep.subr.bf16.mxu0 %v4170
      %4256 = vmatpush1.bf16.msra.mxu0 %v4169
      %4257 = vmatprep.subr.bf16.mxu0 %v4172
      %4258 = vmatpush1.bf16.msra.mxu0 %v4171
      %4259 = vmatprep.subr.bf16.mxu0 %v4174
      %4260 = vmatpush1.bf16.msra.mxu0 %v4173
      %4261 = vmatprep.subr.bf16.mxu0 %v4176
      %4262 = vmatpush1.bf16.msra.mxu0 %v4175
      %4263 = vmatprep.subr.bf16.mxu0 %v4178
      %4264 = vmatpush1.bf16.msra.mxu0 %v4177
      %4265 = vmatprep.subr.bf16.mxu0 %v4180
      %4266 = vmatpush1.bf16.msra.mxu0 %v4179
      %4267 = vmatprep.subr.bf16.mxu0 %v4182
      %4268 = vmatpush1.bf16.msra.mxu0 %v4181
      %4269 = vmatprep.subr.bf16.mxu0 %v4184
      %4270 = vmatpush1.bf16.msra.mxu0 %v4183
      %4271 = vmatprep.mubr.bf16.mxu0 %v3944
      %4272 = vmatmul.mubr.bf16.gmra.mrb[0].mxu0 %v3943
      %v4273 = vpop.f32.mrb[0].mxu0
      %v4274 = vadd.f32 0.0, %v4273
      %v4275 = vpop.f32.mrb[0].mxu0
      %v4276 = vadd.f32 0.0, %v4275
      %v4277 = vpop.f32.mrb[0].mxu0
      %v4278 = vadd.f32 0.0, %v4277
      %v4279 = vpop.f32.mrb[0].mxu0
      %v4280 = vadd.f32 0.0, %v4279
      %4281 = vmatprep.mubr.bf16.mxu0 %v3947
      %4282 = vmatmul.mubr.bf16.gmra.mrb[0].mxu0 %v3946
      %v4283 = vpop.f32.mrb[0].mxu0
      %v4284 = vadd.f32 0.0, %v4283
      %v4285 = vpop.f32.mrb[0].mxu0
      %v4286 = vadd.f32 0.0, %v4285
      %v4287 = vpop.f32.mrb[0].mxu0
      %v4288 = vadd.f32 0.0, %v4287
      %v4289 = vpop.f32.mrb[0].mxu0
      %v4290 = vadd.f32 0.0, %v4289
      %4291 = vdwg.mxu0
      %4292 = vmatprep.subr.bf16.mxu0 %v4186
      %4293 = vmatpush1.bf16.msra.mxu0 %v4185
      %4294 = vmatprep.subr.bf16.mxu0 %v4188
      %4295 = vmatpush1.bf16.msra.mxu0 %v4187
      %4296 = vmatprep.subr.bf16.mxu0 %v4190
      %4297 = vmatpush1.bf16.msra.mxu0 %v4189
      %4298 = vmatprep.subr.bf16.mxu0 %v4192
      %4299 = vmatpush1.bf16.msra.mxu0 %v4191
      %4300 = vmatprep.subr.bf16.mxu0 0
      %4301 = vmatpush1.bf16.msra.mxu0 0
      %4302 = vmatprep.subr.bf16.mxu0 0
      %4303 = vmatpush1.bf16.msra.mxu0 0
      %4304 = vmatprep.subr.bf16.mxu0 0
      %4305 = vmatpush1.bf16.msra.mxu0 0
      %4306 = vmatprep.subr.bf16.mxu0 0
      %4307 = vmatpush1.bf16.msra.mxu0 0
      %4308 = vmatprep.subr.bf16.mxu0 0
      %4309 = vmatpush1.bf16.msra.mxu0 0
      %4310 = vmatprep.subr.bf16.mxu0 0
      %4311 = vmatpush1.bf16.msra.mxu0 0
      %4312 = vmatprep.subr.bf16.mxu0 0
      %4313 = vmatpush1.bf16.msra.mxu0 0
      %4314 = vmatprep.subr.bf16.mxu0 0
      %4315 = vmatpush1.bf16.msra.mxu0 0
      %4316 = vmatprep.subr.bf16.mxu0 0
      %4317 = vmatpush1.bf16.msra.mxu0 0
      %4318 = vmatprep.subr.bf16.mxu0 0
      %4319 = vmatpush1.bf16.msra.mxu0 0
      %4320 = vmatprep.subr.bf16.mxu0 0
      %4321 = vmatpush1.bf16.msra.mxu0 0
      %4322 = vmatprep.subr.bf16.mxu0 0
      %4323 = vmatpush1.bf16.msra.mxu0 0
      %4324 = vmatprep.mubr.bf16.mxu0 0
      %4325 = vmatmul.mubr.bf16.gmra.mrb[0].mxu0 %v4234
      %v4326 = vpop.f32.mrb[0].mxu0
      %v4327 = vadd.f32 %v4274, %v4326
      %v4328 = vpop.f32.mrb[0].mxu0
      %v4329 = vadd.f32 %v4276, %v4328
      %v4330 = vpop.f32.mrb[0].mxu0
      %v4331 = vadd.f32 %v4278, %v4330
      %v4332 = vpop.f32.mrb[0].mxu0
      %v4333 = vadd.f32 %v4280, %v4332
      %4334 = vmatprep.mubr.bf16.mxu0 0
      %4335 = vmatmul.mubr.bf16.gmra.mrb[0].mxu0 %v4237
      %v4336 = vpop.f32.mrb[0].mxu0
      %v4337 = vadd.f32 %v4284, %v4336
      %v4338 = vpop.f32.mrb[0].mxu0
      %v4339 = vadd.f32 %v4286, %v4338
      %v4340 = vpop.f32.mrb[0].mxu0
      %v4341 = vadd.f32 %v4288, %v4340
      %v4342 = vpop.f32.mrb[0].mxu0
      %v4343 = vadd.f32 %v4290, %v4342
      %4344 = vdwg.mxu0
      %v4385 = vunpack.c.l.b16 %v3952
      %v4386 = vunpack.c.h.b16 %v3952
      %v4387 = vunpack.c.l.b16 %v3953
      %v4388 = vunpack.c.h.b16 %v3953
      %v4389 = vunpack.c.l.b16 %v3954
      %v4390 = vunpack.c.h.b16 %v3954
      %v4391 = vunpack.c.l.b16 %v3955
      %v4392 = vunpack.c.h.b16 %v3955
      %v4393 = vunpack.c.l.b16 %v3956
      %v4394 = vunpack.c.h.b16 %v3956
      %v4395 = vunpack.c.l.b16 %v3957
      %v4396 = vunpack.c.h.b16 %v3957
      %v4397 = vunpack.c.l.b16 %v3958
      %v4398 = vunpack.c.h.b16 %v3958
      %v4399 = vunpack.c.l.b16 %v3959
      %v4400 = vunpack.c.h.b16 %v3959
      %v4401 = vunpack.c.l.b16 %v3960
      %v4402 = vunpack.c.h.b16 %v3960
      %v4403 = vunpack.c.l.b16 %v3961
      %v4404 = vunpack.c.h.b16 %v3961
      %v4405 = vunpack.c.l.b16 %v3962
      %v4406 = vunpack.c.h.b16 %v3962
      %v4407 = vunpack.c.l.b16 %v3963
      %v4408 = vunpack.c.h.b16 %v3963
      %v4409 = vunpack.c.l.b16 %v3964
      %v4410 = vunpack.c.h.b16 %v3964
      %v4411 = vunpack.c.l.b16 %v3965
      %v4412 = vunpack.c.h.b16 %v3965
      %v4413 = vunpack.c.l.b16 %v3966
      %v4414 = vunpack.c.h.b16 %v3966
      %v4415 = vunpack.c.l.b16 %v3967
      %v4416 = vunpack.c.h.b16 %v3967
      %v4417 = vunpack.c.l.b16 %v3968
      %v4418 = vunpack.c.h.b16 %v3968
      %v4419 = vunpack.c.l.b16 %v3969
      %v4420 = vunpack.c.h.b16 %v3969
      %v4421 = vunpack.c.l.b16 %v3970
      %v4422 = vunpack.c.h.b16 %v3970
      %v4423 = vunpack.c.l.b16 %v3971
      %v4424 = vunpack.c.h.b16 %v3971
      %v4425 = vunpack.c.l.b16 %v3972
      %v4426 = vunpack.c.h.b16 %v3972
      %v4427 = vunpack.c.l.b16 %v3973
      %v4428 = vunpack.c.h.b16 %v3973
      %v4429 = vunpack.c.l.b16 %v3974
      %v4430 = vunpack.c.h.b16 %v3974
      %v4431 = vunpack.c.l.b16 %v3975
      %v4432 = vunpack.c.h.b16 %v3975
      %v4433 = vunpack.c.l.b16 %v3976
      %v4434 = vunpack.c.h.b16 %v3976
      %v4435 = vunpack.c.l.b16 %v3977
      %v4436 = vunpack.c.h.b16 %v3977
      %v4437 = vunpack.c.l.b16 %v3978
      %v4438 = vunpack.c.h.b16 %v3978
      %v4439 = vunpack.c.l.b16 %v3979
      %v4440 = vunpack.c.h.b16 %v3979
      %v4441 = vunpack.c.l.b16 %v3980
      %v4442 = vunpack.c.h.b16 %v3980
      %v4443 = vunpack.c.l.b16 %v3981
      %v4444 = vunpack.c.h.b16 %v3981
      %v4445 = vunpack.c.l.b16 %v3982
      %v4446 = vunpack.c.h.b16 %v3982
      %v4447 = vunpack.c.l.b16 %v3983
      %v4448 = vunpack.c.h.b16 %v3983
      %v4449 = vunpack.c.l.b16 %v3984
      %v4450 = vunpack.c.h.b16 %v3984
      %v4451 = vunpack.c.l.b16 %v3985
      %v4452 = vunpack.c.h.b16 %v3985
      %v4453 = vunpack.c.l.b16 %v3986
      %v4454 = vunpack.c.h.b16 %v3986
      %v4455 = vunpack.c.l.b16 %v3987
      %v4456 = vunpack.c.h.b16 %v3987
      %v4457 = vunpack.c.l.b16 %v3988
      %v4458 = vunpack.c.h.b16 %v3988
      %v4459 = vunpack.c.l.b16 %v3989
      %v4460 = vunpack.c.h.b16 %v3989
      %v4461 = vunpack.c.l.b16 %v3990
      %v4462 = vunpack.c.h.b16 %v3990
      %v4463 = vunpack.c.l.b16 %v3991
      %v4464 = vunpack.c.h.b16 %v3991
      %v4465 = vpack.c.b16 %v4387, %v4385
      %v4466 = vpack.c.b16 %v4388, %v4386
      %v4467 = vpack.c.b16 %v4391, %v4389
      %v4468 = vpack.c.b16 %v4392, %v4390
      %v4469 = vpack.c.b16 %v4395, %v4393
      %v4470 = vpack.c.b16 %v4396, %v4394
      %v4471 = vpack.c.b16 %v4399, %v4397
      %v4472 = vpack.c.b16 %v4400, %v4398
      %v4473 = vpack.c.b16 %v4403, %v4401
      %v4474 = vpack.c.b16 %v4404, %v4402
      %v4475 = vpack.c.b16 %v4407, %v4405
      %v4476 = vpack.c.b16 %v4408, %v4406
      %v4477 = vpack.c.b16 %v4411, %v4409
      %v4478 = vpack.c.b16 %v4412, %v4410
      %v4479 = vpack.c.b16 %v4415, %v4413
      %v4480 = vpack.c.b16 %v4416, %v4414
      %v4481 = vpack.c.b16 %v4419, %v4417
      %v4482 = vpack.c.b16 %v4420, %v4418
      %v4483 = vpack.c.b16 %v4423, %v4421
      %v4484 = vpack.c.b16 %v4424, %v4422
      %v4485 = vpack.c.b16 %v4427, %v4425
      %v4486 = vpack.c.b16 %v4428, %v4426
      %v4487 = vpack.c.b16 %v4431, %v4429
      %v4488 = vpack.c.b16 %v4432, %v4430
      %v4489 = vpack.c.b16 %v4435, %v4433
      %v4490 = vpack.c.b16 %v4436, %v4434
      %v4491 = vpack.c.b16 %v4439, %v4437
      %v4492 = vpack.c.b16 %v4440, %v4438
      %v4493 = vpack.c.b16 %v4443, %v4441
      %v4494 = vpack.c.b16 %v4444, %v4442
      %v4495 = vpack.c.b16 %v4447, %v4445
      %v4496 = vpack.c.b16 %v4448, %v4446
      %v4497 = vpack.c.b16 %v4451, %v4449
      %v4498 = vpack.c.b16 %v4452, %v4450
      %v4499 = vpack.c.b16 %v4455, %v4453
      %v4500 = vpack.c.b16 %v4456, %v4454
      %v4501 = vpack.c.b16 %v4459, %v4457
      %v4502 = vpack.c.b16 %v4460, %v4458
      %v4503 = vpack.c.b16 %v4463, %v4461
      %v4504 = vpack.c.b16 %v4464, %v4462
      %v4546 = vsel %vm1601, %v3906, 0
      %v4549 = vsel %vm1601, %v3909, 0
      %4551 = vmatprep.subr.bf16.mxu0 %v4466
      %4552 = vmatpush1.bf16.msra.mxu0 %v4465
      %4553 = vmatprep.subr.bf16.mxu0 %v4468
      %4554 = vmatpush1.bf16.msra.mxu0 %v4467
      %4555 = vmatprep.subr.bf16.mxu0 %v4470
      %4556 = vmatpush1.bf16.msra.mxu0 %v4469
      %4557 = vmatprep.subr.bf16.mxu0 %v4472
      %4558 = vmatpush1.bf16.msra.mxu0 %v4471
      %4559 = vmatprep.subr.bf16.mxu0 %v4474
      %4560 = vmatpush1.bf16.msra.mxu0 %v4473
      %4561 = vmatprep.subr.bf16.mxu0 %v4476
      %4562 = vmatpush1.bf16.msra.mxu0 %v4475
      %4563 = vmatprep.subr.bf16.mxu0 %v4478
      %4564 = vmatpush1.bf16.msra.mxu0 %v4477
      %4565 = vmatprep.subr.bf16.mxu0 %v4480
      %4566 = vmatpush1.bf16.msra.mxu0 %v4479
      %4567 = vmatprep.subr.bf16.mxu0 %v4482
      %4568 = vmatpush1.bf16.msra.mxu0 %v4481
      %4569 = vmatprep.subr.bf16.mxu0 %v4484
      %4570 = vmatpush1.bf16.msra.mxu0 %v4483
      %4571 = vmatprep.subr.bf16.mxu0 %v4486
      %4572 = vmatpush1.bf16.msra.mxu0 %v4485
      %4573 = vmatprep.subr.bf16.mxu0 %v4488
      %4574 = vmatpush1.bf16.msra.mxu0 %v4487
      %4575 = vmatprep.subr.bf16.mxu0 %v4490
      %4576 = vmatpush1.bf16.msra.mxu0 %v4489
      %4577 = vmatprep.subr.bf16.mxu0 %v4492
      %4578 = vmatpush1.bf16.msra.mxu0 %v4491
      %4579 = vmatprep.subr.bf16.mxu0 %v4494
      %4580 = vmatpush1.bf16.msra.mxu0 %v4493
      %4581 = vmatprep.subr.bf16.mxu0 %v4496
      %4582 = vmatpush1.bf16.msra.mxu0 %v4495
      %4583 = vmatprep.mubr.bf16.mxu0 %v3905
      %4584 = vmatmul.mubr.bf16.gmra.mrb[0].mxu0 %v3904
      %v4585 = vpop.f32.mrb[0].mxu0
      %v4586 = vadd.f32 %v4327, %v4585
      %v4587 = vpop.f32.mrb[0].mxu0
      %v4588 = vadd.f32 %v4329, %v4587
      %v4589 = vpop.f32.mrb[0].mxu0
      %v4590 = vadd.f32 %v4331, %v4589
      %v4591 = vpop.f32.mrb[0].mxu0
      %v4592 = vadd.f32 %v4333, %v4591
      %4593 = vmatprep.mubr.bf16.mxu0 %v3908
      %4594 = vmatmul.mubr.bf16.gmra.mrb[0].mxu0 %v3907
      %v4595 = vpop.f32.mrb[0].mxu0
      %v4596 = vadd.f32 %v4337, %v4595
      %v4597 = vpop.f32.mrb[0].mxu0
      %v4598 = vadd.f32 %v4339, %v4597
      %v4599 = vpop.f32.mrb[0].mxu0
      %v4600 = vadd.f32 %v4341, %v4599
      %v4601 = vpop.f32.mrb[0].mxu0
      %v4602 = vadd.f32 %v4343, %v4601
      %4603 = vdwg.mxu0
      %4604 = vmatprep.subr.bf16.mxu0 %v4498
      %4605 = vmatpush1.bf16.msra.mxu0 %v4497
      %4606 = vmatprep.subr.bf16.mxu0 %v4500
      %4607 = vmatpush1.bf16.msra.mxu0 %v4499
      %4608 = vmatprep.subr.bf16.mxu0 %v4502
      %4609 = vmatpush1.bf16.msra.mxu0 %v4501
      %4610 = vmatprep.subr.bf16.mxu0 %v4504
      %4611 = vmatpush1.bf16.msra.mxu0 %v4503
      %4612 = vmatprep.subr.bf16.mxu0 0
      %4613 = vmatpush1.bf16.msra.mxu0 0
      %4614 = vmatprep.subr.bf16.mxu0 0
      %4615 = vmatpush1.bf16.msra.mxu0 0
      %4616 = vmatprep.subr.bf16.mxu0 0
      %4617 = vmatpush1.bf16.msra.mxu0 0
      %4618 = vmatprep.subr.bf16.mxu0 0
      %4619 = vmatpush1.bf16.msra.mxu0 0
      %4620 = vmatprep.subr.bf16.mxu0 0
      %4621 = vmatpush1.bf16.msra.mxu0 0
      %4622 = vmatprep.subr.bf16.mxu0 0
      %4623 = vmatpush1.bf16.msra.mxu0 0
      %4624 = vmatprep.subr.bf16.mxu0 0
      %4625 = vmatpush1.bf16.msra.mxu0 0
      %4626 = vmatprep.subr.bf16.mxu0 0
      %4627 = vmatpush1.bf16.msra.mxu0 0
      %4628 = vmatprep.subr.bf16.mxu0 0
      %4629 = vmatpush1.bf16.msra.mxu0 0
      %4630 = vmatprep.subr.bf16.mxu0 0
      %4631 = vmatpush1.bf16.msra.mxu0 0
      %4632 = vmatprep.subr.bf16.mxu0 0
      %4633 = vmatpush1.bf16.msra.mxu0 0
      %4634 = vmatprep.subr.bf16.mxu0 0
      %4635 = vmatpush1.bf16.msra.mxu0 0
      %4636 = vmatprep.mubr.bf16.mxu0 0
      %4637 = vmatmul.mubr.bf16.gmra.mrb[0].mxu0 %v4546
      %v4638 = vpop.f32.mrb[0].mxu0
      %v4639 = vadd.f32 %v4586, %v4638
      %v4640 = vpop.f32.mrb[0].mxu0
      %v4641 = vadd.f32 %v4588, %v4640
      %v4642 = vpop.f32.mrb[0].mxu0
      %v4643 = vadd.f32 %v4590, %v4642
      %v4644 = vpop.f32.mrb[0].mxu0
      %v4645 = vadd.f32 %v4592, %v4644
      %4646 = vmatprep.mubr.bf16.mxu0 0
      %4647 = vmatmul.mubr.bf16.gmra.mrb[0].mxu0 %v4549
      %v4648 = vpop.f32.mrb[0].mxu0
      %v4649 = vadd.f32 %v4596, %v4648
      %v4650 = vpop.f32.mrb[0].mxu0
      %v4651 = vadd.f32 %v4598, %v4650
      %v4652 = vpop.f32.mrb[0].mxu0
      %v4653 = vadd.f32 %v4600, %v4652
      %v4654 = vpop.f32.mrb[0].mxu0
      %v4655 = vadd.f32 %v4602, %v4654
      %4656 = vdwg.mxu0
      %s4657 = scalar_lea.vmem %s4, 640
      %v4658 = vld [vmem:[%s4657] sm:$0xff]
      %v4659 = vld [vmem:[%s4657 + $0x8] sm:$0xff]
      %v4660 = vld [vmem:[%s4657 + $0x10] sm:$0xff]
      %v4661 = vld [vmem:[%s4657 + $0x18] sm:$0xff]
      %v4662 = vld [vmem:[%s4657 + $0x20] sm:$0xff]
      %v4663 = vld [vmem:[%s4657 + $0x28] sm:$0xff]
      %v4664 = vld [vmem:[%s4657 + $0x30] sm:$0xff]
      %v4665 = vld [vmem:[%s4657 + $0x38] sm:$0xff]
      %v4666 = vld [vmem:[%s4657 + $0x40] sm:$0xff]
      %v4667 = vld [vmem:[%s4657 + $0x48] sm:$0xff]
      %v4668 = vld [vmem:[%s4657 + $0x50] sm:$0xff]
      %v4669 = vld [vmem:[%s4657 + $0x58] sm:$0xff]
      %v4670 = vld [vmem:[%s4657 + $0x60] sm:$0xff]
      %v4671 = vld [vmem:[%s4657 + $0x68] sm:$0xff]
      %v4672 = vld [vmem:[%s4657 + $0x70] sm:$0xff]
      %v4673 = vld [vmem:[%s4657 + $0x78] sm:$0xff]
      %v4674 = vld [vmem:[%s4657 + $0x80] sm:$0xff]
      %v4675 = vld [vmem:[%s4657 + $0x88] sm:$0xff]
      %v4676 = vld [vmem:[%s4657 + $0x90] sm:$0xff]
      %v4677 = vld [vmem:[%s4657 + $0x98] sm:$0xff]
      %v4678 = vld [vmem:[%s4657 + $0xa0] sm:$0xff]
      %v4679 = vld [vmem:[%s4657 + $0xa8] sm:$0xff]
      %v4680 = vld [vmem:[%s4657 + $0xb0] sm:$0xff]
      %v4681 = vld [vmem:[%s4657 + $0xb8] sm:$0xff]
      %v4682 = vld [vmem:[%s4657 + $0xc0] sm:$0xff]
      %v4683 = vld [vmem:[%s4657 + $0xc8] sm:$0xff]
      %v4684 = vld [vmem:[%s4657 + $0xd0] sm:$0xff]
      %v4685 = vld [vmem:[%s4657 + $0xd8] sm:$0xff]
      %v4686 = vld [vmem:[%s4657 + $0xe0] sm:$0xff]
      %v4687 = vld [vmem:[%s4657 + $0xe8] sm:$0xff]
      %v4688 = vld [vmem:[%s4657 + $0xf0] sm:$0xff]
      %v4689 = vld [vmem:[%s4657 + $0xf8] sm:$0xff]
      %v4690 = vld [vmem:[%s4657 + $0x100] sm:$0xff]
      %v4691 = vld [vmem:[%s4657 + $0x108] sm:$0xff]
      %v4692 = vld [vmem:[%s4657 + $0x110] sm:$0xff]
      %v4693 = vld [vmem:[%s4657 + $0x118] sm:$0xff]
      %v4694 = vld [vmem:[%s4657 + $0x120] sm:$0xff]
      %v4695 = vld [vmem:[%s4657 + $0x128] sm:$0xff]
      %v4696 = vld [vmem:[%s4657 + $0x130] sm:$0xff]
      %v4697 = vld [vmem:[%s4657 + $0x138] sm:$0xff]
      %vm4707 = vcmask 1043456
      %v4708 = vrot.slane %v3904, 4
      %v4709 = vrot.slane %v3907, 4
      %v4710 = vsel %vm4707, %v4708, %v4709
      %v4711 = vrot.slane %v3905, 4
      %v4712 = vrot.slane %v3908, 4
      %v4713 = vsel %vm4707, %v4711, %v4712
      %v4714 = vrot.slane %v3906, 4
      %v4715 = vrot.slane %v3909, 4
      %v4716 = vsel %vm4707, %v4714, %v4715
      %v4717 = vrot.slane %v3910, 4
      %v4718 = vsel %vm4707, %v4709, %v4717
      %v4719 = vrot.slane %v3911, 4
      %v4720 = vsel %vm4707, %v4712, %v4719
      %v4721 = vrot.slane %v3912, 4
      %v4722 = vsel %vm4707, %v4715, %v4721
      %v4767 = vunpack.c.l.b16 %v4658
      %v4768 = vunpack.c.h.b16 %v4658
      %v4769 = vunpack.c.l.b16 %v4659
      %v4770 = vunpack.c.h.b16 %v4659
      %v4771 = vunpack.c.l.b16 %v4660
      %v4772 = vunpack.c.h.b16 %v4660
      %v4773 = vunpack.c.l.b16 %v4661
      %v4774 = vunpack.c.h.b16 %v4661
      %v4775 = vunpack.c.l.b16 %v4662
      %v4776 = vunpack.c.h.b16 %v4662
      %v4777 = vunpack.c.l.b16 %v4663
      %v4778 = vunpack.c.h.b16 %v4663
      %v4779 = vunpack.c.l.b16 %v4664
      %v4780 = vunpack.c.h.b16 %v4664
      %v4781 = vunpack.c.l.b16 %v4665
      %v4782 = vunpack.c.h.b16 %v4665
      %v4783 = vunpack.c.l.b16 %v4666
      %v4784 = vunpack.c.h.b16 %v4666
      %v4785 = vunpack.c.l.b16 %v4667
      %v4786 = vunpack.c.h.b16 %v4667
      %v4787 = vunpack.c.l.b16 %v4668
      %v4788 = vunpack.c.h.b16 %v4668
      %v4789 = vunpack.c.l.b16 %v4669
      %v4790 = vunpack.c.h.b16 %v4669
      %v4791 = vunpack.c.l.b16 %v4670
      %v4792 = vunpack.c.h.b16 %v4670
      %v4793 = vunpack.c.l.b16 %v4671
      %v4794 = vunpack.c.h.b16 %v4671
      %v4795 = vunpack.c.l.b16 %v4672
      %v4796 = vunpack.c.h.b16 %v4672
      %v4797 = vunpack.c.l.b16 %v4673
      %v4798 = vunpack.c.h.b16 %v4673
      %v4799 = vunpack.c.l.b16 %v4674
      %v4800 = vunpack.c.h.b16 %v4674
      %v4801 = vunpack.c.l.b16 %v4675
      %v4802 = vunpack.c.h.b16 %v4675
      %v4803 = vunpack.c.l.b16 %v4676
      %v4804 = vunpack.c.h.b16 %v4676
      %v4805 = vunpack.c.l.b16 %v4677
      %v4806 = vunpack.c.h.b16 %v4677
      %v4807 = vunpack.c.l.b16 %v4678
      %v4808 = vunpack.c.h.b16 %v4678
      %v4809 = vunpack.c.l.b16 %v4679
      %v4810 = vunpack.c.h.b16 %v4679
      %v4811 = vunpack.c.l.b16 %v4680
      %v4812 = vunpack.c.h.b16 %v4680
      %v4813 = vunpack.c.l.b16 %v4681
      %v4814 = vunpack.c.h.b16 %v4681
      %v4815 = vunpack.c.l.b16 %v4682
      %v4816 = vunpack.c.h.b16 %v4682
      %v4817 = vunpack.c.l.b16 %v4683
      %v4818 = vunpack.c.h.b16 %v4683
      %v4819 = vunpack.c.l.b16 %v4684
      %v4820 = vunpack.c.h.b16 %v4684
      %v4821 = vunpack.c.l.b16 %v4685
      %v4822 = vunpack.c.h.b16 %v4685
      %v4823 = vunpack.c.l.b16 %v4686
      %v4824 = vunpack.c.h.b16 %v4686
      %v4825 = vunpack.c.l.b16 %v4687
      %v4826 = vunpack.c.h.b16 %v4687
      %v4827 = vunpack.c.l.b16 %v4688
      %v4828 = vunpack.c.h.b16 %v4688
      %v4829 = vunpack.c.l.b16 %v4689
      %v4830 = vunpack.c.h.b16 %v4689
      %v4831 = vunpack.c.l.b16 %v4690
      %v4832 = vunpack.c.h.b16 %v4690
      %v4833 = vunpack.c.l.b16 %v4691
      %v4834 = vunpack.c.h.b16 %v4691
      %v4835 = vunpack.c.l.b16 %v4692
      %v4836 = vunpack.c.h.b16 %v4692
      %v4837 = vunpack.c.l.b16 %v4693
      %v4838 = vunpack.c.h.b16 %v4693
      %v4839 = vunpack.c.l.b16 %v4694
      %v4840 = vunpack.c.h.b16 %v4694
      %v4841 = vunpack.c.l.b16 %v4695
      %v4842 = vunpack.c.h.b16 %v4695
      %v4843 = vunpack.c.l.b16 %v4696
      %v4844 = vunpack.c.h.b16 %v4696
      %v4845 = vunpack.c.l.b16 %v4697
      %v4846 = vunpack.c.h.b16 %v4697
      %v4847 = vpack.c.b16 %v4769, %v4767
      %v4848 = vpack.c.b16 %v4770, %v4768
      %v4849 = vpack.c.b16 %v4773, %v4771
      %v4850 = vpack.c.b16 %v4774, %v4772
      %v4851 = vpack.c.b16 %v4777, %v4775
      %v4852 = vpack.c.b16 %v4778, %v4776
      %v4853 = vpack.c.b16 %v4781, %v4779
      %v4854 = vpack.c.b16 %v4782, %v4780
      %v4855 = vpack.c.b16 %v4785, %v4783
      %v4856 = vpack.c.b16 %v4786, %v4784
      %v4857 = vpack.c.b16 %v4789, %v4787
      %v4858 = vpack.c.b16 %v4790, %v4788
      %v4859 = vpack.c.b16 %v4793, %v4791
      %v4860 = vpack.c.b16 %v4794, %v4792
      %v4861 = vpack.c.b16 %v4797, %v4795
      %v4862 = vpack.c.b16 %v4798, %v4796
      %v4863 = vpack.c.b16 %v4801, %v4799
      %v4864 = vpack.c.b16 %v4802, %v4800
      %v4865 = vpack.c.b16 %v4805, %v4803
      %v4866 = vpack.c.b16 %v4806, %v4804
      %v4867 = vpack.c.b16 %v4809, %v4807
      %v4868 = vpack.c.b16 %v4810, %v4808
      %v4869 = vpack.c.b16 %v4813, %v4811
      %v4870 = vpack.c.b16 %v4814, %v4812
      %v4871 = vpack.c.b16 %v4817, %v4815
      %v4872 = vpack.c.b16 %v4818, %v4816
      %v4873 = vpack.c.b16 %v4821, %v4819
      %v4874 = vpack.c.b16 %v4822, %v4820
      %v4875 = vpack.c.b16 %v4825, %v4823
      %v4876 = vpack.c.b16 %v4826, %v4824
      %v4877 = vpack.c.b16 %v4829, %v4827
      %v4878 = vpack.c.b16 %v4830, %v4828
      %v4879 = vpack.c.b16 %v4833, %v4831
      %v4880 = vpack.c.b16 %v4834, %v4832
      %v4881 = vpack.c.b16 %v4837, %v4835
      %v4882 = vpack.c.b16 %v4838, %v4836
      %v4883 = vpack.c.b16 %v4841, %v4839
      %v4884 = vpack.c.b16 %v4842, %v4840
      %v4885 = vpack.c.b16 %v4845, %v4843
      %v4886 = vpack.c.b16 %v4846, %v4844
      %v4928 = vsel %vm1601, %v4716, 0
      %v4931 = vsel %vm1601, %v4722, 0
      %4933 = vmatprep.subr.bf16.mxu0 %v4848
      %4934 = vmatpush1.bf16.msra.mxu0 %v4847
      %4935 = vmatprep.subr.bf16.mxu0 %v4850
      %4936 = vmatpush1.bf16.msra.mxu0 %v4849
      %4937 = vmatprep.subr.bf16.mxu0 %v4852
      %4938 = vmatpush1.bf16.msra.mxu0 %v4851
      %4939 = vmatprep.subr.bf16.mxu0 %v4854
      %4940 = vmatpush1.bf16.msra.mxu0 %v4853
      %4941 = vmatprep.subr.bf16.mxu0 %v4856
      %4942 = vmatpush1.bf16.msra.mxu0 %v4855
      %4943 = vmatprep.subr.bf16.mxu0 %v4858
      %4944 = vmatpush1.bf16.msra.mxu0 %v4857
      %4945 = vmatprep.subr.bf16.mxu0 %v4860
      %4946 = vmatpush1.bf16.msra.mxu0 %v4859
      %4947 = vmatprep.subr.bf16.mxu0 %v4862
      %4948 = vmatpush1.bf16.msra.mxu0 %v4861
      %4949 = vmatprep.subr.bf16.mxu0 %v4864
      %4950 = vmatpush1.bf16.msra.mxu0 %v4863
      %4951 = vmatprep.subr.bf16.mxu0 %v4866
      %4952 = vmatpush1.bf16.msra.mxu0 %v4865
      %4953 = vmatprep.subr.bf16.mxu0 %v4868
      %4954 = vmatpush1.bf16.msra.mxu0 %v4867
      %4955 = vmatprep.subr.bf16.mxu0 %v4870
      %4956 = vmatpush1.bf16.msra.mxu0 %v4869
      %4957 = vmatprep.subr.bf16.mxu0 %v4872
      %4958 = vmatpush1.bf16.msra.mxu0 %v4871
      %4959 = vmatprep.subr.bf16.mxu0 %v4874
      %4960 = vmatpush1.bf16.msra.mxu0 %v4873
      %4961 = vmatprep.subr.bf16.mxu0 %v4876
      %4962 = vmatpush1.bf16.msra.mxu0 %v4875
      %4963 = vmatprep.subr.bf16.mxu0 %v4878
      %4964 = vmatpush1.bf16.msra.mxu0 %v4877
      %4965 = vmatprep.mubr.bf16.mxu0 %v4713
      %4966 = vmatmul.mubr.bf16.gmra.mrb[0].mxu0 %v4710
      %v4967 = vpop.f32.mrb[0].mxu0
      %v4968 = vadd.f32 0.0, %v4967
      %v4969 = vpop.f32.mrb[0].mxu0
      %v4970 = vadd.f32 0.0, %v4969
      %v4971 = vpop.f32.mrb[0].mxu0
      %v4972 = vadd.f32 0.0, %v4971
      %v4973 = vpop.f32.mrb[0].mxu0
      %v4974 = vadd.f32 0.0, %v4973
      %4975 = vmatprep.mubr.bf16.mxu0 %v4720
      %4976 = vmatmul.mubr.bf16.gmra.mrb[0].mxu0 %v4718
      %v4977 = vpop.f32.mrb[0].mxu0
      %v4978 = vadd.f32 0.0, %v4977
      %v4979 = vpop.f32.mrb[0].mxu0
      %v4980 = vadd.f32 0.0, %v4979
      %v4981 = vpop.f32.mrb[0].mxu0
      %v4982 = vadd.f32 0.0, %v4981
      %v4983 = vpop.f32.mrb[0].mxu0
      %v4984 = vadd.f32 0.0, %v4983
      %4985 = vdwg.mxu0
      %4986 = vmatprep.subr.bf16.mxu0 %v4880
      %4987 = vmatpush1.bf16.msra.mxu0 %v4879
      %4988 = vmatprep.subr.bf16.mxu0 %v4882
      %4989 = vmatpush1.bf16.msra.mxu0 %v4881
      %4990 = vmatprep.subr.bf16.mxu0 %v4884
      %4991 = vmatpush1.bf16.msra.mxu0 %v4883
      %4992 = vmatprep.subr.bf16.mxu0 %v4886
      %4993 = vmatpush1.bf16.msra.mxu0 %v4885
      %4994 = vmatprep.subr.bf16.mxu0 0
      %4995 = vmatpush1.bf16.msra.mxu0 0
      %4996 = vmatprep.subr.bf16.mxu0 0
      %4997 = vmatpush1.bf16.msra.mxu0 0
      %4998 = vmatprep.subr.bf16.mxu0 0
      %4999 = vmatpush1.bf16.msra.mxu0 0
      %5000 = vmatprep.subr.bf16.mxu0 0
      %5001 = vmatpush1.bf16.msra.mxu0 0
      %5002 = vmatprep.subr.bf16.mxu0 0
      %5003 = vmatpush1.bf16.msra.mxu0 0
      %5004 = vmatprep.subr.bf16.mxu0 0
      %5005 = vmatpush1.bf16.msra.mxu0 0
      %5006 = vmatprep.subr.bf16.mxu0 0
      %5007 = vmatpush1.bf16.msra.mxu0 0
      %5008 = vmatprep.subr.bf16.mxu0 0
      %5009 = vmatpush1.bf16.msra.mxu0 0
      %5010 = vmatprep.subr.bf16.mxu0 0
      %5011 = vmatpush1.bf16.msra.mxu0 0
      %5012 = vmatprep.subr.bf16.mxu0 0
      %5013 = vmatpush1.bf16.msra.mxu0 0
      %5014 = vmatprep.subr.bf16.mxu0 0
      %5015 = vmatpush1.bf16.msra.mxu0 0
      %5016 = vmatprep.subr.bf16.mxu0 0
      %5017 = vmatpush1.bf16.msra.mxu0 0
      %5018 = vmatprep.mubr.bf16.mxu0 0
      %5019 = vmatmul.mubr.bf16.gmra.mrb[0].mxu0 %v4928
      %v5020 = vpop.f32.mrb[0].mxu0
      %v5021 = vadd.f32 %v4968, %v5020
      %v5022 = vpop.f32.mrb[0].mxu0
      %v5023 = vadd.f32 %v4970, %v5022
      %v5024 = vpop.f32.mrb[0].mxu0
      %v5025 = vadd.f32 %v4972, %v5024
      %v5026 = vpop.f32.mrb[0].mxu0
      %v5027 = vadd.f32 %v4974, %v5026
      %5028 = vmatprep.mubr.bf16.mxu0 0
      %5029 = vmatmul.mubr.bf16.gmra.mrb[0].mxu0 %v4931
      %v5030 = vpop.f32.mrb[0].mxu0
      %v5031 = vadd.f32 %v4978, %v5030
      %v5032 = vpop.f32.mrb[0].mxu0
      %v5033 = vadd.f32 %v4980, %v5032
      %v5034 = vpop.f32.mrb[0].mxu0
      %v5035 = vadd.f32 %v4982, %v5034
      %v5036 = vpop.f32.mrb[0].mxu0
      %v5037 = vadd.f32 %v4984, %v5036
      %5038 = vdwg.mxu0
      %v5039 = vadd.f32 %v4639, %v5021
      %v5040 = vadd.f32 %v4641, %v5023
      %v5041 = vadd.f32 %v4643, %v5025
      %v5042 = vadd.f32 %v4645, %v5027
      %v5043 = vadd.f32 %v4649, %v5031
      %v5044 = vadd.f32 %v4651, %v5033
      %v5045 = vadd.f32 %v4653, %v5035
      %v5046 = vadd.f32 %v4655, %v5037
      %s5047 = scalar_lea.vmem %s4, 960
      %v5048 = vld [vmem:[%s5047] sm:$0xff]
      %v5049 = vld [vmem:[%s5047 + $0x8] sm:$0xff]
      %v5050 = vld [vmem:[%s5047 + $0x10] sm:$0xff]
      %v5051 = vld [vmem:[%s5047 + $0x18] sm:$0xff]
      %v5052 = vld [vmem:[%s5047 + $0x20] sm:$0xff]
      %v5053 = vld [vmem:[%s5047 + $0x28] sm:$0xff]
      %v5054 = vld [vmem:[%s5047 + $0x30] sm:$0xff]
      %v5055 = vld [vmem:[%s5047 + $0x38] sm:$0xff]
      %v5056 = vld [vmem:[%s5047 + $0x40] sm:$0xff]
      %v5057 = vld [vmem:[%s5047 + $0x48] sm:$0xff]
      %v5058 = vld [vmem:[%s5047 + $0x50] sm:$0xff]
      %v5059 = vld [vmem:[%s5047 + $0x58] sm:$0xff]
      %v5060 = vld [vmem:[%s5047 + $0x60] sm:$0xff]
      %v5061 = vld [vmem:[%s5047 + $0x68] sm:$0xff]
      %v5062 = vld [vmem:[%s5047 + $0x70] sm:$0xff]
      %v5063 = vld [vmem:[%s5047 + $0x78] sm:$0xff]
      %v5064 = vld [vmem:[%s5047 + $0x80] sm:$0xff]
      %v5065 = vld [vmem:[%s5047 + $0x88] sm:$0xff]
      %v5066 = vld [vmem:[%s5047 + $0x90] sm:$0xff]
      %v5067 = vld [vmem:[%s5047 + $0x98] sm:$0xff]
      %v5068 = vld [vmem:[%s5047 + $0xa0] sm:$0xff]
      %v5069 = vld [vmem:[%s5047 + $0xa8] sm:$0xff]
      %v5070 = vld [vmem:[%s5047 + $0xb0] sm:$0xff]
      %v5071 = vld [vmem:[%s5047 + $0xb8] sm:$0xff]
      %v5072 = vld [vmem:[%s5047 + $0xc0] sm:$0xff]
      %v5073 = vld [vmem:[%s5047 + $0xc8] sm:$0xff]
      %v5074 = vld [vmem:[%s5047 + $0xd0] sm:$0xff]
      %v5075 = vld [vmem:[%s5047 + $0xd8] sm:$0xff]
      %v5076 = vld [vmem:[%s5047 + $0xe0] sm:$0xff]
      %v5077 = vld [vmem:[%s5047 + $0xe8] sm:$0xff]
      %v5078 = vld [vmem:[%s5047 + $0xf0] sm:$0xff]
      %v5079 = vld [vmem:[%s5047 + $0xf8] sm:$0xff]
      %v5080 = vld [vmem:[%s5047 + $0x100] sm:$0xff]
      %v5081 = vld [vmem:[%s5047 + $0x108] sm:$0xff]
      %v5082 = vld [vmem:[%s5047 + $0x110] sm:$0xff]
      %v5083 = vld [vmem:[%s5047 + $0x118] sm:$0xff]
      %v5084 = vld [vmem:[%s5047 + $0x120] sm:$0xff]
      %v5085 = vld [vmem:[%s5047 + $0x128] sm:$0xff]
      %v5086 = vld [vmem:[%s5047 + $0x130] sm:$0xff]
      %v5087 = vld [vmem:[%s5047 + $0x138] sm:$0xff]
      %v5097 = vrot.slane %v3943, 4
      %v5098 = vrot.slane %v3946, 4
      %v5099 = vsel %vm4707, %v5097, %v5098
      %v5100 = vrot.slane %v3944, 4
      %v5101 = vrot.slane %v3947, 4
      %v5102 = vsel %vm4707, %v5100, %v5101
      %v5103 = vrot.slane %v3945, 4
      %v5104 = vrot.slane %v3948, 4
      %v5105 = vsel %vm4707, %v5103, %v5104
      %v5106 = vrot.slane %v3949, 4
      %v5107 = vsel %vm4707, %v5098, %v5106
      %v5108 = vrot.slane %v3950, 4
      %v5109 = vsel %vm4707, %v5101, %v5108
      %v5110 = vrot.slane %v3951, 4
      %v5111 = vsel %vm4707, %v5104, %v5110
      %v5156 = vunpack.c.l.b16 %v5048
      %v5157 = vunpack.c.h.b16 %v5048
      %v5158 = vunpack.c.l.b16 %v5049
      %v5159 = vunpack.c.h.b16 %v5049
      %v5160 = vunpack.c.l.b16 %v5050
      %v5161 = vunpack.c.h.b16 %v5050
      %v5162 = vunpack.c.l.b16 %v5051
      %v5163 = vunpack.c.h.b16 %v5051
      %v5164 = vunpack.c.l.b16 %v5052
      %v5165 = vunpack.c.h.b16 %v5052
      %v5166 = vunpack.c.l.b16 %v5053
      %v5167 = vunpack.c.h.b16 %v5053
      %v5168 = vunpack.c.l.b16 %v5054
      %v5169 = vunpack.c.h.b16 %v5054
      %v5170 = vunpack.c.l.b16 %v5055
      %v5171 = vunpack.c.h.b16 %v5055
      %v5172 = vunpack.c.l.b16 %v5056
      %v5173 = vunpack.c.h.b16 %v5056
      %v5174 = vunpack.c.l.b16 %v5057
      %v5175 = vunpack.c.h.b16 %v5057
      %v5176 = vunpack.c.l.b16 %v5058
      %v5177 = vunpack.c.h.b16 %v5058
      %v5178 = vunpack.c.l.b16 %v5059
      %v5179 = vunpack.c.h.b16 %v5059
      %v5180 = vunpack.c.l.b16 %v5060
      %v5181 = vunpack.c.h.b16 %v5060
      %v5182 = vunpack.c.l.b16 %v5061
      %v5183 = vunpack.c.h.b16 %v5061
      %v5184 = vunpack.c.l.b16 %v5062
      %v5185 = vunpack.c.h.b16 %v5062
      %v5186 = vunpack.c.l.b16 %v5063
      %v5187 = vunpack.c.h.b16 %v5063
      %v5188 = vunpack.c.l.b16 %v5064
      %v5189 = vunpack.c.h.b16 %v5064
      %v5190 = vunpack.c.l.b16 %v5065
      %v5191 = vunpack.c.h.b16 %v5065
      %v5192 = vunpack.c.l.b16 %v5066
      %v5193 = vunpack.c.h.b16 %v5066
      %v5194 = vunpack.c.l.b16 %v5067
      %v5195 = vunpack.c.h.b16 %v5067
      %v5196 = vunpack.c.l.b16 %v5068
      %v5197 = vunpack.c.h.b16 %v5068
      %v5198 = vunpack.c.l.b16 %v5069
      %v5199 = vunpack.c.h.b16 %v5069
      %v5200 = vunpack.c.l.b16 %v5070
      %v5201 = vunpack.c.h.b16 %v5070
      %v5202 = vunpack.c.l.b16 %v5071
      %v5203 = vunpack.c.h.b16 %v5071
      %v5204 = vunpack.c.l.b16 %v5072
      %v5205 = vunpack.c.h.b16 %v5072
      %v5206 = vunpack.c.l.b16 %v5073
      %v5207 = vunpack.c.h.b16 %v5073
      %v5208 = vunpack.c.l.b16 %v5074
      %v5209 = vunpack.c.h.b16 %v5074
      %v5210 = vunpack.c.l.b16 %v5075
      %v5211 = vunpack.c.h.b16 %v5075
      %v5212 = vunpack.c.l.b16 %v5076
      %v5213 = vunpack.c.h.b16 %v5076
      %v5214 = vunpack.c.l.b16 %v5077
      %v5215 = vunpack.c.h.b16 %v5077
      %v5216 = vunpack.c.l.b16 %v5078
      %v5217 = vunpack.c.h.b16 %v5078
      %v5218 = vunpack.c.l.b16 %v5079
      %v5219 = vunpack.c.h.b16 %v5079
      %v5220 = vunpack.c.l.b16 %v5080
      %v5221 = vunpack.c.h.b16 %v5080
      %v5222 = vunpack.c.l.b16 %v5081
      %v5223 = vunpack.c.h.b16 %v5081
      %v5224 = vunpack.c.l.b16 %v5082
      %v5225 = vunpack.c.h.b16 %v5082
      %v5226 = vunpack.c.l.b16 %v5083
      %v5227 = vunpack.c.h.b16 %v5083
      %v5228 = vunpack.c.l.b16 %v5084
      %v5229 = vunpack.c.h.b16 %v5084
      %v5230 = vunpack.c.l.b16 %v5085
      %v5231 = vunpack.c.h.b16 %v5085
      %v5232 = vunpack.c.l.b16 %v5086
      %v5233 = vunpack.c.h.b16 %v5086
      %v5234 = vunpack.c.l.b16 %v5087
      %v5235 = vunpack.c.h.b16 %v5087
      %v5236 = vpack.c.b16 %v5158, %v5156
      %v5237 = vpack.c.b16 %v5159, %v5157
      %v5238 = vpack.c.b16 %v5162, %v5160
      %v5239 = vpack.c.b16 %v5163, %v5161
      %v5240 = vpack.c.b16 %v5166, %v5164
      %v5241 = vpack.c.b16 %v5167, %v5165
      %v5242 = vpack.c.b16 %v5170, %v5168
      %v5243 = vpack.c.b16 %v5171, %v5169
      %v5244 = vpack.c.b16 %v5174, %v5172
      %v5245 = vpack.c.b16 %v5175, %v5173
      %v5246 = vpack.c.b16 %v5178, %v5176
      %v5247 = vpack.c.b16 %v5179, %v5177
      %v5248 = vpack.c.b16 %v5182, %v5180
      %v5249 = vpack.c.b16 %v5183, %v5181
      %v5250 = vpack.c.b16 %v5186, %v5184
      %v5251 = vpack.c.b16 %v5187, %v5185
      %v5252 = vpack.c.b16 %v5190, %v5188
      %v5253 = vpack.c.b16 %v5191, %v5189
      %v5254 = vpack.c.b16 %v5194, %v5192
      %v5255 = vpack.c.b16 %v5195, %v5193
      %v5256 = vpack.c.b16 %v5198, %v5196
      %v5257 = vpack.c.b16 %v5199, %v5197
      %v5258 = vpack.c.b16 %v5202, %v5200
      %v5259 = vpack.c.b16 %v5203, %v5201
      %v5260 = vpack.c.b16 %v5206, %v5204
      %v5261 = vpack.c.b16 %v5207, %v5205
      %v5262 = vpack.c.b16 %v5210, %v5208
      %v5263 = vpack.c.b16 %v5211, %v5209
      %v5264 = vpack.c.b16 %v5214, %v5212
      %v5265 = vpack.c.b16 %v5215, %v5213
      %v5266 = vpack.c.b16 %v5218, %v5216
      %v5267 = vpack.c.b16 %v5219, %v5217
      %v5268 = vpack.c.b16 %v5222, %v5220
      %v5269 = vpack.c.b16 %v5223, %v5221
      %v5270 = vpack.c.b16 %v5226, %v5224
      %v5271 = vpack.c.b16 %v5227, %v5225
      %v5272 = vpack.c.b16 %v5230, %v5228
      %v5273 = vpack.c.b16 %v5231, %v5229
      %v5274 = vpack.c.b16 %v5234, %v5232
      %v5275 = vpack.c.b16 %v5235, %v5233
      %v5317 = vsel %vm1601, %v5105, 0
      %v5320 = vsel %vm1601, %v5111, 0
      %5322 = vmatprep.subr.bf16.mxu0 %v5237
      %5323 = vmatpush1.bf16.msra.mxu0 %v5236
      %5324 = vmatprep.subr.bf16.mxu0 %v5239
      %5325 = vmatpush1.bf16.msra.mxu0 %v5238
      %5326 = vmatprep.subr.bf16.mxu0 %v5241
      %5327 = vmatpush1.bf16.msra.mxu0 %v5240
      %5328 = vmatprep.subr.bf16.mxu0 %v5243
      %5329 = vmatpush1.bf16.msra.mxu0 %v5242
      %5330 = vmatprep.subr.bf16.mxu0 %v5245
      %5331 = vmatpush1.bf16.msra.mxu0 %v5244
      %5332 = vmatprep.subr.bf16.mxu0 %v5247
      %5333 = vmatpush1.bf16.msra.mxu0 %v5246
      %5334 = vmatprep.subr.bf16.mxu0 %v5249
      %5335 = vmatpush1.bf16.msra.mxu0 %v5248
      %5336 = vmatprep.subr.bf16.mxu0 %v5251
      %5337 = vmatpush1.bf16.msra.mxu0 %v5250
      %5338 = vmatprep.subr.bf16.mxu0 %v5253
      %5339 = vmatpush1.bf16.msra.mxu0 %v5252
      %5340 = vmatprep.subr.bf16.mxu0 %v5255
      %5341 = vmatpush1.bf16.msra.mxu0 %v5254
      %5342 = vmatprep.subr.bf16.mxu0 %v5257
      %5343 = vmatpush1.bf16.msra.mxu0 %v5256
      %5344 = vmatprep.subr.bf16.mxu0 %v5259
      %5345 = vmatpush1.bf16.msra.mxu0 %v5258
      %5346 = vmatprep.subr.bf16.mxu0 %v5261
      %5347 = vmatpush1.bf16.msra.mxu0 %v5260
      %5348 = vmatprep.subr.bf16.mxu0 %v5263
      %5349 = vmatpush1.bf16.msra.mxu0 %v5262
      %5350 = vmatprep.subr.bf16.mxu0 %v5265
      %5351 = vmatpush1.bf16.msra.mxu0 %v5264
      %5352 = vmatprep.subr.bf16.mxu0 %v5267
      %5353 = vmatpush1.bf16.msra.mxu0 %v5266
      %5354 = vmatprep.mubr.bf16.mxu0 %v5102
      %5355 = vmatmul.mubr.bf16.gmra.mrb[0].mxu0 %v5099
      %v5356 = vpop.f32.mrb[0].mxu0
      %v5357 = vadd.f32 0.0, %v5356
      %v5358 = vpop.f32.mrb[0].mxu0
      %v5359 = vadd.f32 0.0, %v5358
      %v5360 = vpop.f32.mrb[0].mxu0
      %v5361 = vadd.f32 0.0, %v5360
      %v5362 = vpop.f32.mrb[0].mxu0
      %v5363 = vadd.f32 0.0, %v5362
      %5364 = vmatprep.mubr.bf16.mxu0 %v5109
      %5365 = vmatmul.mubr.bf16.gmra.mrb[0].mxu0 %v5107
      %v5366 = vpop.f32.mrb[0].mxu0
      %v5367 = vadd.f32 0.0, %v5366
      %v5368 = vpop.f32.mrb[0].mxu0
      %v5369 = vadd.f32 0.0, %v5368
      %v5370 = vpop.f32.mrb[0].mxu0
      %v5371 = vadd.f32 0.0, %v5370
      %v5372 = vpop.f32.mrb[0].mxu0
      %v5373 = vadd.f32 0.0, %v5372
      %5374 = vdwg.mxu0
      %5375 = vmatprep.subr.bf16.mxu0 %v5269
      %5376 = vmatpush1.bf16.msra.mxu0 %v5268
      %5377 = vmatprep.subr.bf16.mxu0 %v5271
      %5378 = vmatpush1.bf16.msra.mxu0 %v5270
      %5379 = vmatprep.subr.bf16.mxu0 %v5273
      %5380 = vmatpush1.bf16.msra.mxu0 %v5272
      %5381 = vmatprep.subr.bf16.mxu0 %v5275
      %5382 = vmatpush1.bf16.msra.mxu0 %v5274
      %5383 = vmatprep.subr.bf16.mxu0 0
      %5384 = vmatpush1.bf16.msra.mxu0 0
      %5385 = vmatprep.subr.bf16.mxu0 0
      %5386 = vmatpush1.bf16.msra.mxu0 0
      %5387 = vmatprep.subr.bf16.mxu0 0
      %5388 = vmatpush1.bf16.msra.mxu0 0
      %5389 = vmatprep.subr.bf16.mxu0 0
      %5390 = vmatpush1.bf16.msra.mxu0 0
      %5391 = vmatprep.subr.bf16.mxu0 0
      %5392 = vmatpush1.bf16.msra.mxu0 0
      %5393 = vmatprep.subr.bf16.mxu0 0
      %5394 = vmatpush1.bf16.msra.mxu0 0
      %5395 = vmatprep.subr.bf16.mxu0 0
      %5396 = vmatpush1.bf16.msra.mxu0 0
      %5397 = vmatprep.subr.bf16.mxu0 0
      %5398 = vmatpush1.bf16.msra.mxu0 0
      %5399 = vmatprep.subr.bf16.mxu0 0
      %5400 = vmatpush1.bf16.msra.mxu0 0
      %5401 = vmatprep.subr.bf16.mxu0 0
      %5402 = vmatpush1.bf16.msra.mxu0 0
      %5403 = vmatprep.subr.bf16.mxu0 0
      %5404 = vmatpush1.bf16.msra.mxu0 0
      %5405 = vmatprep.subr.bf16.mxu0 0
      %5406 = vmatpush1.bf16.msra.mxu0 0
      %5407 = vmatprep.mubr.bf16.mxu0 0
      %5408 = vmatmul.mubr.bf16.gmra.mrb[0].mxu0 %v5317
      %v5409 = vpop.f32.mrb[0].mxu0
      %v5410 = vadd.f32 %v5357, %v5409
      %v5411 = vpop.f32.mrb[0].mxu0
      %v5412 = vadd.f32 %v5359, %v5411
      %v5413 = vpop.f32.mrb[0].mxu0
      %v5414 = vadd.f32 %v5361, %v5413
      %v5415 = vpop.f32.mrb[0].mxu0
      %v5416 = vadd.f32 %v5363, %v5415
      %5417 = vmatprep.mubr.bf16.mxu0 0
      %5418 = vmatmul.mubr.bf16.gmra.mrb[0].mxu0 %v5320
      %v5419 = vpop.f32.mrb[0].mxu0
      %v5420 = vadd.f32 %v5367, %v5419
      %v5421 = vpop.f32.mrb[0].mxu0
      %v5422 = vadd.f32 %v5369, %v5421
      %v5423 = vpop.f32.mrb[0].mxu0
      %v5424 = vadd.f32 %v5371, %v5423
      %v5425 = vpop.f32.mrb[0].mxu0
      %v5426 = vadd.f32 %v5373, %v5425
      %5427 = vdwg.mxu0
      %v5428 = vadd.f32 %v5039, %v5410
      %v5429 = vadd.f32 %v5040, %v5412
      %v5430 = vadd.f32 %v5041, %v5414
      %v5431 = vadd.f32 %v5042, %v5416
      %v5432 = vadd.f32 %v5043, %v5420
      %v5433 = vadd.f32 %v5044, %v5422
      %v5434 = vadd.f32 %v5045, %v5424
      %v5435 = vadd.f32 %v5046, %v5426
      %v5436 = vld [vmem:[%s5] sm:$0x3]
      %v5438 = vlaneseq
      %v5439 = vshrl.u32 %v5438, 7
      %v5440 = vsub.s32 0, %v5439
      %v5441 = vrot.slane %v5436, %v5440
      %v5442 = vlaneseq
      %v5443 = vshrl.u32 %v5442, 7
      %v5444 = vsub.s32 1, %v5443
      %v5445 = vrot.slane %v5436, %v5444
      %v5448 = vadd.f32 %v5428, %v5441
      %v5449 = vadd.f32 %v5429, %v5445
      %v5450 = vadd.f32 %v5430, %v5441
      %v5451 = vadd.f32 %v5431, %v5445
      %v5452 = vadd.f32 %v5432, %v5441
      %v5453 = vadd.f32 %v5433, %v5445
      %v5454 = vadd.f32 %v5434, %v5441
      %v5455 = vadd.f32 %v5435, %v5445
      %v5456 = vmax.f32 %v5448, 0.0
      %v5457 = vmax.f32 %v5449, 0.0
      %v5458 = vmax.f32 %v5450, 0.0
      %v5459 = vmax.f32 %v5451, 0.0
      %v5460 = vmax.f32 %v5452, 0.0
      %v5461 = vmax.f32 %v5453, 0.0
      %v5462 = vmax.f32 %v5454, 0.0
      %v5463 = vmax.f32 %v5455, 0.0
      %v5464 = vpack.c.bf16 %v5458, %v5456
      %v5465 = vpack.c.bf16 %v5459, %v5457
      %v5466 = vpack.c.bf16 %v5462, %v5460
      %v5467 = vpack.c.bf16 %v5463, %v5461
      %v5468 = vld [vmem:[%s6] sm:$0xf]
      %v5469 = vld [vmem:[%s6 + $0x4] sm:$0xf]
      %v5470 = vld [vmem:[%s6 + $0x8] sm:$0xf]
      %v5471 = vld [vmem:[%s6 + $0xc] sm:$0xf]
      %v5472 = vld [vmem:[%s6 + $0x10] sm:$0xf]
      %v5473 = vld [vmem:[%s6 + $0x14] sm:$0xf]
      %v5474 = vld [vmem:[%s6 + $0x18] sm:$0xf]
      %v5475 = vld [vmem:[%s6 + $0x1c] sm:$0xf]
      %v5476 = vld [vmem:[%s6 + $0x20] sm:$0xf]
      %v5477 = vld [vmem:[%s6 + $0x24] sm:$0xf]
      %v5478 = vld [vmem:[%s6 + $0x28] sm:$0xf]
      %v5479 = vld [vmem:[%s6 + $0x2c] sm:$0xf]
      %v5480 = vld [vmem:[%s6 + $0x30] sm:$0xf]
      %v5481 = vld [vmem:[%s6 + $0x34] sm:$0xf]
      %v5482 = vld [vmem:[%s6 + $0x38] sm:$0xf]
      %v5483 = vld [vmem:[%s6 + $0x3c] sm:$0xf]
      %v5484 = vld [vmem:[%s6 + $0x40] sm:$0xf]
      %v5485 = vld [vmem:[%s6 + $0x44] sm:$0xf]
      %v5486 = vld [vmem:[%s6 + $0x48] sm:$0xf]
      %v5487 = vld [vmem:[%s6 + $0x4c] sm:$0xf]
      %v5488 = vld [vmem:[%s6 + $0x50] sm:$0xf]
      %v5489 = vld [vmem:[%s6 + $0x54] sm:$0xf]
      %v5490 = vld [vmem:[%s6 + $0x58] sm:$0xf]
      %v5491 = vld [vmem:[%s6 + $0x5c] sm:$0xf]
      %v5492 = vld [vmem:[%s6 + $0x60] sm:$0xf]
      %v5493 = vld [vmem:[%s6 + $0x64] sm:$0xf]
      %v5494 = vld [vmem:[%s6 + $0x68] sm:$0xf]
      %v5495 = vld [vmem:[%s6 + $0x6c] sm:$0xf]
      %v5496 = vld [vmem:[%s6 + $0x70] sm:$0xf]
      %v5497 = vld [vmem:[%s6 + $0x74] sm:$0xf]
      %v5498 = vld [vmem:[%s6 + $0x78] sm:$0xf]
      %v5499 = vld [vmem:[%s6 + $0x7c] sm:$0xf]
      %s5500 = scalar_lea.vmem %s6, 128
      %v5501 = vld [vmem:[%s5500] sm:$0xf]
      %v5502 = vld [vmem:[%s5500 + $0x4] sm:$0xf]
      %v5503 = vld [vmem:[%s5500 + $0x8] sm:$0xf]
      %v5504 = vld [vmem:[%s5500 + $0xc] sm:$0xf]
      %v5505 = vld [vmem:[%s5500 + $0x10] sm:$0xf]
      %v5506 = vld [vmem:[%s5500 + $0x14] sm:$0xf]
      %v5507 = vld [vmem:[%s5500 + $0x18] sm:$0xf]
      %v5508 = vld [vmem:[%s5500 + $0x1c] sm:$0xf]
      %v5509 = vld [vmem:[%s5500 + $0x20] sm:$0xf]
      %v5510 = vld [vmem:[%s5500 + $0x24] sm:$0xf]
      %v5511 = vld [vmem:[%s5500 + $0x28] sm:$0xf]
      %v5512 = vld [vmem:[%s5500 + $0x2c] sm:$0xf]
      %v5513 = vld [vmem:[%s5500 + $0x30] sm:$0xf]
      %v5514 = vld [vmem:[%s5500 + $0x34] sm:$0xf]
      %v5515 = vld [vmem:[%s5500 + $0x38] sm:$0xf]
      %v5516 = vld [vmem:[%s5500 + $0x3c] sm:$0xf]
      %v5517 = vld [vmem:[%s5500 + $0x40] sm:$0xf]
      %v5518 = vld [vmem:[%s5500 + $0x44] sm:$0xf]
      %v5519 = vld [vmem:[%s5500 + $0x48] sm:$0xf]
      %v5520 = vld [vmem:[%s5500 + $0x4c] sm:$0xf]
      %v5521 = vld [vmem:[%s5500 + $0x50] sm:$0xf]
      %v5522 = vld [vmem:[%s5500 + $0x54] sm:$0xf]
      %v5523 = vld [vmem:[%s5500 + $0x58] sm:$0xf]
      %v5524 = vld [vmem:[%s5500 + $0x5c] sm:$0xf]
      %v5525 = vld [vmem:[%s5500 + $0x60] sm:$0xf]
      %v5526 = vld [vmem:[%s5500 + $0x64] sm:$0xf]
      %v5527 = vld [vmem:[%s5500 + $0x68] sm:$0xf]
      %v5528 = vld [vmem:[%s5500 + $0x6c] sm:$0xf]
      %v5529 = vld [vmem:[%s5500 + $0x70] sm:$0xf]
      %v5530 = vld [vmem:[%s5500 + $0x74] sm:$0xf]
      %v5531 = vld [vmem:[%s5500 + $0x78] sm:$0xf]
      %v5532 = vld [vmem:[%s5500 + $0x7c] sm:$0xf]
      %v5537 = vrot.slane %v5464, 4
      %v5538 = vrot.slane %v5466, 4
      %v5539 = vsel %vm4707, %v5537, %v5538
      %v5540 = vrot.slane %v5465, 4
      %v5541 = vrot.slane %v5467, 4
      %v5542 = vsel %vm4707, %v5540, %v5541
      %v5577 = vunpack.c.l.b16 %v5501
      %v5578 = vunpack.c.l.b16 %v5502
      %v5579 = vunpack.c.l.b16 %v5503
      %v5580 = vunpack.c.l.b16 %v5504
      %v5581 = vunpack.c.l.b16 %v5505
      %v5582 = vunpack.c.l.b16 %v5506
      %v5583 = vunpack.c.l.b16 %v5507
      %v5584 = vunpack.c.l.b16 %v5508
      %v5585 = vunpack.c.l.b16 %v5509
      %v5586 = vunpack.c.l.b16 %v5510
      %v5587 = vunpack.c.l.b16 %v5511
      %v5588 = vunpack.c.l.b16 %v5512
      %v5589 = vunpack.c.l.b16 %v5513
      %v5590 = vunpack.c.l.b16 %v5514
      %v5591 = vunpack.c.l.b16 %v5515
      %v5592 = vunpack.c.l.b16 %v5516
      %v5593 = vunpack.c.l.b16 %v5517
      %v5594 = vunpack.c.l.b16 %v5518
      %v5595 = vunpack.c.l.b16 %v5519
      %v5596 = vunpack.c.l.b16 %v5520
      %v5597 = vunpack.c.l.b16 %v5521
      %v5598 = vunpack.c.l.b16 %v5522
      %v5599 = vunpack.c.l.b16 %v5523
      %v5600 = vunpack.c.l.b16 %v5524
      %v5601 = vunpack.c.l.b16 %v5525
      %v5602 = vunpack.c.l.b16 %v5526
      %v5603 = vunpack.c.l.b16 %v5527
      %v5604 = vunpack.c.l.b16 %v5528
      %v5605 = vunpack.c.l.b16 %v5529
      %v5606 = vunpack.c.l.b16 %v5530
      %v5607 = vunpack.c.l.b16 %v5531
      %v5608 = vunpack.c.l.b16 %v5532
      %v5609 = vpack.c.b16 %v5578, %v5577
      %v5610 = vpack.c.b16 %v5580, %v5579
      %v5611 = vpack.c.b16 %v5582, %v5581
      %v5612 = vpack.c.b16 %v5584, %v5583
      %v5613 = vpack.c.b16 %v5586, %v5585
      %v5614 = vpack.c.b16 %v5588, %v5587
      %v5615 = vpack.c.b16 %v5590, %v5589
      %v5616 = vpack.c.b16 %v5592, %v5591
      %v5617 = vpack.c.b16 %v5594, %v5593
      %v5618 = vpack.c.b16 %v5596, %v5595
      %v5619 = vpack.c.b16 %v5598, %v5597
      %v5620 = vpack.c.b16 %v5600, %v5599
      %v5621 = vpack.c.b16 %v5602, %v5601
      %v5622 = vpack.c.b16 %v5604, %v5603
      %v5623 = vpack.c.b16 %v5606, %v5605
      %v5624 = vpack.c.b16 %v5608, %v5607
      %5641 = vmatprep.subr.bf16.mxu0 0
      %5642 = vmatpush1.bf16.msra.mxu0 %v5609
      %5643 = vmatprep.subr.bf16.mxu0 0
      %5644 = vmatpush1.bf16.msra.mxu0 %v5610
      %5645 = vmatprep.subr.bf16.mxu0 0
      %5646 = vmatpush1.bf16.msra.mxu0 %v5611
      %5647 = vmatprep.subr.bf16.mxu0 0
      %5648 = vmatpush1.bf16.msra.mxu0 %v5612
      %5649 = vmatprep.subr.bf16.mxu0 0
      %5650 = vmatpush1.bf16.msra.mxu0 %v5613
      %5651 = vmatprep.subr.bf16.mxu0 0
      %5652 = vmatpush1.bf16.msra.mxu0 %v5614
      %5653 = vmatprep.subr.bf16.mxu0 0
      %5654 = vmatpush1.bf16.msra.mxu0 %v5615
      %5655 = vmatprep.subr.bf16.mxu0 0
      %5656 = vmatpush1.bf16.msra.mxu0 %v5616
      %5657 = vmatprep.subr.bf16.mxu0 0
      %5658 = vmatpush1.bf16.msra.mxu0 %v5617
      %5659 = vmatprep.subr.bf16.mxu0 0
      %5660 = vmatpush1.bf16.msra.mxu0 %v5618
      %5661 = vmatprep.subr.bf16.mxu0 0
      %5662 = vmatpush1.bf16.msra.mxu0 %v5619
      %5663 = vmatprep.subr.bf16.mxu0 0
      %5664 = vmatpush1.bf16.msra.mxu0 %v5620
      %5665 = vmatprep.subr.bf16.mxu0 0
      %5666 = vmatpush1.bf16.msra.mxu0 %v5621
      %5667 = vmatprep.subr.bf16.mxu0 0
      %5668 = vmatpush1.bf16.msra.mxu0 %v5622
      %5669 = vmatprep.subr.bf16.mxu0 0
      %5670 = vmatpush1.bf16.msra.mxu0 %v5623
      %5671 = vmatprep.subr.bf16.mxu0 0
      %5672 = vmatpush1.bf16.msra.mxu0 %v5624
      %5673 = vmatprep.mubr.bf16.mxu0 %v5542
      %5674 = vmatmul.mubr.bf16.gmra.mrb[0].mxu0 %v5539
      %v5675 = vpop.f32.mrb[0].mxu0
      %v5676 = vadd.f32 0.0, %v5675
      %v5677 = vpop.f32.mrb[0].mxu0
      %v5678 = vpop.f32.mrb[0].mxu0
      %v5679 = vadd.f32 0.0, %v5678
      %v5680 = vpop.f32.mrb[0].mxu0
      %5681 = vdwg.mxu0
      %v5714 = vunpack.c.l.b16 %v5468
      %v5715 = vunpack.c.l.b16 %v5469
      %v5716 = vunpack.c.l.b16 %v5470
      %v5717 = vunpack.c.l.b16 %v5471
      %v5718 = vunpack.c.l.b16 %v5472
      %v5719 = vunpack.c.l.b16 %v5473
      %v5720 = vunpack.c.l.b16 %v5474
      %v5721 = vunpack.c.l.b16 %v5475
      %v5722 = vunpack.c.l.b16 %v5476
      %v5723 = vunpack.c.l.b16 %v5477
      %v5724 = vunpack.c.l.b16 %v5478
      %v5725 = vunpack.c.l.b16 %v5479
      %v5726 = vunpack.c.l.b16 %v5480
      %v5727 = vunpack.c.l.b16 %v5481
      %v5728 = vunpack.c.l.b16 %v5482
      %v5729 = vunpack.c.l.b16 %v5483
      %v5730 = vunpack.c.l.b16 %v5484
      %v5731 = vunpack.c.l.b16 %v5485
      %v5732 = vunpack.c.l.b16 %v5486
      %v5733 = vunpack.c.l.b16 %v5487
      %v5734 = vunpack.c.l.b16 %v5488
      %v5735 = vunpack.c.l.b16 %v5489
      %v5736 = vunpack.c.l.b16 %v5490
      %v5737 = vunpack.c.l.b16 %v5491
      %v5738 = vunpack.c.l.b16 %v5492
      %v5739 = vunpack.c.l.b16 %v5493
      %v5740 = vunpack.c.l.b16 %v5494
      %v5741 = vunpack.c.l.b16 %v5495
      %v5742 = vunpack.c.l.b16 %v5496
      %v5743 = vunpack.c.l.b16 %v5497
      %v5744 = vunpack.c.l.b16 %v5498
      %v5745 = vunpack.c.l.b16 %v5499
      %v5746 = vpack.c.b16 %v5715, %v5714
      %v5747 = vpack.c.b16 %v5717, %v5716
      %v5748 = vpack.c.b16 %v5719, %v5718
      %v5749 = vpack.c.b16 %v5721, %v5720
      %v5750 = vpack.c.b16 %v5723, %v5722
      %v5751 = vpack.c.b16 %v5725, %v5724
      %v5752 = vpack.c.b16 %v5727, %v5726
      %v5753 = vpack.c.b16 %v5729, %v5728
      %v5754 = vpack.c.b16 %v5731, %v5730
      %v5755 = vpack.c.b16 %v5733, %v5732
      %v5756 = vpack.c.b16 %v5735, %v5734
      %v5757 = vpack.c.b16 %v5737, %v5736
      %v5758 = vpack.c.b16 %v5739, %v5738
      %v5759 = vpack.c.b16 %v5741, %v5740
      %v5760 = vpack.c.b16 %v5743, %v5742
      %v5761 = vpack.c.b16 %v5745, %v5744
      %5778 = vmatprep.subr.bf16.mxu0 0
      %5779 = vmatpush1.bf16.msra.mxu0 %v5746
      %5780 = vmatprep.subr.bf16.mxu0 0
      %5781 = vmatpush1.bf16.msra.mxu0 %v5747
      %5782 = vmatprep.subr.bf16.mxu0 0
      %5783 = vmatpush1.bf16.msra.mxu0 %v5748
      %5784 = vmatprep.subr.bf16.mxu0 0
      %5785 = vmatpush1.bf16.msra.mxu0 %v5749
      %5786 = vmatprep.subr.bf16.mxu0 0
      %5787 = vmatpush1.bf16.msra.mxu0 %v5750
      %5788 = vmatprep.subr.bf16.mxu0 0
      %5789 = vmatpush1.bf16.msra.mxu0 %v5751
      %5790 = vmatprep.subr.bf16.mxu0 0
      %5791 = vmatpush1.bf16.msra.mxu0 %v5752
      %5792 = vmatprep.subr.bf16.mxu0 0
      %5793 = vmatpush1.bf16.msra.mxu0 %v5753
      %5794 = vmatprep.subr.bf16.mxu0 0
      %5795 = vmatpush1.bf16.msra.mxu0 %v5754
      %5796 = vmatprep.subr.bf16.mxu0 0
      %5797 = vmatpush1.bf16.msra.mxu0 %v5755
      %5798 = vmatprep.subr.bf16.mxu0 0
      %5799 = vmatpush1.bf16.msra.mxu0 %v5756
      %5800 = vmatprep.subr.bf16.mxu0 0
      %5801 = vmatpush1.bf16.msra.mxu0 %v5757
      %5802 = vmatprep.subr.bf16.mxu0 0
      %5803 = vmatpush1.bf16.msra.mxu0 %v5758
      %5804 = vmatprep.subr.bf16.mxu0 0
      %5805 = vmatpush1.bf16.msra.mxu0 %v5759
      %5806 = vmatprep.subr.bf16.mxu0 0
      %5807 = vmatpush1.bf16.msra.mxu0 %v5760
      %5808 = vmatprep.subr.bf16.mxu0 0
      %5809 = vmatpush1.bf16.msra.mxu0 %v5761
      %5810 = vmatprep.mubr.bf16.mxu0 %v5465
      %5811 = vmatmul.mubr.bf16.gmra.mrb[0].mxu0 %v5464
      %v5812 = vpop.f32.mrb[0].mxu0
      %v5813 = vadd.f32 %v5676, %v5812
      %v5814 = vpop.f32.mrb[0].mxu0
      %v5815 = vpop.f32.mrb[0].mxu0
      %v5816 = vadd.f32 %v5679, %v5815
      %v5817 = vpop.f32.mrb[0].mxu0
      %5818 = vdwg.mxu0
      %s5819 = scalar_lea.vmem %s6, 256
      %v5820 = vld [vmem:[%s5819] sm:$0xf]
      %v5821 = vld [vmem:[%s5819 + $0x4] sm:$0xf]
      %v5822 = vld [vmem:[%s5819 + $0x8] sm:$0xf]
      %v5823 = vld [vmem:[%s5819 + $0xc] sm:$0xf]
      %v5824 = vld [vmem:[%s5819 + $0x10] sm:$0xf]
      %v5825 = vld [vmem:[%s5819 + $0x14] sm:$0xf]
      %v5826 = vld [vmem:[%s5819 + $0x18] sm:$0xf]
      %v5827 = vld [vmem:[%s5819 + $0x1c] sm:$0xf]
      %v5828 = vld [vmem:[%s5819 + $0x20] sm:$0xf]
      %v5829 = vld [vmem:[%s5819 + $0x24] sm:$0xf]
      %v5830 = vld [vmem:[%s5819 + $0x28] sm:$0xf]
      %v5831 = vld [vmem:[%s5819 + $0x2c] sm:$0xf]
      %v5832 = vld [vmem:[%s5819 + $0x30] sm:$0xf]
      %v5833 = vld [vmem:[%s5819 + $0x34] sm:$0xf]
      %v5834 = vld [vmem:[%s5819 + $0x38] sm:$0xf]
      %v5835 = vld [vmem:[%s5819 + $0x3c] sm:$0xf]
      %v5836 = vld [vmem:[%s5819 + $0x40] sm:$0xf]
      %v5837 = vld [vmem:[%s5819 + $0x44] sm:$0xf]
      %v5838 = vld [vmem:[%s5819 + $0x48] sm:$0xf]
      %v5839 = vld [vmem:[%s5819 + $0x4c] sm:$0xf]
      %v5840 = vld [vmem:[%s5819 + $0x50] sm:$0xf]
      %v5841 = vld [vmem:[%s5819 + $0x54] sm:$0xf]
      %v5842 = vld [vmem:[%s5819 + $0x58] sm:$0xf]
      %v5843 = vld [vmem:[%s5819 + $0x5c] sm:$0xf]
      %v5844 = vld [vmem:[%s5819 + $0x60] sm:$0xf]
      %v5845 = vld [vmem:[%s5819 + $0x64] sm:$0xf]
      %v5846 = vld [vmem:[%s5819 + $0x68] sm:$0xf]
      %v5847 = vld [vmem:[%s5819 + $0x6c] sm:$0xf]
      %v5848 = vld [vmem:[%s5819 + $0x70] sm:$0xf]
      %v5849 = vld [vmem:[%s5819 + $0x74] sm:$0xf]
      %v5850 = vld [vmem:[%s5819 + $0x78] sm:$0xf]
      %v5851 = vld [vmem:[%s5819 + $0x7c] sm:$0xf]
      %v5884 = vunpack.c.l.b16 %v5820
      %v5885 = vunpack.c.l.b16 %v5821
      %v5886 = vunpack.c.l.b16 %v5822
      %v5887 = vunpack.c.l.b16 %v5823
      %v5888 = vunpack.c.l.b16 %v5824
      %v5889 = vunpack.c.l.b16 %v5825
      %v5890 = vunpack.c.l.b16 %v5826
      %v5891 = vunpack.c.l.b16 %v5827
      %v5892 = vunpack.c.l.b16 %v5828
      %v5893 = vunpack.c.l.b16 %v5829
      %v5894 = vunpack.c.l.b16 %v5830
      %v5895 = vunpack.c.l.b16 %v5831
      %v5896 = vunpack.c.l.b16 %v5832
      %v5897 = vunpack.c.l.b16 %v5833
      %v5898 = vunpack.c.l.b16 %v5834
      %v5899 = vunpack.c.l.b16 %v5835
      %v5900 = vunpack.c.l.b16 %v5836
      %v5901 = vunpack.c.l.b16 %v5837
      %v5902 = vunpack.c.l.b16 %v5838
      %v5903 = vunpack.c.l.b16 %v5839
      %v5904 = vunpack.c.l.b16 %v5840
      %v5905 = vunpack.c.l.b16 %v5841
      %v5906 = vunpack.c.l.b16 %v5842
      %v5907 = vunpack.c.l.b16 %v5843
      %v5908 = vunpack.c.l.b16 %v5844
      %v5909 = vunpack.c.l.b16 %v5845
      %v5910 = vunpack.c.l.b16 %v5846
      %v5911 = vunpack.c.l.b16 %v5847
      %v5912 = vunpack.c.l.b16 %v5848
      %v5913 = vunpack.c.l.b16 %v5849
      %v5914 = vunpack.c.l.b16 %v5850
      %v5915 = vunpack.c.l.b16 %v5851
      %v5916 = vpack.c.b16 %v5885, %v5884
      %v5917 = vpack.c.b16 %v5887, %v5886
      %v5918 = vpack.c.b16 %v5889, %v5888
      %v5919 = vpack.c.b16 %v5891, %v5890
      %v5920 = vpack.c.b16 %v5893, %v5892
      %v5921 = vpack.c.b16 %v5895, %v5894
      %v5922 = vpack.c.b16 %v5897, %v5896
      %v5923 = vpack.c.b16 %v5899, %v5898
      %v5924 = vpack.c.b16 %v5901, %v5900
      %v5925 = vpack.c.b16 %v5903, %v5902
      %v5926 = vpack.c.b16 %v5905, %v5904
      %v5927 = vpack.c.b16 %v5907, %v5906
      %v5928 = vpack.c.b16 %v5909, %v5908
      %v5929 = vpack.c.b16 %v5911, %v5910
      %v5930 = vpack.c.b16 %v5913, %v5912
      %v5931 = vpack.c.b16 %v5915, %v5914
      %5948 = vmatprep.subr.bf16.mxu0 0
      %5949 = vmatpush1.bf16.msra.mxu0 %v5916
      %5950 = vmatprep.subr.bf16.mxu0 0
      %5951 = vmatpush1.bf16.msra.mxu0 %v5917
      %5952 = vmatprep.subr.bf16.mxu0 0
      %5953 = vmatpush1.bf16.msra.mxu0 %v5918
      %5954 = vmatprep.subr.bf16.mxu0 0
      %5955 = vmatpush1.bf16.msra.mxu0 %v5919
      %5956 = vmatprep.subr.bf16.mxu0 0
      %5957 = vmatpush1.bf16.msra.mxu0 %v5920
      %5958 = vmatprep.subr.bf16.mxu0 0
      %5959 = vmatpush1.bf16.msra.mxu0 %v5921
      %5960 = vmatprep.subr.bf16.mxu0 0
      %5961 = vmatpush1.bf16.msra.mxu0 %v5922
      %5962 = vmatprep.subr.bf16.mxu0 0
      %5963 = vmatpush1.bf16.msra.mxu0 %v5923
      %5964 = vmatprep.subr.bf16.mxu0 0
      %5965 = vmatpush1.bf16.msra.mxu0 %v5924
      %5966 = vmatprep.subr.bf16.mxu0 0
      %5967 = vmatpush1.bf16.msra.mxu0 %v5925
      %5968 = vmatprep.subr.bf16.mxu0 0
      %5969 = vmatpush1.bf16.msra.mxu0 %v5926
      %5970 = vmatprep.subr.bf16.mxu0 0
      %5971 = vmatpush1.bf16.msra.mxu0 %v5927
      %5972 = vmatprep.subr.bf16.mxu0 0
      %5973 = vmatpush1.bf16.msra.mxu0 %v5928
      %5974 = vmatprep.subr.bf16.mxu0 0
      %5975 = vmatpush1.bf16.msra.mxu0 %v5929
      %5976 = vmatprep.subr.bf16.mxu0 0
      %5977 = vmatpush1.bf16.msra.mxu0 %v5930
      %5978 = vmatprep.subr.bf16.mxu0 0
      %5979 = vmatpush1.bf16.msra.mxu0 %v5931
      %5980 = vmatprep.mubr.bf16.mxu0 %v5467
      %5981 = vmatmul.mubr.bf16.gmra.mrb[0].mxu0 %v5466
      %v5982 = vpop.f32.mrb[0].mxu0
      %v5983 = vadd.f32 0.0, %v5982
      %v5984 = vpop.f32.mrb[0].mxu0
      %v5985 = vpop.f32.mrb[0].mxu0
      %v5986 = vadd.f32 0.0, %v5985
      %v5987 = vpop.f32.mrb[0].mxu0
      %5988 = vdwg.mxu0
      %v5989 = vadd.f32 %v5813, %v5983
      %v5990 = vadd.f32 %v5816, %v5986
      %v5991 = vld [vmem:[%s7] sm:$0x1]
      %v5993 = vlaneseq
      %v5994 = vshrl.u32 %v5993, 7
      %v5995 = vsub.s32 0, %v5994
      %v5996 = vrot.slane %v5991, %v5995
      %v5998 = vadd.f32 %v5989, %v5996
      %v5999 = vadd.f32 %v5990, %v5996
      %v6000 = vmax.f32 %v5998, 0.0
      %v6001 = vmax.f32 %v5999, 0.0
      %v6002 = vpack.c.bf16 %v6001, %v6000
      %v6003 = vld [vmem:[%s8] sm:$0xff]
      %v6004 = vld [vmem:[%s8 + $0x8] sm:$0xff]
      %v6005 = vld [vmem:[%s8 + $0x10] sm:$0xff]
      %v6006 = vld [vmem:[%s8 + $0x18] sm:$0xff]
      %v6007 = vld [vmem:[%s8 + $0x20] sm:$0xff]
      %v6008 = vld [vmem:[%s8 + $0x28] sm:$0xff]
      %v6009 = vld [vmem:[%s8 + $0x30] sm:$0xff]
      %v6010 = vld [vmem:[%s8 + $0x38] sm:$0xff]
      %v6011 = vld [vmem:[%s8 + $0x40] sm:$0xff]
      %v6012 = vld [vmem:[%s8 + $0x48] sm:$0xff]
      %v6013 = vld [vmem:[%s8 + $0x50] sm:$0xff]
      %v6014 = vld [vmem:[%s8 + $0x58] sm:$0xff]
      %v6015 = vld [vmem:[%s8 + $0x60] sm:$0xff]
      %v6016 = vld [vmem:[%s8 + $0x68] sm:$0xff]
      %v6017 = vld [vmem:[%s8 + $0x70] sm:$0xff]
      %v6018 = vld [vmem:[%s8 + $0x78] sm:$0xff]
      %v6019 = vld [vmem:[%s8 + $0x80] sm:$0xff]
      %v6020 = vld [vmem:[%s8 + $0x88] sm:$0xff]
      %v6021 = vld [vmem:[%s8 + $0x90] sm:$0xff]
      %v6022 = vld [vmem:[%s8 + $0x98] sm:$0xff]
      %v6023 = vld [vmem:[%s8 + $0xa0] sm:$0xff]
      %v6024 = vld [vmem:[%s8 + $0xa8] sm:$0xff]
      %v6025 = vld [vmem:[%s8 + $0xb0] sm:$0xff]
      %v6026 = vld [vmem:[%s8 + $0xb8] sm:$0xff]
      %v6027 = vld [vmem:[%s8 + $0xc0] sm:$0xff]
      %v6028 = vld [vmem:[%s8 + $0xc8] sm:$0xff]
      %v6029 = vld [vmem:[%s8 + $0xd0] sm:$0xff]
      %v6030 = vld [vmem:[%s8 + $0xd8] sm:$0xff]
      %v6031 = vld [vmem:[%s8 + $0xe0] sm:$0xff]
      %v6032 = vld [vmem:[%s8 + $0xe8] sm:$0xff]
      %v6033 = vld [vmem:[%s8 + $0xf0] sm:$0xff]
      %v6034 = vld [vmem:[%s8 + $0xf8] sm:$0xff]
      %s6035 = scalar_lea.vmem %s8, 256
      %v6036 = vld [vmem:[%s6035] sm:$0xff]
      %v6037 = vld [vmem:[%s6035 + $0x8] sm:$0xff]
      %v6038 = vld [vmem:[%s6035 + $0x10] sm:$0xff]
      %v6039 = vld [vmem:[%s6035 + $0x18] sm:$0xff]
      %v6040 = vld [vmem:[%s6035 + $0x20] sm:$0xff]
      %v6041 = vld [vmem:[%s6035 + $0x28] sm:$0xff]
      %v6042 = vld [vmem:[%s6035 + $0x30] sm:$0xff]
      %v6043 = vld [vmem:[%s6035 + $0x38] sm:$0xff]
      %v6044 = vld [vmem:[%s6035 + $0x40] sm:$0xff]
      %v6045 = vld [vmem:[%s6035 + $0x48] sm:$0xff]
      %v6046 = vld [vmem:[%s6035 + $0x50] sm:$0xff]
      %v6047 = vld [vmem:[%s6035 + $0x58] sm:$0xff]
      %v6048 = vld [vmem:[%s6035 + $0x60] sm:$0xff]
      %v6049 = vld [vmem:[%s6035 + $0x68] sm:$0xff]
      %v6050 = vld [vmem:[%s6035 + $0x70] sm:$0xff]
      %v6051 = vld [vmem:[%s6035 + $0x78] sm:$0xff]
      %v6052 = vld [vmem:[%s6035 + $0x80] sm:$0xff]
      %v6053 = vld [vmem:[%s6035 + $0x88] sm:$0xff]
      %v6054 = vld [vmem:[%s6035 + $0x90] sm:$0xff]
      %v6055 = vld [vmem:[%s6035 + $0x98] sm:$0xff]
      %v6056 = vld [vmem:[%s6035 + $0xa0] sm:$0xff]
      %v6057 = vld [vmem:[%s6035 + $0xa8] sm:$0xff]
      %v6058 = vld [vmem:[%s6035 + $0xb0] sm:$0xff]
      %v6059 = vld [vmem:[%s6035 + $0xb8] sm:$0xff]
      %v6060 = vld [vmem:[%s6035 + $0xc0] sm:$0xff]
      %v6061 = vld [vmem:[%s6035 + $0xc8] sm:$0xff]
      %v6062 = vld [vmem:[%s6035 + $0xd0] sm:$0xff]
      %v6063 = vld [vmem:[%s6035 + $0xd8] sm:$0xff]
      %v6064 = vld [vmem:[%s6035 + $0xe0] sm:$0xff]
      %v6065 = vld [vmem:[%s6035 + $0xe8] sm:$0xff]
      %v6066 = vld [vmem:[%s6035 + $0xf0] sm:$0xff]
      %v6067 = vld [vmem:[%s6035 + $0xf8] sm:$0xff]
      %v6069 = vrot.slane %v6002, 4
      %v6103 = vunpack.c.l.b16 %v6036
      %v6104 = vunpack.c.h.b16 %v6036
      %v6105 = vunpack.c.l.b16 %v6037
      %v6106 = vunpack.c.h.b16 %v6037
      %v6107 = vunpack.c.l.b16 %v6038
      %v6108 = vunpack.c.h.b16 %v6038
      %v6109 = vunpack.c.l.b16 %v6039
      %v6110 = vunpack.c.h.b16 %v6039
      %v6111 = vunpack.c.l.b16 %v6040
      %v6112 = vunpack.c.h.b16 %v6040
      %v6113 = vunpack.c.l.b16 %v6041
      %v6114 = vunpack.c.h.b16 %v6041
      %v6115 = vunpack.c.l.b16 %v6042
      %v6116 = vunpack.c.h.b16 %v6042
      %v6117 = vunpack.c.l.b16 %v6043
      %v6118 = vunpack.c.h.b16 %v6043
      %v6119 = vunpack.c.l.b16 %v6044
      %v6120 = vunpack.c.h.b16 %v6044
      %v6121 = vunpack.c.l.b16 %v6045
      %v6122 = vunpack.c.h.b16 %v6045
      %v6123 = vunpack.c.l.b16 %v6046
      %v6124 = vunpack.c.h.b16 %v6046
      %v6125 = vunpack.c.l.b16 %v6047
      %v6126 = vunpack.c.h.b16 %v6047
      %v6127 = vunpack.c.l.b16 %v6048
      %v6128 = vunpack.c.h.b16 %v6048
      %v6129 = vunpack.c.l.b16 %v6049
      %v6130 = vunpack.c.h.b16 %v6049
      %v6131 = vunpack.c.l.b16 %v6050
      %v6132 = vunpack.c.h.b16 %v6050
      %v6133 = vunpack.c.l.b16 %v6051
      %v6134 = vunpack.c.h.b16 %v6051
      %v6135 = vunpack.c.l.b16 %v6052
      %v6136 = vunpack.c.h.b16 %v6052
      %v6137 = vunpack.c.l.b16 %v6053
      %v6138 = vunpack.c.h.b16 %v6053
      %v6139 = vunpack.c.l.b16 %v6054
      %v6140 = vunpack.c.h.b16 %v6054
      %v6141 = vunpack.c.l.b16 %v6055
      %v6142 = vunpack.c.h.b16 %v6055
      %v6143 = vunpack.c.l.b16 %v6056
      %v6144 = vunpack.c.h.b16 %v6056
      %v6145 = vunpack.c.l.b16 %v6057
      %v6146 = vunpack.c.h.b16 %v6057
      %v6147 = vunpack.c.l.b16 %v6058
      %v6148 = vunpack.c.h.b16 %v6058
      %v6149 = vunpack.c.l.b16 %v6059
      %v6150 = vunpack.c.h.b16 %v6059
      %v6151 = vunpack.c.l.b16 %v6060
      %v6152 = vunpack.c.h.b16 %v6060
      %v6153 = vunpack.c.l.b16 %v6061
      %v6154 = vunpack.c.h.b16 %v6061
      %v6155 = vunpack.c.l.b16 %v6062
      %v6156 = vunpack.c.h.b16 %v6062
      %v6157 = vunpack.c.l.b16 %v6063
      %v6158 = vunpack.c.h.b16 %v6063
      %v6159 = vunpack.c.l.b16 %v6064
      %v6160 = vunpack.c.h.b16 %v6064
      %v6161 = vunpack.c.l.b16 %v6065
      %v6162 = vunpack.c.h.b16 %v6065
      %v6163 = vunpack.c.l.b16 %v6066
      %v6164 = vunpack.c.h.b16 %v6066
      %v6165 = vunpack.c.l.b16 %v6067
      %v6166 = vunpack.c.h.b16 %v6067
      %v6167 = vpack.c.b16 %v6107, %v6103
      %v6168 = vpack.c.b16 %v6108, %v6104
      %v6169 = vpack.c.b16 %v6109, %v6105
      %v6170 = vpack.c.b16 %v6110, %v6106
      %v6171 = vpack.c.b16 %v6115, %v6111
      %v6172 = vpack.c.b16 %v6116, %v6112
      %v6173 = vpack.c.b16 %v6117, %v6113
      %v6174 = vpack.c.b16 %v6118, %v6114
      %v6175 = vpack.c.b16 %v6123, %v6119
      %v6176 = vpack.c.b16 %v6124, %v6120
      %v6177 = vpack.c.b16 %v6125, %v6121
      %v6178 = vpack.c.b16 %v6126, %v6122
      %v6179 = vpack.c.b16 %v6131, %v6127
      %v6180 = vpack.c.b16 %v6132, %v6128
      %v6181 = vpack.c.b16 %v6133, %v6129
      %v6182 = vpack.c.b16 %v6134, %v6130
      %v6183 = vpack.c.b16 %v6139, %v6135
      %v6184 = vpack.c.b16 %v6140, %v6136
      %v6185 = vpack.c.b16 %v6141, %v6137
      %v6186 = vpack.c.b16 %v6142, %v6138
      %v6187 = vpack.c.b16 %v6147, %v6143
      %v6188 = vpack.c.b16 %v6148, %v6144
      %v6189 = vpack.c.b16 %v6149, %v6145
      %v6190 = vpack.c.b16 %v6150, %v6146
      %v6191 = vpack.c.b16 %v6155, %v6151
      %v6192 = vpack.c.b16 %v6156, %v6152
      %v6193 = vpack.c.b16 %v6157, %v6153
      %v6194 = vpack.c.b16 %v6158, %v6154
      %v6195 = vpack.c.b16 %v6163, %v6159
      %v6196 = vpack.c.b16 %v6164, %v6160
      %v6197 = vpack.c.b16 %v6165, %v6161
      %v6198 = vpack.c.b16 %v6166, %v6162
      %6231 = vmatprep.subr.bf16.mxu0 %v6168
      %6232 = vmatpush1.bf16.msra.mxu0 %v6167
      %6233 = vmatprep.subr.bf16.mxu0 %v6172
      %6234 = vmatpush1.bf16.msra.mxu0 %v6171
      %6235 = vmatprep.subr.bf16.mxu0 %v6176
      %6236 = vmatpush1.bf16.msra.mxu0 %v6175
      %6237 = vmatprep.subr.bf16.mxu0 %v6180
      %6238 = vmatpush1.bf16.msra.mxu0 %v6179
      %6239 = vmatprep.subr.bf16.mxu0 %v6184
      %6240 = vmatpush1.bf16.msra.mxu0 %v6183
      %6241 = vmatprep.subr.bf16.mxu0 %v6188
      %6242 = vmatpush1.bf16.msra.mxu0 %v6187
      %6243 = vmatprep.subr.bf16.mxu0 %v6192
      %6244 = vmatpush1.bf16.msra.mxu0 %v6191
      %6245 = vmatprep.subr.bf16.mxu0 %v6196
      %6246 = vmatpush1.bf16.msra.mxu0 %v6195
      %6247 = vmatprep.subr.bf16.mxu0 0
      %6248 = vmatpush1.bf16.msra.mxu0 0
      %6249 = vmatprep.subr.bf16.mxu0 0
      %6250 = vmatpush1.bf16.msra.mxu0 0
      %6251 = vmatprep.subr.bf16.mxu0 0
      %6252 = vmatpush1.bf16.msra.mxu0 0
      %6253 = vmatprep.subr.bf16.mxu0 0
      %6254 = vmatpush1.bf16.msra.mxu0 0
      %6255 = vmatprep.subr.bf16.mxu0 0
      %6256 = vmatpush1.bf16.msra.mxu0 0
      %6257 = vmatprep.subr.bf16.mxu0 0
      %6258 = vmatpush1.bf16.msra.mxu0 0
      %6259 = vmatprep.subr.bf16.mxu0 0
      %6260 = vmatpush1.bf16.msra.mxu0 0
      %6261 = vmatprep.subr.bf16.mxu0 0
      %6262 = vmatpush1.bf16.msra.mxu0 0
      %6263 = vmatprep.mubr.bf16.mxu0 0
      %6264 = vmatmul.mubr.bf16.gmra.mrb[0].mxu0 %v6069
      %v6265 = vpop.f32.mrb[0].mxu0
      %v6266 = vadd.f32 0.0, %v6265
      %v6267 = vpop.f32.mrb[0].mxu0
      %v6268 = vadd.f32 0.0, %v6267
      %v6269 = vpop.f32.mrb[0].mxu0
      %v6270 = vpop.f32.mrb[0].mxu0
      %6271 = vdwg.mxu0
      %6272 = vmatprep.subr.bf16.mxu0 %v6170
      %6273 = vmatpush1.bf16.msra.mxu0 %v6169
      %6274 = vmatprep.subr.bf16.mxu0 %v6174
      %6275 = vmatpush1.bf16.msra.mxu0 %v6173
      %6276 = vmatprep.subr.bf16.mxu0 %v6178
      %6277 = vmatpush1.bf16.msra.mxu0 %v6177
      %6278 = vmatprep.subr.bf16.mxu0 %v6182
      %6279 = vmatpush1.bf16.msra.mxu0 %v6181
      %6280 = vmatprep.subr.bf16.mxu0 %v6186
      %6281 = vmatpush1.bf16.msra.mxu0 %v6185
      %6282 = vmatprep.subr.bf16.mxu0 %v6190
      %6283 = vmatpush1.bf16.msra.mxu0 %v6189
      %6284 = vmatprep.subr.bf16.mxu0 %v6194
      %6285 = vmatpush1.bf16.msra.mxu0 %v6193
      %6286 = vmatprep.subr.bf16.mxu0 %v6198
      %6287 = vmatpush1.bf16.msra.mxu0 %v6197
      %6288 = vmatprep.subr.bf16.mxu0 0
      %6289 = vmatpush1.bf16.msra.mxu0 0
      %6290 = vmatprep.subr.bf16.mxu0 0
      %6291 = vmatpush1.bf16.msra.mxu0 0
      %6292 = vmatprep.subr.bf16.mxu0 0
      %6293 = vmatpush1.bf16.msra.mxu0 0
      %6294 = vmatprep.subr.bf16.mxu0 0
      %6295 = vmatpush1.bf16.msra.mxu0 0
      %6296 = vmatprep.subr.bf16.mxu0 0
      %6297 = vmatpush1.bf16.msra.mxu0 0
      %6298 = vmatprep.subr.bf16.mxu0 0
      %6299 = vmatpush1.bf16.msra.mxu0 0
      %6300 = vmatprep.subr.bf16.mxu0 0
      %6301 = vmatpush1.bf16.msra.mxu0 0
      %6302 = vmatprep.subr.bf16.mxu0 0
      %6303 = vmatpush1.bf16.msra.mxu0 0
      %6304 = vmatprep.mubr.bf16.mxu0 0
      %6305 = vmatmul.mubr.bf16.gmra.mrb[0].mxu0 %v6069
      %v6306 = vpop.f32.mrb[0].mxu0
      %v6307 = vadd.f32 0.0, %v6306
      %v6308 = vpop.f32.mrb[0].mxu0
      %v6309 = vadd.f32 0.0, %v6308
      %v6310 = vpop.f32.mrb[0].mxu0
      %v6311 = vpop.f32.mrb[0].mxu0
      %6312 = vdwg.mxu0
      %v6345 = vunpack.c.l.b16 %v6003
      %v6346 = vunpack.c.h.b16 %v6003
      %v6347 = vunpack.c.l.b16 %v6004
      %v6348 = vunpack.c.h.b16 %v6004
      %v6349 = vunpack.c.l.b16 %v6005
      %v6350 = vunpack.c.h.b16 %v6005
      %v6351 = vunpack.c.l.b16 %v6006
      %v6352 = vunpack.c.h.b16 %v6006
      %v6353 = vunpack.c.l.b16 %v6007
      %v6354 = vunpack.c.h.b16 %v6007
      %v6355 = vunpack.c.l.b16 %v6008
      %v6356 = vunpack.c.h.b16 %v6008
      %v6357 = vunpack.c.l.b16 %v6009
      %v6358 = vunpack.c.h.b16 %v6009
      %v6359 = vunpack.c.l.b16 %v6010
      %v6360 = vunpack.c.h.b16 %v6010
      %v6361 = vunpack.c.l.b16 %v6011
      %v6362 = vunpack.c.h.b16 %v6011
      %v6363 = vunpack.c.l.b16 %v6012
      %v6364 = vunpack.c.h.b16 %v6012
      %v6365 = vunpack.c.l.b16 %v6013
      %v6366 = vunpack.c.h.b16 %v6013
      %v6367 = vunpack.c.l.b16 %v6014
      %v6368 = vunpack.c.h.b16 %v6014
      %v6369 = vunpack.c.l.b16 %v6015
      %v6370 = vunpack.c.h.b16 %v6015
      %v6371 = vunpack.c.l.b16 %v6016
      %v6372 = vunpack.c.h.b16 %v6016
      %v6373 = vunpack.c.l.b16 %v6017
      %v6374 = vunpack.c.h.b16 %v6017
      %v6375 = vunpack.c.l.b16 %v6018
      %v6376 = vunpack.c.h.b16 %v6018
      %v6377 = vunpack.c.l.b16 %v6019
      %v6378 = vunpack.c.h.b16 %v6019
      %v6379 = vunpack.c.l.b16 %v6020
      %v6380 = vunpack.c.h.b16 %v6020
      %v6381 = vunpack.c.l.b16 %v6021
      %v6382 = vunpack.c.h.b16 %v6021
      %v6383 = vunpack.c.l.b16 %v6022
      %v6384 = vunpack.c.h.b16 %v6022
      %v6385 = vunpack.c.l.b16 %v6023
      %v6386 = vunpack.c.h.b16 %v6023
      %v6387 = vunpack.c.l.b16 %v6024
      %v6388 = vunpack.c.h.b16 %v6024
      %v6389 = vunpack.c.l.b16 %v6025
      %v6390 = vunpack.c.h.b16 %v6025
      %v6391 = vunpack.c.l.b16 %v6026
      %v6392 = vunpack.c.h.b16 %v6026
      %v6393 = vunpack.c.l.b16 %v6027
      %v6394 = vunpack.c.h.b16 %v6027
      %v6395 = vunpack.c.l.b16 %v6028
      %v6396 = vunpack.c.h.b16 %v6028
      %v6397 = vunpack.c.l.b16 %v6029
      %v6398 = vunpack.c.h.b16 %v6029
      %v6399 = vunpack.c.l.b16 %v6030
      %v6400 = vunpack.c.h.b16 %v6030
      %v6401 = vunpack.c.l.b16 %v6031
      %v6402 = vunpack.c.h.b16 %v6031
      %v6403 = vunpack.c.l.b16 %v6032
      %v6404 = vunpack.c.h.b16 %v6032
      %v6405 = vunpack.c.l.b16 %v6033
      %v6406 = vunpack.c.h.b16 %v6033
      %v6407 = vunpack.c.l.b16 %v6034
      %v6408 = vunpack.c.h.b16 %v6034
      %v6409 = vpack.c.b16 %v6349, %v6345
      %v6410 = vpack.c.b16 %v6350, %v6346
      %v6411 = vpack.c.b16 %v6351, %v6347
      %v6412 = vpack.c.b16 %v6352, %v6348
      %v6413 = vpack.c.b16 %v6357, %v6353
      %v6414 = vpack.c.b16 %v6358, %v6354
      %v6415 = vpack.c.b16 %v6359, %v6355
      %v6416 = vpack.c.b16 %v6360, %v6356
      %v6417 = vpack.c.b16 %v6365, %v6361
      %v6418 = vpack.c.b16 %v6366, %v6362
      %v6419 = vpack.c.b16 %v6367, %v6363
      %v6420 = vpack.c.b16 %v6368, %v6364
      %v6421 = vpack.c.b16 %v6373, %v6369
      %v6422 = vpack.c.b16 %v6374, %v6370
      %v6423 = vpack.c.b16 %v6375, %v6371
      %v6424 = vpack.c.b16 %v6376, %v6372
      %v6425 = vpack.c.b16 %v6381, %v6377
      %v6426 = vpack.c.b16 %v6382, %v6378
      %v6427 = vpack.c.b16 %v6383, %v6379
      %v6428 = vpack.c.b16 %v6384, %v6380
      %v6429 = vpack.c.b16 %v6389, %v6385
      %v6430 = vpack.c.b16 %v6390, %v6386
      %v6431 = vpack.c.b16 %v6391, %v6387
      %v6432 = vpack.c.b16 %v6392, %v6388
      %v6433 = vpack.c.b16 %v6397, %v6393
      %v6434 = vpack.c.b16 %v6398, %v6394
      %v6435 = vpack.c.b16 %v6399, %v6395
      %v6436 = vpack.c.b16 %v6400, %v6396
      %v6437 = vpack.c.b16 %v6405, %v6401
      %v6438 = vpack.c.b16 %v6406, %v6402
      %v6439 = vpack.c.b16 %v6407, %v6403
      %v6440 = vpack.c.b16 %v6408, %v6404
      %6473 = vmatprep.subr.bf16.mxu0 %v6410
      %6474 = vmatpush1.bf16.msra.mxu0 %v6409
      %6475 = vmatprep.subr.bf16.mxu0 %v6414
      %6476 = vmatpush1.bf16.msra.mxu0 %v6413
      %6477 = vmatprep.subr.bf16.mxu0 %v6418
      %6478 = vmatpush1.bf16.msra.mxu0 %v6417
      %6479 = vmatprep.subr.bf16.mxu0 %v6422
      %6480 = vmatpush1.bf16.msra.mxu0 %v6421
      %6481 = vmatprep.subr.bf16.mxu0 %v6426
      %6482 = vmatpush1.bf16.msra.mxu0 %v6425
      %6483 = vmatprep.subr.bf16.mxu0 %v6430
      %6484 = vmatpush1.bf16.msra.mxu0 %v6429
      %6485 = vmatprep.subr.bf16.mxu0 %v6434
      %6486 = vmatpush1.bf16.msra.mxu0 %v6433
      %6487 = vmatprep.subr.bf16.mxu0 %v6438
      %6488 = vmatpush1.bf16.msra.mxu0 %v6437
      %6489 = vmatprep.subr.bf16.mxu0 0
      %6490 = vmatpush1.bf16.msra.mxu0 0
      %6491 = vmatprep.subr.bf16.mxu0 0
      %6492 = vmatpush1.bf16.msra.mxu0 0
      %6493 = vmatprep.subr.bf16.mxu0 0
      %6494 = vmatpush1.bf16.msra.mxu0 0
      %6495 = vmatprep.subr.bf16.mxu0 0
      %6496 = vmatpush1.bf16.msra.mxu0 0
      %6497 = vmatprep.subr.bf16.mxu0 0
      %6498 = vmatpush1.bf16.msra.mxu0 0
      %6499 = vmatprep.subr.bf16.mxu0 0
      %6500 = vmatpush1.bf16.msra.mxu0 0
      %6501 = vmatprep.subr.bf16.mxu0 0
      %6502 = vmatpush1.bf16.msra.mxu0 0
      %6503 = vmatprep.subr.bf16.mxu0 0
      %6504 = vmatpush1.bf16.msra.mxu0 0
      %6505 = vmatprep.mubr.bf16.mxu0 0
      %6506 = vmatmul.mubr.bf16.gmra.mrb[0].mxu0 %v6002
      %v6507 = vpop.f32.mrb[0].mxu0
      %v6508 = vadd.f32 %v6266, %v6507
      %v6509 = vpop.f32.mrb[0].mxu0
      %v6510 = vadd.f32 %v6268, %v6509
      %v6511 = vpop.f32.mrb[0].mxu0
      %v6512 = vpop.f32.mrb[0].mxu0
      %6513 = vdwg.mxu0
      %6514 = vmatprep.subr.bf16.mxu0 %v6412
      %6515 = vmatpush1.bf16.msra.mxu0 %v6411
      %6516 = vmatprep.subr.bf16.mxu0 %v6416
      %6517 = vmatpush1.bf16.msra.mxu0 %v6415
      %6518 = vmatprep.subr.bf16.mxu0 %v6420
      %6519 = vmatpush1.bf16.msra.mxu0 %v6419
      %6520 = vmatprep.subr.bf16.mxu0 %v6424
      %6521 = vmatpush1.bf16.msra.mxu0 %v6423
      %6522 = vmatprep.subr.bf16.mxu0 %v6428
      %6523 = vmatpush1.bf16.msra.mxu0 %v6427
      %6524 = vmatprep.subr.bf16.mxu0 %v6432
      %6525 = vmatpush1.bf16.msra.mxu0 %v6431
      %6526 = vmatprep.subr.bf16.mxu0 %v6436
      %6527 = vmatpush1.bf16.msra.mxu0 %v6435
      %6528 = vmatprep.subr.bf16.mxu0 %v6440
      %6529 = vmatpush1.bf16.msra.mxu0 %v6439
      %6530 = vmatprep.subr.bf16.mxu0 0
      %6531 = vmatpush1.bf16.msra.mxu0 0
      %6532 = vmatprep.subr.bf16.mxu0 0
      %6533 = vmatpush1.bf16.msra.mxu0 0
      %6534 = vmatprep.subr.bf16.mxu0 0
      %6535 = vmatpush1.bf16.msra.mxu0 0
      %6536 = vmatprep.subr.bf16.mxu0 0
      %6537 = vmatpush1.bf16.msra.mxu0 0
      %6538 = vmatprep.subr.bf16.mxu0 0
      %6539 = vmatpush1.bf16.msra.mxu0 0
      %6540 = vmatprep.subr.bf16.mxu0 0
      %6541 = vmatpush1.bf16.msra.mxu0 0
      %6542 = vmatprep.subr.bf16.mxu0 0
      %6543 = vmatpush1.bf16.msra.mxu0 0
      %6544 = vmatprep.subr.bf16.mxu0 0
      %6545 = vmatpush1.bf16.msra.mxu0 0
      %6546 = vmatprep.mubr.bf16.mxu0 0
      %6547 = vmatmul.mubr.bf16.gmra.mrb[0].mxu0 %v6002
      %v6548 = vpop.f32.mrb[0].mxu0
      %v6549 = vadd.f32 %v6307, %v6548
      %v6550 = vpop.f32.mrb[0].mxu0
      %v6551 = vadd.f32 %v6309, %v6550
      %v6552 = vpop.f32.mrb[0].mxu0
      %v6553 = vpop.f32.mrb[0].mxu0
      %6554 = vdwg.mxu0
      %v6555 = vld [vmem:[%s9] sm:$0xf]
      %v6557 = vlaneseq
      %v6558 = vshrl.u32 %v6557, 7
      %v6559 = vsub.s32 0, %v6558
      %v6560 = vrot.slane %v6555, %v6559
      %v6561 = vlaneseq
      %v6562 = vshrl.u32 %v6561, 7
      %v6563 = vsub.s32 1, %v6562
      %v6564 = vrot.slane %v6555, %v6563
      %v6565 = vlaneseq
      %v6566 = vshrl.u32 %v6565, 7
      %v6567 = vsub.s32 2, %v6566
      %v6568 = vrot.slane %v6555, %v6567
      %v6569 = vlaneseq
      %v6570 = vshrl.u32 %v6569, 7
      %v6571 = vsub.s32 3, %v6570
      %v6572 = vrot.slane %v6555, %v6571
      %v6577 = vadd.f32 %v6508, %v6560
      %v6578 = vadd.f32 %v6510, %v6564
      %v6579 = vadd.f32 %v6549, %v6568
      %v6580 = vadd.f32 %v6551, %v6572
      %v6581 = vmax.f32 %v6577, 0.0
      %v6582 = vmax.f32 %v6578, 0.0
      %v6583 = vmax.f32 %v6579, 0.0
      %v6584 = vmax.f32 %v6580, 0.0
      %v6585 = vpack.c.bf16 %v6581, %v6581
      %v6586 = vpack.c.bf16 %v6582, %v6582
      %v6587 = vpack.c.bf16 %v6583, %v6583
      %v6588 = vpack.c.bf16 %v6584, %v6584
      %v6589 = vld [vmem:[%s10] sm:$0xf]
      %v6590 = vld [vmem:[%s10 + $0x4] sm:$0xf]
      %v6591 = vld [vmem:[%s10 + $0x8] sm:$0xf]
      %v6592 = vld [vmem:[%s10 + $0xc] sm:$0xf]
      %v6593 = vld [vmem:[%s10 + $0x10] sm:$0xf]
      %v6594 = vld [vmem:[%s10 + $0x14] sm:$0xf]
      %v6595 = vld [vmem:[%s10 + $0x18] sm:$0xf]
      %v6596 = vld [vmem:[%s10 + $0x1c] sm:$0xf]
      %v6597 = vld [vmem:[%s10 + $0x20] sm:$0xf]
      %v6598 = vld [vmem:[%s10 + $0x24] sm:$0xf]
      %v6599 = vld [vmem:[%s10 + $0x28] sm:$0xf]
      %v6600 = vld [vmem:[%s10 + $0x2c] sm:$0xf]
      %v6601 = vld [vmem:[%s10 + $0x30] sm:$0xf]
      %v6602 = vld [vmem:[%s10 + $0x34] sm:$0xf]
      %v6603 = vld [vmem:[%s10 + $0x38] sm:$0xf]
      %v6604 = vld [vmem:[%s10 + $0x3c] sm:$0xf]
      %v6605 = vld [vmem:[%s10 + $0x40] sm:$0xf]
      %v6606 = vld [vmem:[%s10 + $0x44] sm:$0xf]
      %v6607 = vld [vmem:[%s10 + $0x48] sm:$0xf]
      %v6608 = vld [vmem:[%s10 + $0x4c] sm:$0xf]
      %v6609 = vld [vmem:[%s10 + $0x50] sm:$0xf]
      %v6610 = vld [vmem:[%s10 + $0x54] sm:$0xf]
      %v6611 = vld [vmem:[%s10 + $0x58] sm:$0xf]
      %v6612 = vld [vmem:[%s10 + $0x5c] sm:$0xf]
      %v6613 = vld [vmem:[%s10 + $0x60] sm:$0xf]
      %v6614 = vld [vmem:[%s10 + $0x64] sm:$0xf]
      %v6615 = vld [vmem:[%s10 + $0x68] sm:$0xf]
      %v6616 = vld [vmem:[%s10 + $0x6c] sm:$0xf]
      %v6617 = vld [vmem:[%s10 + $0x70] sm:$0xf]
      %v6618 = vld [vmem:[%s10 + $0x74] sm:$0xf]
      %v6619 = vld [vmem:[%s10 + $0x78] sm:$0xf]
      %v6620 = vld [vmem:[%s10 + $0x7c] sm:$0xf]
      %v6621 = vld [vmem:[%s10 + $0x80] sm:$0xf]
      %v6622 = vld [vmem:[%s10 + $0x84] sm:$0xf]
      %v6623 = vld [vmem:[%s10 + $0x88] sm:$0xf]
      %v6624 = vld [vmem:[%s10 + $0x8c] sm:$0xf]
      %v6625 = vld [vmem:[%s10 + $0x90] sm:$0xf]
      %v6626 = vld [vmem:[%s10 + $0x94] sm:$0xf]
      %v6627 = vld [vmem:[%s10 + $0x98] sm:$0xf]
      %v6628 = vld [vmem:[%s10 + $0x9c] sm:$0xf]
      %v6629 = vld [vmem:[%s10 + $0xa0] sm:$0xf]
      %v6630 = vld [vmem:[%s10 + $0xa4] sm:$0xf]
      %v6631 = vld [vmem:[%s10 + $0xa8] sm:$0xf]
      %v6632 = vld [vmem:[%s10 + $0xac] sm:$0xf]
      %v6633 = vld [vmem:[%s10 + $0xb0] sm:$0xf]
      %v6634 = vld [vmem:[%s10 + $0xb4] sm:$0xf]
      %v6635 = vld [vmem:[%s10 + $0xb8] sm:$0xf]
      %v6636 = vld [vmem:[%s10 + $0xbc] sm:$0xf]
      %v6637 = vld [vmem:[%s10 + $0xc0] sm:$0xf]
      %v6638 = vld [vmem:[%s10 + $0xc4] sm:$0xf]
      %v6639 = vld [vmem:[%s10 + $0xc8] sm:$0xf]
      %v6640 = vld [vmem:[%s10 + $0xcc] sm:$0xf]
      %v6641 = vld [vmem:[%s10 + $0xd0] sm:$0xf]
      %v6642 = vld [vmem:[%s10 + $0xd4] sm:$0xf]
      %v6643 = vld [vmem:[%s10 + $0xd8] sm:$0xf]
      %v6644 = vld [vmem:[%s10 + $0xdc] sm:$0xf]
      %v6645 = vld [vmem:[%s10 + $0xe0] sm:$0xf]
      %v6646 = vld [vmem:[%s10 + $0xe4] sm:$0xf]
      %v6647 = vld [vmem:[%s10 + $0xe8] sm:$0xf]
      %v6648 = vld [vmem:[%s10 + $0xec] sm:$0xf]
      %v6649 = vld [vmem:[%s10 + $0xf0] sm:$0xf]
      %v6650 = vld [vmem:[%s10 + $0xf4] sm:$0xf]
      %v6651 = vld [vmem:[%s10 + $0xf8] sm:$0xf]
      %v6652 = vld [vmem:[%s10 + $0xfc] sm:$0xf]
      %v6653 = vld [vmem:[%s11] sm:$0x1]
      %v6655 = vlaneseq
      %v6656 = vshrl.u32 %v6655, 7
      %v6657 = vsub.s32 0, %v6656
      %v6658 = vrot.slane %v6653, %v6657
      %v6724 = vunpack.c.l.b16 %v6589
      %v6725 = vunpack.c.l.b16 %v6590
      %v6726 = vunpack.c.l.b16 %v6591
      %v6727 = vunpack.c.l.b16 %v6592
      %v6728 = vunpack.c.l.b16 %v6593
      %v6729 = vunpack.c.l.b16 %v6594
      %v6730 = vunpack.c.l.b16 %v6595
      %v6731 = vunpack.c.l.b16 %v6596
      %v6732 = vunpack.c.l.b16 %v6597
      %v6733 = vunpack.c.l.b16 %v6598
      %v6734 = vunpack.c.l.b16 %v6599
      %v6735 = vunpack.c.l.b16 %v6600
      %v6736 = vunpack.c.l.b16 %v6601
      %v6737 = vunpack.c.l.b16 %v6602
      %v6738 = vunpack.c.l.b16 %v6603
      %v6739 = vunpack.c.l.b16 %v6604
      %v6740 = vunpack.c.l.b16 %v6605
      %v6741 = vunpack.c.l.b16 %v6606
      %v6742 = vunpack.c.l.b16 %v6607
      %v6743 = vunpack.c.l.b16 %v6608
      %v6744 = vunpack.c.l.b16 %v6609
      %v6745 = vunpack.c.l.b16 %v6610
      %v6746 = vunpack.c.l.b16 %v6611
      %v6747 = vunpack.c.l.b16 %v6612
      %v6748 = vunpack.c.l.b16 %v6613
      %v6749 = vunpack.c.l.b16 %v6614
      %v6750 = vunpack.c.l.b16 %v6615
      %v6751 = vunpack.c.l.b16 %v6616
      %v6752 = vunpack.c.l.b16 %v6617
      %v6753 = vunpack.c.l.b16 %v6618
      %v6754 = vunpack.c.l.b16 %v6619
      %v6755 = vunpack.c.l.b16 %v6620
      %v6756 = vunpack.c.l.b16 %v6621
      %v6757 = vunpack.c.l.b16 %v6622
      %v6758 = vunpack.c.l.b16 %v6623
      %v6759 = vunpack.c.l.b16 %v6624
      %v6760 = vunpack.c.l.b16 %v6625
      %v6761 = vunpack.c.l.b16 %v6626
      %v6762 = vunpack.c.l.b16 %v6627
      %v6763 = vunpack.c.l.b16 %v6628
      %v6764 = vunpack.c.l.b16 %v6629
      %v6765 = vunpack.c.l.b16 %v6630
      %v6766 = vunpack.c.l.b16 %v6631
      %v6767 = vunpack.c.l.b16 %v6632
      %v6768 = vunpack.c.l.b16 %v6633
      %v6769 = vunpack.c.l.b16 %v6634
      %v6770 = vunpack.c.l.b16 %v6635
      %v6771 = vunpack.c.l.b16 %v6636
      %v6772 = vunpack.c.l.b16 %v6637
      %v6773 = vunpack.c.l.b16 %v6638
      %v6774 = vunpack.c.l.b16 %v6639
      %v6775 = vunpack.c.l.b16 %v6640
      %v6776 = vunpack.c.l.b16 %v6641
      %v6777 = vunpack.c.l.b16 %v6642
      %v6778 = vunpack.c.l.b16 %v6643
      %v6779 = vunpack.c.l.b16 %v6644
      %v6780 = vunpack.c.l.b16 %v6645
      %v6781 = vunpack.c.l.b16 %v6646
      %v6782 = vunpack.c.l.b16 %v6647
      %v6783 = vunpack.c.l.b16 %v6648
      %v6784 = vunpack.c.l.b16 %v6649
      %v6785 = vunpack.c.l.b16 %v6650
      %v6786 = vunpack.c.l.b16 %v6651
      %v6787 = vunpack.c.l.b16 %v6652
      %v6788 = vpack.c.b16 %v6725, %v6724
      %v6789 = vpack.c.b16 %v6727, %v6726
      %v6790 = vpack.c.b16 %v6729, %v6728
      %v6791 = vpack.c.b16 %v6731, %v6730
      %v6792 = vpack.c.b16 %v6733, %v6732
      %v6793 = vpack.c.b16 %v6735, %v6734
      %v6794 = vpack.c.b16 %v6737, %v6736
      %v6795 = vpack.c.b16 %v6739, %v6738
      %v6796 = vpack.c.b16 %v6741, %v6740
      %v6797 = vpack.c.b16 %v6743, %v6742
      %v6798 = vpack.c.b16 %v6745, %v6744
      %v6799 = vpack.c.b16 %v6747, %v6746
      %v6800 = vpack.c.b16 %v6749, %v6748
      %v6801 = vpack.c.b16 %v6751, %v6750
      %v6802 = vpack.c.b16 %v6753, %v6752
      %v6803 = vpack.c.b16 %v6755, %v6754
      %v6804 = vpack.c.b16 %v6757, %v6756
      %v6805 = vpack.c.b16 %v6759, %v6758
      %v6806 = vpack.c.b16 %v6761, %v6760
      %v6807 = vpack.c.b16 %v6763, %v6762
      %v6808 = vpack.c.b16 %v6765, %v6764
      %v6809 = vpack.c.b16 %v6767, %v6766
      %v6810 = vpack.c.b16 %v6769, %v6768
      %v6811 = vpack.c.b16 %v6771, %v6770
      %v6812 = vpack.c.b16 %v6773, %v6772
      %v6813 = vpack.c.b16 %v6775, %v6774
      %v6814 = vpack.c.b16 %v6777, %v6776
      %v6815 = vpack.c.b16 %v6779, %v6778
      %v6816 = vpack.c.b16 %v6781, %v6780
      %v6817 = vpack.c.b16 %v6783, %v6782
      %v6818 = vpack.c.b16 %v6785, %v6784
      %v6819 = vpack.c.b16 %v6787, %v6786
      %6852 = vmatprep.subr.bf16.mxu0 0
      %6853 = vmatpush1.bf16.msra.mxu0 %v6788
      %6854 = vmatprep.subr.bf16.mxu0 0
      %6855 = vmatpush1.bf16.msra.mxu0 %v6789
      %6856 = vmatprep.subr.bf16.mxu0 0
      %6857 = vmatpush1.bf16.msra.mxu0 %v6790
      %6858 = vmatprep.subr.bf16.mxu0 0
      %6859 = vmatpush1.bf16.msra.mxu0 %v6791
      %6860 = vmatprep.subr.bf16.mxu0 0
      %6861 = vmatpush1.bf16.msra.mxu0 %v6792
      %6862 = vmatprep.subr.bf16.mxu0 0
      %6863 = vmatpush1.bf16.msra.mxu0 %v6793
      %6864 = vmatprep.subr.bf16.mxu0 0
      %6865 = vmatpush1.bf16.msra.mxu0 %v6794
      %6866 = vmatprep.subr.bf16.mxu0 0
      %6867 = vmatpush1.bf16.msra.mxu0 %v6795
      %6868 = vmatprep.subr.bf16.mxu0 0
      %6869 = vmatpush1.bf16.msra.mxu0 %v6796
      %6870 = vmatprep.subr.bf16.mxu0 0
      %6871 = vmatpush1.bf16.msra.mxu0 %v6797
      %6872 = vmatprep.subr.bf16.mxu0 0
      %6873 = vmatpush1.bf16.msra.mxu0 %v6798
      %6874 = vmatprep.subr.bf16.mxu0 0
      %6875 = vmatpush1.bf16.msra.mxu0 %v6799
      %6876 = vmatprep.subr.bf16.mxu0 0
      %6877 = vmatpush1.bf16.msra.mxu0 %v6800
      %6878 = vmatprep.subr.bf16.mxu0 0
      %6879 = vmatpush1.bf16.msra.mxu0 %v6801
      %6880 = vmatprep.subr.bf16.mxu0 0
      %6881 = vmatpush1.bf16.msra.mxu0 %v6802
      %6882 = vmatprep.subr.bf16.mxu0 0
      %6883 = vmatpush1.bf16.msra.mxu0 %v6803
      %6884 = vmatprep.mubr.bf16.mxu0 %v6586
      %6885 = vmatmul.mubr.bf16.gmra.mrb[0].mxu0 %v6585
      %v6886 = vpop.f32.mrb[0].mxu0
      %v6887 = vadd.f32 %v6658, %v6886
      %v6888 = vpop.f32.mrb[0].mxu0
      %v6889 = vpop.f32.mrb[0].mxu0
      %v6890 = vpop.f32.mrb[0].mxu0
      %6891 = vdwg.mxu0
      %6892 = vmatprep.subr.bf16.mxu0 0
      %6893 = vmatpush1.bf16.msra.mxu0 %v6804
      %6894 = vmatprep.subr.bf16.mxu0 0
      %6895 = vmatpush1.bf16.msra.mxu0 %v6805
      %6896 = vmatprep.subr.bf16.mxu0 0
      %6897 = vmatpush1.bf16.msra.mxu0 %v6806
      %6898 = vmatprep.subr.bf16.mxu0 0
      %6899 = vmatpush1.bf16.msra.mxu0 %v6807
      %6900 = vmatprep.subr.bf16.mxu0 0
      %6901 = vmatpush1.bf16.msra.mxu0 %v6808
      %6902 = vmatprep.subr.bf16.mxu0 0
      %6903 = vmatpush1.bf16.msra.mxu0 %v6809
      %6904 = vmatprep.subr.bf16.mxu0 0
      %6905 = vmatpush1.bf16.msra.mxu0 %v6810
      %6906 = vmatprep.subr.bf16.mxu0 0
      %6907 = vmatpush1.bf16.msra.mxu0 %v6811
      %6908 = vmatprep.subr.bf16.mxu0 0
      %6909 = vmatpush1.bf16.msra.mxu0 %v6812
      %6910 = vmatprep.subr.bf16.mxu0 0
      %6911 = vmatpush1.bf16.msra.mxu0 %v6813
      %6912 = vmatprep.subr.bf16.mxu0 0
      %6913 = vmatpush1.bf16.msra.mxu0 %v6814
      %6914 = vmatprep.subr.bf16.mxu0 0
      %6915 = vmatpush1.bf16.msra.mxu0 %v6815
      %6916 = vmatprep.subr.bf16.mxu0 0
      %6917 = vmatpush1.bf16.msra.mxu0 %v6816
      %6918 = vmatprep.subr.bf16.mxu0 0
      %6919 = vmatpush1.bf16.msra.mxu0 %v6817
      %6920 = vmatprep.subr.bf16.mxu0 0
      %6921 = vmatpush1.bf16.msra.mxu0 %v6818
      %6922 = vmatprep.subr.bf16.mxu0 0
      %6923 = vmatpush1.bf16.msra.mxu0 %v6819
      %6924 = vmatprep.mubr.bf16.mxu0 %v6588
      %6925 = vmatmul.mubr.bf16.gmra.mrb[0].mxu0 %v6587
      %v6926 = vpop.f32.mrb[0].mxu0
      %v6927 = vadd.f32 %v6887, %v6926
      %v6928 = vpop.f32.mrb[0].mxu0
      %v6929 = vpop.f32.mrb[0].mxu0
      %v6930 = vpop.f32.mrb[0].mxu0
      %6931 = vdwg.mxu0
      %vm6932 = vcmask 56320
      %6933 = vst.msk [vmem:[%s431] sm:$0xff] %vm6932, %v6927
      %p6934 = scmp.lt.s32.totalorder %s23, 1
      %s6935 = scalar_select %p6934, %s23, 1
      %s6936 = smul.addr %s6935, 8
      %s6937 = scalar_lea.vmem %s12, %s6936
      // Predicated region
      $region69: #{atari_a2c_forward.1} parent=67 // pred_check
        %p6938 = pneg %p303
      $region70: #{atari_a2c_forward.1} parent=67 // pred_check_branch
        %6940 = sbr.rel (%p6938) target = $region72
      $region71: #{atari_a2c_forward.1} parent=67 // pred_region
        _
      $region72: #{atari_a2c_forward.1} parent=67 // pred_fallthru
        _
    $region68: #{atari_a2c_forward.1} parent=5 // pred_fallthru
      _
    %p6941 = scmp.le.s32.totalorder 2, %s18
    // Predicated region
    $region73: #{atari_a2c_forward.1} parent=5 // pred_check
      %p6942 = pneg %p6941
    $region74: #{atari_a2c_forward.1} parent=5 // pred_check_branch
      %6944 = sbr.rel (%p6942) target = $region76
    $region75: #{atari_a2c_forward.1} parent=5 // pred_region
      %s6945 = ssub.s32 %s18, 2
      // Predicated region
      $region77: #{atari_a2c_forward.1} parent=75 // pred_check
        %p6946 = pneg %p309
      $region78: #{atari_a2c_forward.1} parent=75 // pred_check_branch
        %6948 = sbr.rel (%p6946) target = $region80
      $region79: #{atari_a2c_forward.1} parent=75 // pred_region
        %p6949 = scmp.lt.s32.totalorder %s24, 1
        %s6950 = scalar_select %p6949, %s24, 1
        %s6951 = smul.addr %s6950, 8
        %s6952 = scalar_lea.vmem %s12, %s6951
      $region80: #{atari_a2c_forward.1} parent=75 // pred_fallthru
        _
    $region76: #{atari_a2c_forward.1} parent=5 // pred_fallthru
      _
  $region6: #{atari_a2c_forward.1} parent=0 // loop_footer
    %s22 = sadd.s32 1, %s18
  $region7: #{atari_a2c_forward.1} parent=0 // loop_footer_branch
    %17 = sbr.rel target = $region3
  $region8: #{atari_a2c_forward.1} parent=0 // loop_exit
    _

</llo_original>
